<compile_context>
chip_gen: v5e
topology: v5e:2x2
jax: 0.10.0
libtpu: 0.0.40
codegen_flags: <defaults>
</compile_context>

<pallas_src>
import functools

import jax
import jax.numpy as jnp
from jax import lax
from jax.experimental import pallas as pl
from jax.experimental.pallas import tpu as pltpu

VOCAB_SIZE = 30522   # matches torch.rand((batch, seq, 30522)) in MockBaseModel
HIDDEN_SIZE = 768    # shape-only in the mock; hidden_states values never consumed
NUM_LAYERS = 12


def _round_up(x, m):
    return ((x + m - 1) // m) * m


def _cdiv(a, b):
    return (a + b - 1) // b


def _vmem_capacity_bytes():
    """Best-effort per-core VMEM query; conservative (v7x-sized) on failure."""
    try:
        return int(pltpu.get_tpu_info().vmem_capacity_bytes)
    except Exception:
        return 64 << 20  # safe on every generation


def _pick_tile_rows(num_rows):
    """Rows of the (B*S, 30522) logits filled per grid step.

    256 rows (~31 MiB/buffer, ~62 MiB double-buffered) on 128-MiB-VMEM chips
    (v5e/v6e); 128 rows on 64-MiB chips (v7x).  Also guarantees >= 2 tiles
    whenever B*S > 8 so the "parallel" grid axis can shard across the two
    v7x TensorCores even for small inputs.
    """
    max_rows = 256 if _vmem_capacity_bytes() >= (128 << 20) else 128
    half_rows = _round_up(_cdiv(num_rows, 2), 8)
    return max(8, min(max_rows, half_rows))


# ---------------------------------------------------------------------------
# uint32 bits -> float32 uniform in [0, 1): exponent bit-trick.
# ---------------------------------------------------------------------------
def _bits_to_uniform(bits_u32):
    mant = bits_u32 >> jnp.uint32(9)                              # top 23 bits
    one_to_two = pltpu.bitcast(mant | jnp.uint32(0x3F800000), jnp.float32)
    return one_to_two - jnp.float32(1.0)


# ---------------------------------------------------------------------------
# Main path: hardware PRNG (TPU / Mosaic).
# ---------------------------------------------------------------------------
def _logits_kernel_hw(seed_ref, o_ref):
    # Distinct stream per grid step; deterministic in (seed, tile index).
    pltpu.prng_seed(seed_ref[0], pl.program_id(0))
    bits = pltpu.prng_random_bits(o_ref.shape)
    if bits.dtype != jnp.uint32:                    # trace-time dtype normalize
        bits = pltpu.bitcast(bits, jnp.uint32)
    o_ref[...] = _bits_to_uniform(bits)


# ---------------------------------------------------------------------------
# Fallback path (non-TPU backends): stateless counter-based hash.  Row / col
# keys are avalanched on their small (rows,1)/(1,cols) shapes; only ~5 VALU
# ops (incl. the float conversion) touch the full (rows, cols) tile.
# ---------------------------------------------------------------------------
def _mix32(x):
    x = x ^ (x >> jnp.uint32(16))
    x = x * jnp.uint32(0x7FEB352D)
    x = x ^ (x >> jnp.uint32(15))
    x = x * jnp.uint32(0x846CA68B)
    x = x ^ (x >> jnp.uint32(16))
    return x


def _logits_kernel_hash(seed_ref, o_ref):
    rows, cols = o_ref.shape
    row0 = pl.program_id(0) * rows
    seed_u = seed_ref[0].astype(jnp.uint32)
    r = (lax.broadcasted_iota(jnp.int32, (rows, 1), 0) + row0).astype(jnp.uint32)
    c = lax.broadcasted_iota(jnp.int32, (1, cols), 1).astype(jnp.uint32)
    rk = _mix32(r * jnp.uint32(0x9E3779B1) + seed_u * jnp.uint32(0xC2B2AE3D))
    ck = _mix32(c * jnp.uint32(0x85EBCA77) + seed_u)
    x = rk ^ ck                            # full-tile op 1
    x = x * jnp.uint32(0x7FEB352D)         # full-tile op 2 (single-round finalizer)
    x = x ^ (x >> jnp.uint32(15))          # full-tile ops 3-4
    o_ref[...] = _bits_to_uniform(x)


@functools.partial(
    jax.jit, static_argnames=("batch_size", "seq_length", "use_hw_prng"))
def _mock_forward_impl(seed, *, batch_size, seq_length, use_hw_prng):
    bs, sl = batch_size, seq_length
    num_rows = bs * sl
    tile_rows = _pick_tile_rows(num_rows)
    num_tiles = _cdiv(num_rows, tile_rows)
    tile_bytes = tile_rows * VOCAB_SIZE * 4
    vmem_limit = int(min(_vmem_capacity_bytes(), 2 * tile_bytes + (16 << 20)))

    kernel = _logits_kernel_hw if use_hw_prng else _logits_kernel_hash

    # Big output: (B*S, 30522) logits, streamed to HBM tile-by-tile.  The last
    # block dim equals the full array extent, so the 128-divisibility rule
    # does not apply; partial final tiles are clipped on writeback.
    logits_flat = pl.pallas_call(
        kernel,
        out_shape=jax.ShapeDtypeStruct((num_rows, VOCAB_SIZE), jnp.float32),
        grid=(num_tiles,),
        in_specs=[pl.BlockSpec(memory_space=pltpu.MemorySpace.SMEM)],
        out_specs=pl.BlockSpec((tile_rows, VOCAB_SIZE), lambda i: (i, 0)),
        compiler_params=pltpu.CompilerParams(
            dimension_semantics=("parallel",),
            vmem_limit_bytes=vmem_limit,
        ),
        cost_estimate=pl.CostEstimate(
            flops=0, transcendentals=0,
            bytes_accessed=num_rows * VOCAB_SIZE * 4),
    )(seed)

    logits = logits_flat.reshape(bs, sl, VOCAB_SIZE)  # contiguous split, no copy

    # Tiny (3, B, S) block for qs / target_qs / vs: far too small for Pallas —
    # a separate kernel launch would cost more than it saves.
    key = jax.random.fold_in(jax.random.PRNGKey(seed[0]), 1)
    qsv = jax.random.uniform(key, (3, bs, sl), dtype=jnp.float32)
    return logits, qsv[0], qsv[1], qsv[2]


def mock_model_forward(input_ids, attention_mask=None, position_ids=None,
                       past_key_values=None, actions_ixs=None, states_ixs=None,
                       seed=0):
    """JAX/Pallas equivalent of MockModel.forward.

    Returns (logits, qs, target_qs, vs, past_key_values) with
      logits:          (batch, seq, 30522) float32 uniform[0,1)
      qs/target_qs/vs: (batch, seq)        float32 uniform[0,1)
      past_key_values: None
    """
    batch_size, seq_length = input_ids.shape
    seed_arr = jnp.asarray([seed], dtype=jnp.int32)
    use_hw_prng = jax.default_backend() == "tpu"
    logits, qs, target_qs, vs = _mock_forward_impl(
        seed_arr, batch_size=batch_size, seq_length=seq_length,
        use_hw_prng=use_hw_prng)
    return logits, qs, target_qs, vs, None


if __name__ == "__main__":
    key = jax.random.PRNGKey(0)
    batch, seq = 2, 8
    input_ids = jax.random.randint(key, (batch, seq), 0, VOCAB_SIZE, dtype=jnp.int32)
    attention_mask = jnp.ones((batch, seq), dtype=jnp.int32)

    logits, qs, target_qs, vs, pkv = mock_model_forward(
        input_ids, attention_mask=attention_mask, seed=0)
    jax.block_until_ready((logits, qs, target_qs, vs))

    assert logits.shape == (batch, seq, VOCAB_SIZE) and logits.dtype == jnp.float32
    assert qs.shape == (batch, seq) and qs.dtype == jnp.float32
    assert target_qs.shape == (batch, seq) and vs.shape == (batch, seq)
    assert pkv is None
    assert bool(jnp.all((logits >= 0.0) & (logits < 1.0)))
    assert bool(jnp.all((qs >= 0.0) & (qs < 1.0)))
    assert bool(jnp.all((target_qs >= 0.0) & (target_qs < 1.0)))
    assert bool(jnp.all((vs >= 0.0) & (vs < 1.0)))

    # Ragged case: B*S not a multiple of the row tile -> exercises the clipped
    # writeback of the final partial tile (review correctness concern).
    b2, s2 = 3, 5
    ids2 = jax.random.randint(key, (b2, s2), 0, VOCAB_SIZE, dtype=jnp.int32)
    l2, q2, tq2, v2, _ = mock_model_forward(ids2, seed=7)
    jax.block_until_ready((l2, q2, tq2, v2))
    assert l2.shape == (b2, s2, VOCAB_SIZE)
    assert q2.shape == (b2, s2) and tq2.shape == (b2, s2) and v2.shape == (b2, s2)
    assert bool(jnp.all((l2 >= 0.0) & (l2 < 1.0)))

    print("KERNEL_OK")
</pallas_src>

<mosaic_0001>
module attributes {stable_mosaic.version = 11 : i64} {
  func.func @_logits_kernel_hash(%arg0: i32, %arg1: memref<1xi32, #tpu.memory_space<smem>>, %arg2: memref<8x30522xf32, #tpu.memory_space<vmem>>) attributes {dimension_semantics = [#tpu.dimension_semantics<parallel>], iteration_bounds = array<i64: 2>, scalar_prefetch = 0 : i64, scratch_operands = 0 : i64, tpu.core_type = #tpu.core_type<tc>, window_params = [{transform_indices = @transform_0, window_bounds = array<i64: 1>}, {transform_indices = @transform_1, window_bounds = array<i64: 8, 30522>}]} {
    %c8_i32 = arith.constant 8 : i32
    %0 = arith.muli %arg0, %c8_i32 : i32
    %c0 = arith.constant 0 : index
    %1 = memref.load %arg1[%c0] : memref<1xi32, #tpu.memory_space<smem>>
    %2 = tpu.iota {dimensions = array<i32: 0>} : vector<8x1xi32>
    %3 = vector.broadcast %0 : i32 to vector<8x1xi32>
    %4 = arith.addi %2, %3 : vector<8x1xi32>
    %5 = tpu.iota {dimensions = array<i32: 1>} : vector<1x30522xi32>
    %c-1640531535_i32 = arith.constant -1640531535 : i32
    %6 = vector.broadcast %c-1640531535_i32 : i32 to vector<8x1xi32>
    %7 = arith.muli %4, %6 : vector<8x1xi32>
    %c-1028477379_i32 = arith.constant -1028477379 : i32
    %8 = arith.muli %1, %c-1028477379_i32 : i32
    %9 = vector.broadcast %8 : i32 to vector<8x1xi32>
    %10 = arith.addi %7, %9 : vector<8x1xi32>
    %c16_i32 = arith.constant 16 : i32
    %11 = vector.broadcast %c16_i32 : i32 to vector<8x1xi32>
    %12 = arith.shrui %10, %11 : vector<8x1xi32>
    %13 = arith.xori %10, %12 : vector<8x1xi32>
    %c2146121005_i32 = arith.constant 2146121005 : i32
    %14 = vector.broadcast %c2146121005_i32 : i32 to vector<8x1xi32>
    %15 = arith.muli %13, %14 : vector<8x1xi32>
    %c15_i32 = arith.constant 15 : i32
    %16 = vector.broadcast %c15_i32 : i32 to vector<8x1xi32>
    %17 = arith.shrui %15, %16 : vector<8x1xi32>
    %18 = arith.xori %15, %17 : vector<8x1xi32>
    %c-2073254261_i32 = arith.constant -2073254261 : i32
    %19 = vector.broadcast %c-2073254261_i32 : i32 to vector<8x1xi32>
    %20 = arith.muli %18, %19 : vector<8x1xi32>
    %c16_i32_0 = arith.constant 16 : i32
    %21 = vector.broadcast %c16_i32_0 : i32 to vector<8x1xi32>
    %22 = arith.shrui %20, %21 : vector<8x1xi32>
    %23 = arith.xori %20, %22 : vector<8x1xi32>
    %c-2048144777_i32 = arith.constant -2048144777 : i32
    %24 = vector.broadcast %c-2048144777_i32 : i32 to vector<1x30522xi32>
    %25 = arith.muli %5, %24 : vector<1x30522xi32>
    %26 = vector.broadcast %1 : i32 to vector<1x30522xi32>
    %27 = arith.addi %25, %26 : vector<1x30522xi32>
    %c16_i32_1 = arith.constant 16 : i32
    %28 = vector.broadcast %c16_i32_1 : i32 to vector<1x30522xi32>
    %29 = arith.shrui %27, %28 : vector<1x30522xi32>
    %30 = arith.xori %27, %29 : vector<1x30522xi32>
    %c2146121005_i32_2 = arith.constant 2146121005 : i32
    %31 = vector.broadcast %c2146121005_i32_2 : i32 to vector<1x30522xi32>
    %32 = arith.muli %30, %31 : vector<1x30522xi32>
    %c15_i32_3 = arith.constant 15 : i32
    %33 = vector.broadcast %c15_i32_3 : i32 to vector<1x30522xi32>
    %34 = arith.shrui %32, %33 : vector<1x30522xi32>
    %35 = arith.xori %32, %34 : vector<1x30522xi32>
    %c-2073254261_i32_4 = arith.constant -2073254261 : i32
    %36 = vector.broadcast %c-2073254261_i32_4 : i32 to vector<1x30522xi32>
    %37 = arith.muli %35, %36 : vector<1x30522xi32>
    %c16_i32_5 = arith.constant 16 : i32
    %38 = vector.broadcast %c16_i32_5 : i32 to vector<1x30522xi32>
    %39 = arith.shrui %37, %38 : vector<1x30522xi32>
    %40 = arith.xori %37, %39 : vector<1x30522xi32>
    %41 = vector.broadcast %23 : vector<8x1xi32> to vector<8x30522xi32>
    %42 = vector.broadcast %40 : vector<1x30522xi32> to vector<8x30522xi32>
    %43 = arith.xori %41, %42 : vector<8x30522xi32>
    %c2146121005_i32_6 = arith.constant 2146121005 : i32
    %44 = vector.broadcast %c2146121005_i32_6 : i32 to vector<8x30522xi32>
    %45 = arith.muli %43, %44 : vector<8x30522xi32>
    %c15_i32_7 = arith.constant 15 : i32
    %46 = vector.broadcast %c15_i32_7 : i32 to vector<8x30522xi32>
    %47 = arith.shrui %45, %46 : vector<8x30522xi32>
    %48 = arith.xori %45, %47 : vector<8x30522xi32>
    %c9_i32 = arith.constant 9 : i32
    %49 = vector.broadcast %c9_i32 : i32 to vector<8x30522xi32>
    %50 = arith.shrui %48, %49 : vector<8x30522xi32>
    %c1065353216_i32 = arith.constant 1065353216 : i32
    %51 = vector.broadcast %c1065353216_i32 : i32 to vector<8x30522xi32>
    %52 = arith.ori %50, %51 : vector<8x30522xi32>
    %53 = tpu.bitcast %52 : vector<8x30522xi32> -> vector<8x30522xf32>
    %cst = arith.constant 1.000000e+00 : f32
    %54 = vector.broadcast %cst : f32 to vector<8x30522xf32>
    %55 = arith.subf %53, %54 : vector<8x30522xf32>
    %c0_8 = arith.constant 0 : index
    %c0_9 = arith.constant 0 : index
    %56 = vector.load %arg2[%c0_8, %c0_9] : memref<8x30522xf32, #tpu.memory_space<vmem>>, vector<8x30522xf32>
    tpu.vector_store %arg2[%c0_8, %c0_9], %55 {strides = array<i32>} : memref<8x30522xf32, #tpu.memory_space<vmem>>, vector<8x30522xf32>,
    return
  }
  func.func @transform_0(%arg0: i32) -> i32 {
    %c0_i32 = arith.constant 0 : i32
    %c0_i32_0 = arith.constant 0 : i32
    return %c0_i32 : i32
  }
  func.func @transform_1(%arg0: i32) -> (i32, i32) {
    %c0_i32 = arith.constant 0 : i32
    %c0_i32_0 = arith.constant 0 : i32
    return %arg0, %c0_i32 : i32, i32
  }
}

</mosaic_0001>

<llo_original>
// kernel: _mock_forward_impl.3
$region0: #{_mock_forward_impl.3}
  #allocation0 [shape = 'u32[]', space=smem, size = 0x4, offset = 0x4, fixed_abs, tag = 'smem constant byte address 0x4 - core index']
  #allocation1 [shape = 'u32[72,128]{1,0:T(1,128)}', space=vmem, size = 0x9000, scoped, tag = 'internal scratch']
  #allocation2 [shape = 's32[1]{0:T(128)S(6)}', space=smem, size = 0x200, scoped, tag = 'scoped memory for _mock_forward_impl.3']
  %s0 = inlined_call_operand.<no memory space> [shape: s32[1], index: 0, kind: input, shape index: {}]
  %s1 = inlined_call_operand.hbm [shape: f32[16,30522], index: 1, kind: output, shape index: {}]
  %s2 = sld [smem:[#allocation0]]
  $region37: #{_mock_forward_impl.3} parent=0
    _
  %s4 = ssub.s32 1, %s2
  %s5 = scalar_select 0, %s4, %s2
  %6 = sst [smem:[#allocation2]] %s0
  $region1: #{_mock_forward_impl.3} parent=0
    #allocation3 [shape = 'u8[1957888]{0}', space=vmem, size = 0x1de000, scoped, tag = 'output window, operand 0']
    #allocation4 [shape = 's32[2]{0}', space=sflag, size = 0x8, scoped, tag = 'scoped memory for _mock_forward_impl.3']
    %7 = vsyncpa [#allocation4], 0
    %s8 = scalar_lea.sflag [#allocation4], 1
    %9 = vsyncpa %s8, 0
    loop: start=0, step=1, limit=4
    $region2: #{_mock_forward_impl.3} parent=1 // loop_pre_header
      _
    $region3: #{_mock_forward_impl.3} parent=1 // loop_header
      %s11 = sphi 0, %s15
      %p12 = scmp.ge.s32.totalorder %s11, 4
      %s19 = sphi 0, %s19
      %s21 = sphi 0, %s19
      %s22 = sphi 0, %s21
      %s36 = sphi 0, %s22
      %s42 = sphi 0, %s44
      %s45 = sphi 0, %s42
      %s46 = sphi 0, %s45
      %s62 = sphi 0, %s46
    $region4: #{_mock_forward_impl.3} parent=1 // loop_header_branch
      %14 = sbr.rel (%p12) target = $region8
    $region5: #{_mock_forward_impl.3} parent=1 // loop_body
      %s16 = ssub.s32 %s11, 1
      %s17 = ssub.s32 %s11, 2
      %s18 = sadd.s32 %s11, 1
      %s20 = sadd.s32 %s19, 1
      %p23 = scmp.eq.s32.totalorder %s11, 1
      %p24 = scmp.ne.s32.totalorder %s19, %s21
      %p25 = scmp.eq.s32.totalorder %s11, 0
      %p26 = por %p24, %p25
      %p27 = scmp.ne.s32.totalorder %s19, %s21
      %p28 = scmp.eq.s32.totalorder %s16, 1
      %p29 = por %p27, %p28
      %p30 = scmp.ne.s32.totalorder %s21, %s22
      %p31 = scmp.eq.s32.totalorder %s16, 0
      %p32 = por %p30, %p31
      %p33 = scmp.ne.s32.totalorder %s21, %s22
      %p34 = scmp.eq.s32.totalorder %s17, 1
      %p35 = por %p33, %p34
      %p37 = scmp.ne.s32.totalorder %s22, %s36
      %p38 = scmp.eq.s32.totalorder %s17, 0
      %p39 = por %p37, %p38
      %s40 = ssub.s32 %s11, %s18
      %p41 = scmp.eq.s32.totalorder %s40, 0
      %s43 = sadd.s32 %s42, 1
      %s44 = scalar_select %p41, %s42, %s43
      %p47 = pneg %p41
      %p48 = scmp.eq.s32.totalorder %s11, 1
      %p49 = por %p47, %p48
      %p50 = scmp.ne.s32.totalorder %s42, %s45
      %p51 = scmp.eq.s32.totalorder %s11, 0
      %p52 = por %p50, %p51
      %p53 = scmp.ne.s32.totalorder %s42, %s45
      %p54 = scmp.eq.s32.totalorder %s16, 1
      %p55 = por %p53, %p54
      %p56 = scmp.ne.s32.totalorder %s45, %s46
      %p57 = scmp.eq.s32.totalorder %s16, 0
      %p58 = por %p56, %p57
      %p59 = scmp.ne.s32.totalorder %s45, %s46
      %p60 = scmp.eq.s32.totalorder %s17, 1
      %p61 = por %p59, %p60
      %p63 = scmp.ne.s32.totalorder %s46, %s62
      %p64 = scmp.eq.s32.totalorder %s17, 0
      %p65 = por %p63, %p64
      %p66 = scmp.le.s32.totalorder 1, %s11
      %p67 = scmp.lt.s32.totalorder %s11, 3
      %p68 = pnand %p66, %p67
      %p69 = pneg %p68
      // Predicated region
      $region9: #{_mock_forward_impl.3} parent=5 // pred_check
        _
      $region10: #{_mock_forward_impl.3} parent=5 // pred_check_branch
        %71 = sbr.rel (%p68) target = $region12
      $region11: #{_mock_forward_impl.3} parent=5 // pred_region
        %s72 = ssub.s32 %s11, 1
        // Predicated region
        $region13: #{_mock_forward_impl.3} parent=11 // pred_check
          %p73 = pneg %p32
        $region14: #{_mock_forward_impl.3} parent=11 // pred_check_branch
          %75 = sbr.rel (%p73) target = $region16
        $region15: #{_mock_forward_impl.3} parent=11 // pred_region
          _
        $region16: #{_mock_forward_impl.3} parent=11 // pred_fallthru
          _
      $region12: #{_mock_forward_impl.3} parent=5 // pred_fallthru
        _
      %p76 = scmp.lt.s32.totalorder %s11, 2
      // Predicated region
      $region17: #{_mock_forward_impl.3} parent=5 // pred_check
        %p77 = pneg %p76
      $region18: #{_mock_forward_impl.3} parent=5 // pred_check_branch
        %79 = sbr.rel (%p77) target = $region20
      $region19: #{_mock_forward_impl.3} parent=5 // pred_region
        _
      $region20: #{_mock_forward_impl.3} parent=5 // pred_fallthru
        _
      %p80 = scmp.le.s32.totalorder 1, %s11
      %p81 = scmp.lt.s32.totalorder %s11, 3
      %p82 = pnand %p80, %p81
      %p83 = pneg %p82
      // Predicated region
      $region21: #{_mock_forward_impl.3} parent=5 // pred_check
        _
      $region22: #{_mock_forward_impl.3} parent=5 // pred_check_branch
        %85 = sbr.rel (%p82) target = $region24
      $region23: #{_mock_forward_impl.3} parent=5 // pred_region
        %s86 = ssub.s32 %s11, 1
        %p87 = pneg %p32
        %p88 = pneg %p29
        %p89 = pneg %p58
        %p90 = pneg %p55
        %s91 = sand.u32 %s45, 1
        %s92 = scalar_lea.sflag [#allocation4], %s91
        %s93 = sand.u32 %s45, 1
        %s94 = smul.addr %s93, 1912
        %s95 = scalar_lea.vmem [#allocation3], %s94
        %s96 = smul.u32 %s16, 8
        %s97 = sld [smem:[#allocation2]]
        %v98 = vlaneseq
        %v99 = vshrl.u32 %v98, 7
        %v100 = vstv %s96
        %v101 = vadd.s32 %v99, %v100
        %v102 = vlaneseq
        %v103 = vand.u32 %v102, 127
        %v104 = vadd.s32 %v103, 128
        %v105 = vadd.s32 %v103, 256
        %v106 = vadd.s32 %v103, 384
        %v107 = vadd.s32 %v103, 512
        %v108 = vadd.s32 %v103, 640
        %v109 = vadd.s32 %v103, 768
        %v110 = vadd.s32 %v103, 896
        %v111 = vadd.s32 %v103, 1024
        %v112 = vadd.s32 %v103, 1152
        %v113 = vadd.s32 %v103, 1280
        %v114 = vadd.s32 %v103, 1408
        %v115 = vadd.s32 %v103, 1536
        %v116 = vadd.s32 %v103, 1664
        %v117 = vadd.s32 %v103, 1792
        %v118 = vadd.s32 %v103, 1920
        %v119 = vadd.s32 %v103, 2048
        %v120 = vadd.s32 %v103, 2176
        %v121 = vadd.s32 %v103, 2304
        %v122 = vadd.s32 %v103, 2432
        %v123 = vadd.s32 %v103, 2560
        %v124 = vadd.s32 %v103, 2688
        %v125 = vadd.s32 %v103, 2816
        %v126 = vadd.s32 %v103, 2944
        %v127 = vadd.s32 %v103, 3072
        %v128 = vadd.s32 %v103, 3200
        %v129 = vadd.s32 %v103, 3328
        %v130 = vadd.s32 %v103, 3456
        %v131 = vadd.s32 %v103, 3584
        %v132 = vadd.s32 %v103, 3712
        %v133 = vadd.s32 %v103, 3840
        %v134 = vadd.s32 %v103, 3968
        %v135 = vadd.s32 %v103, 4096
        %v136 = vadd.s32 %v103, 4224
        %v137 = vadd.s32 %v103, 4352
        %v138 = vadd.s32 %v103, 4480
        %v139 = vadd.s32 %v103, 4608
        %v140 = vadd.s32 %v103, 4736
        %v141 = vadd.s32 %v103, 4864
        %v142 = vadd.s32 %v103, 4992
        %v143 = vadd.s32 %v103, 5120
        %v144 = vadd.s32 %v103, 5248
        %v145 = vadd.s32 %v103, 5376
        %v146 = vadd.s32 %v103, 5504
        %v147 = vadd.s32 %v103, 5632
        %v148 = vadd.s32 %v103, 5760
        %v149 = vadd.s32 %v103, 5888
        %v150 = vadd.s32 %v103, 6016
        %v151 = vadd.s32 %v103, 6144
        %v152 = vadd.s32 %v103, 6272
        %v153 = vadd.s32 %v103, 6400
        %v154 = vadd.s32 %v103, 6528
        %v155 = vadd.s32 %v103, 6656
        %v156 = vadd.s32 %v103, 6784
        %v157 = vadd.s32 %v103, 6912
        %v158 = vadd.s32 %v103, 7040
        %v159 = vadd.s32 %v103, 7168
        %v160 = vadd.s32 %v103, 7296
        %v161 = vadd.s32 %v103, 7424
        %v162 = vadd.s32 %v103, 7552
        %v163 = vadd.s32 %v103, 7680
        %v164 = vadd.s32 %v103, 7808
        %v165 = vadd.s32 %v103, 7936
        %v166 = vadd.s32 %v103, 8064
        %v167 = vadd.s32 %v103, 8192
        %v168 = vadd.s32 %v103, 8320
        %v169 = vadd.s32 %v103, 8448
        %v170 = vadd.s32 %v103, 8576
        %v171 = vadd.s32 %v103, 8704
        %v172 = vadd.s32 %v103, 8832
        %v173 = vadd.s32 %v103, 8960
        %v174 = vadd.s32 %v103, 9088
        %v175 = vadd.s32 %v103, 9216
        %v176 = vadd.s32 %v103, 9344
        %v177 = vadd.s32 %v103, 9472
        %v178 = vadd.s32 %v103, 9600
        %v179 = vadd.s32 %v103, 9728
        %v180 = vadd.s32 %v103, 9856
        %v181 = vadd.s32 %v103, 9984
        %v182 = vadd.s32 %v103, 10112
        %v183 = vadd.s32 %v103, 10240
        %v184 = vadd.s32 %v103, 10368
        %v185 = vadd.s32 %v103, 10496
        %v186 = vadd.s32 %v103, 10624
        %v187 = vadd.s32 %v103, 10752
        %v188 = vadd.s32 %v103, 10880
        %v189 = vadd.s32 %v103, 11008
        %v190 = vadd.s32 %v103, 11136
        %v191 = vadd.s32 %v103, 11264
        %v192 = vadd.s32 %v103, 11392
        %v193 = vadd.s32 %v103, 11520
        %v194 = vadd.s32 %v103, 11648
        %v195 = vadd.s32 %v103, 11776
        %v196 = vadd.s32 %v103, 11904
        %v197 = vadd.s32 %v103, 12032
        %v198 = vadd.s32 %v103, 12160
        %v199 = vadd.s32 %v103, 12288
        %v200 = vadd.s32 %v103, 12416
        %v201 = vadd.s32 %v103, 12544
        %v202 = vadd.s32 %v103, 12672
        %v203 = vadd.s32 %v103, 12800
        %v204 = vadd.s32 %v103, 12928
        %v205 = vadd.s32 %v103, 13056
        %v206 = vadd.s32 %v103, 13184
        %v207 = vadd.s32 %v103, 13312
        %v208 = vadd.s32 %v103, 13440
        %v209 = vadd.s32 %v103, 13568
        %v210 = vadd.s32 %v103, 13696
        %v211 = vadd.s32 %v103, 13824
        %v212 = vadd.s32 %v103, 13952
        %v213 = vadd.s32 %v103, 14080
        %v214 = vadd.s32 %v103, 14208
        %v215 = vadd.s32 %v103, 14336
        %v216 = vadd.s32 %v103, 14464
        %v217 = vadd.s32 %v103, 14592
        %v218 = vadd.s32 %v103, 14720
        %v219 = vadd.s32 %v103, 14848
        %v220 = vadd.s32 %v103, 14976
        %v221 = vadd.s32 %v103, 15104
        %v222 = vadd.s32 %v103, 15232
        %v223 = vadd.s32 %v103, 15360
        %v224 = vadd.s32 %v103, 15488
        %v225 = vadd.s32 %v103, 15616
        %v226 = vadd.s32 %v103, 15744
        %v227 = vadd.s32 %v103, 15872
        %v228 = vadd.s32 %v103, 16000
        %v229 = vadd.s32 %v103, 16128
        %v230 = vadd.s32 %v103, 16256
        %v231 = vadd.s32 %v103, 16384
        %v232 = vadd.s32 %v103, 16512
        %v233 = vadd.s32 %v103, 16640
        %v234 = vadd.s32 %v103, 16768
        %v235 = vadd.s32 %v103, 16896
        %v236 = vadd.s32 %v103, 17024
        %v237 = vadd.s32 %v103, 17152
        %v238 = vadd.s32 %v103, 17280
        %v239 = vadd.s32 %v103, 17408
        %v240 = vadd.s32 %v103, 17536
        %v241 = vadd.s32 %v103, 17664
        %v242 = vadd.s32 %v103, 17792
        %v243 = vadd.s32 %v103, 17920
        %v244 = vadd.s32 %v103, 18048
        %v245 = vadd.s32 %v103, 18176
        %v246 = vadd.s32 %v103, 18304
        %v247 = vadd.s32 %v103, 18432
        %v248 = vadd.s32 %v103, 18560
        %v249 = vadd.s32 %v103, 18688
        %v250 = vadd.s32 %v103, 18816
        %v251 = vadd.s32 %v103, 18944
        %v252 = vadd.s32 %v103, 19072
        %v253 = vadd.s32 %v103, 19200
        %v254 = vadd.s32 %v103, 19328
        %v255 = vadd.s32 %v103, 19456
        %v256 = vadd.s32 %v103, 19584
        %v257 = vadd.s32 %v103, 19712
        %v258 = vadd.s32 %v103, 19840
        %v259 = vadd.s32 %v103, 19968
        %v260 = vadd.s32 %v103, 20096
        %v261 = vadd.s32 %v103, 20224
        %v262 = vadd.s32 %v103, 20352
        %v263 = vadd.s32 %v103, 20480
        %v264 = vadd.s32 %v103, 20608
        %v265 = vadd.s32 %v103, 20736
        %v266 = vadd.s32 %v103, 20864
        %v267 = vadd.s32 %v103, 20992
        %v268 = vadd.s32 %v103, 21120
        %v269 = vadd.s32 %v103, 21248
        %v270 = vadd.s32 %v103, 21376
        %v271 = vadd.s32 %v103, 21504
        %v272 = vadd.s32 %v103, 21632
        %v273 = vadd.s32 %v103, 21760
        %v274 = vadd.s32 %v103, 21888
        %v275 = vadd.s32 %v103, 22016
        %v276 = vadd.s32 %v103, 22144
        %v277 = vadd.s32 %v103, 22272
        %v278 = vadd.s32 %v103, 22400
        %v279 = vadd.s32 %v103, 22528
        %v280 = vadd.s32 %v103, 22656
        %v281 = vadd.s32 %v103, 22784
        %v282 = vadd.s32 %v103, 22912
        %v283 = vadd.s32 %v103, 23040
        %v284 = vadd.s32 %v103, 23168
        %v285 = vadd.s32 %v103, 23296
        %v286 = vadd.s32 %v103, 23424
        %v287 = vadd.s32 %v103, 23552
        %v288 = vadd.s32 %v103, 23680
        %v289 = vadd.s32 %v103, 23808
        %v290 = vadd.s32 %v103, 23936
        %v291 = vadd.s32 %v103, 24064
        %v292 = vadd.s32 %v103, 24192
        %v293 = vadd.s32 %v103, 24320
        %v294 = vadd.s32 %v103, 24448
        %v295 = vadd.s32 %v103, 24576
        %v296 = vadd.s32 %v103, 24704
        %v297 = vadd.s32 %v103, 24832
        %v298 = vadd.s32 %v103, 24960
        %v299 = vadd.s32 %v103, 25088
        %v300 = vadd.s32 %v103, 25216
        %v301 = vadd.s32 %v103, 25344
        %v302 = vadd.s32 %v103, 25472
        %v303 = vadd.s32 %v103, 25600
        %v304 = vadd.s32 %v103, 25728
        %v305 = vadd.s32 %v103, 25856
        %v306 = vadd.s32 %v103, 25984
        %v307 = vadd.s32 %v103, 26112
        %v308 = vadd.s32 %v103, 26240
        %v309 = vadd.s32 %v103, 26368
        %v310 = vadd.s32 %v103, 26496
        %v311 = vadd.s32 %v103, 26624
        %v312 = vadd.s32 %v103, 26752
        %v313 = vadd.s32 %v103, 26880
        %v314 = vadd.s32 %v103, 27008
        %v315 = vadd.s32 %v103, 27136
        %v316 = vadd.s32 %v103, 27264
        %v317 = vadd.s32 %v103, 27392
        %v318 = vadd.s32 %v103, 27520
        %v319 = vadd.s32 %v103, 27648
        %v320 = vadd.s32 %v103, 27776
        %v321 = vadd.s32 %v103, 27904
        %v322 = vadd.s32 %v103, 28032
        %v323 = vadd.s32 %v103, 28160
        %v324 = vadd.s32 %v103, 28288
        %v325 = vadd.s32 %v103, 28416
        %v326 = vadd.s32 %v103, 28544
        %v327 = vadd.s32 %v103, 28672
        %v328 = vadd.s32 %v103, 28800
        %v329 = vadd.s32 %v103, 28928
        %v330 = vadd.s32 %v103, 29056
        %v331 = vadd.s32 %v103, 29184
        %v332 = vadd.s32 %v103, 29312
        %v333 = vadd.s32 %v103, 29440
        %v334 = vadd.s32 %v103, 29568
        %v335 = vadd.s32 %v103, 29696
        %v336 = vadd.s32 %v103, 29824
        %v337 = vadd.s32 %v103, 29952
        %v338 = vadd.s32 %v103, 30080
        %v339 = vadd.s32 %v103, 30208
        %v340 = vadd.s32 %v103, 30336
        %v341 = vadd.s32 %v103, 30464
        %v342 = vmul.u32 %v101, 2654435761
        %s343 = smul.u32 %s97, 3266489917
        %v344 = vstv %s343
        %v345 = vadd.s32 %v342, %v344
        %v346 = vshrl.u32 %v345, 16
        %v347 = vxor.u32 %v345, %v346
        %v348 = vmul.u32 %v347, 2146121005
        %v349 = vshrl.u32 %v348, 15
        %v350 = vxor.u32 %v348, %v349
        %v351 = vmul.u32 %v350, 2221713035
        %v352 = vshrl.u32 %v351, 16
        %v353 = vxor.u32 %v351, %v352
        %v354 = vmul.u32 %v103, 2246822519
        %v355 = vmul.u32 %v104, 2246822519
        %v356 = vmul.u32 %v105, 2246822519
        %v357 = vmul.u32 %v106, 2246822519
        %v358 = vmul.u32 %v107, 2246822519
        %v359 = vmul.u32 %v108, 2246822519
        %v360 = vmul.u32 %v109, 2246822519
        %v361 = vmul.u32 %v110, 2246822519
        %v362 = vmul.u32 %v111, 2246822519
        %v363 = vmul.u32 %v112, 2246822519
        %v364 = vmul.u32 %v113, 2246822519
        %v365 = vmul.u32 %v114, 2246822519
        %v366 = vmul.u32 %v115, 2246822519
        %v367 = vmul.u32 %v116, 2246822519
        %v368 = vmul.u32 %v117, 2246822519
        %v369 = vmul.u32 %v118, 2246822519
        %v370 = vmul.u32 %v119, 2246822519
        %v371 = vmul.u32 %v120, 2246822519
        %v372 = vmul.u32 %v121, 2246822519
        %v373 = vmul.u32 %v122, 2246822519
        %v374 = vmul.u32 %v123, 2246822519
        %v375 = vmul.u32 %v124, 2246822519
        %v376 = vmul.u32 %v125, 2246822519
        %v377 = vmul.u32 %v126, 2246822519
        %v378 = vmul.u32 %v127, 2246822519
        %v379 = vmul.u32 %v128, 2246822519
        %v380 = vmul.u32 %v129, 2246822519
        %v381 = vmul.u32 %v130, 2246822519
        %v382 = vmul.u32 %v131, 2246822519
        %v383 = vmul.u32 %v132, 2246822519
        %v384 = vmul.u32 %v133, 2246822519
        %v385 = vmul.u32 %v134, 2246822519
        %v386 = vmul.u32 %v135, 2246822519
        %v387 = vmul.u32 %v136, 2246822519
        %v388 = vmul.u32 %v137, 2246822519
        %v389 = vmul.u32 %v138, 2246822519
        %v390 = vmul.u32 %v139, 2246822519
        %v391 = vmul.u32 %v140, 2246822519
        %v392 = vmul.u32 %v141, 2246822519
        %v393 = vmul.u32 %v142, 2246822519
        %v394 = vmul.u32 %v143, 2246822519
        %v395 = vmul.u32 %v144, 2246822519
        %v396 = vmul.u32 %v145, 2246822519
        %v397 = vmul.u32 %v146, 2246822519
        %v398 = vmul.u32 %v147, 2246822519
        %v399 = vmul.u32 %v148, 2246822519
        %v400 = vmul.u32 %v149, 2246822519
        %v401 = vmul.u32 %v150, 2246822519
        %v402 = vmul.u32 %v151, 2246822519
        %v403 = vmul.u32 %v152, 2246822519
        %v404 = vmul.u32 %v153, 2246822519
        %v405 = vmul.u32 %v154, 2246822519
        %v406 = vmul.u32 %v155, 2246822519
        %v407 = vmul.u32 %v156, 2246822519
        %v408 = vmul.u32 %v157, 2246822519
        %v409 = vmul.u32 %v158, 2246822519
        %v410 = vmul.u32 %v159, 2246822519
        %v411 = vmul.u32 %v160, 2246822519
        %v412 = vmul.u32 %v161, 2246822519
        %v413 = vmul.u32 %v162, 2246822519
        %v414 = vmul.u32 %v163, 2246822519
        %v415 = vmul.u32 %v164, 2246822519
        %v416 = vmul.u32 %v165, 2246822519
        %v417 = vmul.u32 %v166, 2246822519
        %v418 = vmul.u32 %v167, 2246822519
        %v419 = vmul.u32 %v168, 2246822519
        %v420 = vmul.u32 %v169, 2246822519
        %v421 = vmul.u32 %v170, 2246822519
        %v422 = vmul.u32 %v171, 2246822519
        %v423 = vmul.u32 %v172, 2246822519
        %v424 = vmul.u32 %v173, 2246822519
        %v425 = vmul.u32 %v174, 2246822519
        %v426 = vmul.u32 %v175, 2246822519
        %v427 = vmul.u32 %v176, 2246822519
        %v428 = vmul.u32 %v177, 2246822519
        %v429 = vmul.u32 %v178, 2246822519
        %v430 = vmul.u32 %v179, 2246822519
        %v431 = vmul.u32 %v180, 2246822519
        %v432 = vmul.u32 %v181, 2246822519
        %v433 = vmul.u32 %v182, 2246822519
        %v434 = vmul.u32 %v183, 2246822519
        %v435 = vmul.u32 %v184, 2246822519
        %v436 = vmul.u32 %v185, 2246822519
        %v437 = vmul.u32 %v186, 2246822519
        %v438 = vmul.u32 %v187, 2246822519
        %v439 = vmul.u32 %v188, 2246822519
        %v440 = vmul.u32 %v189, 2246822519
        %v441 = vmul.u32 %v190, 2246822519
        %v442 = vmul.u32 %v191, 2246822519
        %v443 = vmul.u32 %v192, 2246822519
        %v444 = vmul.u32 %v193, 2246822519
        %v445 = vmul.u32 %v194, 2246822519
        %v446 = vmul.u32 %v195, 2246822519
        %v447 = vmul.u32 %v196, 2246822519
        %v448 = vmul.u32 %v197, 2246822519
        %v449 = vmul.u32 %v198, 2246822519
        %v450 = vmul.u32 %v199, 2246822519
        %v451 = vmul.u32 %v200, 2246822519
        %v452 = vmul.u32 %v201, 2246822519
        %v453 = vmul.u32 %v202, 2246822519
        %v454 = vmul.u32 %v203, 2246822519
        %v455 = vmul.u32 %v204, 2246822519
        %v456 = vmul.u32 %v205, 2246822519
        %v457 = vmul.u32 %v206, 2246822519
        %v458 = vmul.u32 %v207, 2246822519
        %v459 = vmul.u32 %v208, 2246822519
        %v460 = vmul.u32 %v209, 2246822519
        %v461 = vmul.u32 %v210, 2246822519
        %v462 = vmul.u32 %v211, 2246822519
        %v463 = vmul.u32 %v212, 2246822519
        %v464 = vmul.u32 %v213, 2246822519
        %v465 = vmul.u32 %v214, 2246822519
        %v466 = vmul.u32 %v215, 2246822519
        %v467 = vmul.u32 %v216, 2246822519
        %v468 = vmul.u32 %v217, 2246822519
        %v469 = vmul.u32 %v218, 2246822519
        %v470 = vmul.u32 %v219, 2246822519
        %v471 = vmul.u32 %v220, 2246822519
        %v472 = vmul.u32 %v221, 2246822519
        %v473 = vmul.u32 %v222, 2246822519
        %v474 = vmul.u32 %v223, 2246822519
        %v475 = vmul.u32 %v224, 2246822519
        %v476 = vmul.u32 %v225, 2246822519
        %v477 = vmul.u32 %v226, 2246822519
        %v478 = vmul.u32 %v227, 2246822519
        %v479 = vmul.u32 %v228, 2246822519
        %v480 = vmul.u32 %v229, 2246822519
        %v481 = vmul.u32 %v230, 2246822519
        %v482 = vmul.u32 %v231, 2246822519
        %v483 = vmul.u32 %v232, 2246822519
        %v484 = vmul.u32 %v233, 2246822519
        %v485 = vmul.u32 %v234, 2246822519
        %v486 = vmul.u32 %v235, 2246822519
        %v487 = vmul.u32 %v236, 2246822519
        %v488 = vmul.u32 %v237, 2246822519
        %v489 = vmul.u32 %v238, 2246822519
        %v490 = vmul.u32 %v239, 2246822519
        %v491 = vmul.u32 %v240, 2246822519
        %v492 = vmul.u32 %v241, 2246822519
        %v493 = vmul.u32 %v242, 2246822519
        %v494 = vmul.u32 %v243, 2246822519
        %v495 = vmul.u32 %v244, 2246822519
        %v496 = vmul.u32 %v245, 2246822519
        %v497 = vmul.u32 %v246, 2246822519
        %v498 = vmul.u32 %v247, 2246822519
        %v499 = vmul.u32 %v248, 2246822519
        %v500 = vmul.u32 %v249, 2246822519
        %v501 = vmul.u32 %v250, 2246822519
        %v502 = vmul.u32 %v251, 2246822519
        %v503 = vmul.u32 %v252, 2246822519
        %v504 = vmul.u32 %v253, 2246822519
        %v505 = vmul.u32 %v254, 2246822519
        %v506 = vmul.u32 %v255, 2246822519
        %v507 = vmul.u32 %v256, 2246822519
        %v508 = vmul.u32 %v257, 2246822519
        %v509 = vmul.u32 %v258, 2246822519
        %v510 = vmul.u32 %v259, 2246822519
        %v511 = vmul.u32 %v260, 2246822519
        %v512 = vmul.u32 %v261, 2246822519
        %v513 = vmul.u32 %v262, 2246822519
        %v514 = vmul.u32 %v263, 2246822519
        %v515 = vmul.u32 %v264, 2246822519
        %v516 = vmul.u32 %v265, 2246822519
        %v517 = vmul.u32 %v266, 2246822519
        %v518 = vmul.u32 %v267, 2246822519
        %v519 = vmul.u32 %v268, 2246822519
        %v520 = vmul.u32 %v269, 2246822519
        %v521 = vmul.u32 %v270, 2246822519
        %v522 = vmul.u32 %v271, 2246822519
        %v523 = vmul.u32 %v272, 2246822519
        %v524 = vmul.u32 %v273, 2246822519
        %v525 = vmul.u32 %v274, 2246822519
        %v526 = vmul.u32 %v275, 2246822519
        %v527 = vmul.u32 %v276, 2246822519
        %v528 = vmul.u32 %v277, 2246822519
        %v529 = vmul.u32 %v278, 2246822519
        %v530 = vmul.u32 %v279, 2246822519
        %v531 = vmul.u32 %v280, 2246822519
        %v532 = vmul.u32 %v281, 2246822519
        %v533 = vmul.u32 %v282, 2246822519
        %v534 = vmul.u32 %v283, 2246822519
        %v535 = vmul.u32 %v284, 2246822519
        %v536 = vmul.u32 %v285, 2246822519
        %v537 = vmul.u32 %v286, 2246822519
        %v538 = vmul.u32 %v287, 2246822519
        %v539 = vmul.u32 %v288, 2246822519
        %v540 = vmul.u32 %v289, 2246822519
        %v541 = vmul.u32 %v290, 2246822519
        %v542 = vmul.u32 %v291, 2246822519
        %v543 = vmul.u32 %v292, 2246822519
        %v544 = vmul.u32 %v293, 2246822519
        %v545 = vmul.u32 %v294, 2246822519
        %v546 = vmul.u32 %v295, 2246822519
        %v547 = vmul.u32 %v296, 2246822519
        %v548 = vmul.u32 %v297, 2246822519
        %v549 = vmul.u32 %v298, 2246822519
        %v550 = vmul.u32 %v299, 2246822519
        %v551 = vmul.u32 %v300, 2246822519
        %v552 = vmul.u32 %v301, 2246822519
        %v553 = vmul.u32 %v302, 2246822519
        %v554 = vmul.u32 %v303, 2246822519
        %v555 = vmul.u32 %v304, 2246822519
        %v556 = vmul.u32 %v305, 2246822519
        %v557 = vmul.u32 %v306, 2246822519
        %v558 = vmul.u32 %v307, 2246822519
        %v559 = vmul.u32 %v308, 2246822519
        %v560 = vmul.u32 %v309, 2246822519
        %v561 = vmul.u32 %v310, 2246822519
        %v562 = vmul.u32 %v311, 2246822519
        %v563 = vmul.u32 %v312, 2246822519
        %v564 = vmul.u32 %v313, 2246822519
        %v565 = vmul.u32 %v314, 2246822519
        %v566 = vmul.u32 %v315, 2246822519
        %v567 = vmul.u32 %v316, 2246822519
        %v568 = vmul.u32 %v317, 2246822519
        %v569 = vmul.u32 %v318, 2246822519
        %v570 = vmul.u32 %v319, 2246822519
        %v571 = vmul.u32 %v320, 2246822519
        %v572 = vmul.u32 %v321, 2246822519
        %v573 = vmul.u32 %v322, 2246822519
        %v574 = vmul.u32 %v323, 2246822519
        %v575 = vmul.u32 %v324, 2246822519
        %v576 = vmul.u32 %v325, 2246822519
        %v577 = vmul.u32 %v326, 2246822519
        %v578 = vmul.u32 %v327, 2246822519
        %v579 = vmul.u32 %v328, 2246822519
        %v580 = vmul.u32 %v329, 2246822519
        %v581 = vmul.u32 %v330, 2246822519
        %v582 = vmul.u32 %v331, 2246822519
        %v583 = vmul.u32 %v332, 2246822519
        %v584 = vmul.u32 %v333, 2246822519
        %v585 = vmul.u32 %v334, 2246822519
        %v586 = vmul.u32 %v335, 2246822519
        %v587 = vmul.u32 %v336, 2246822519
        %v588 = vmul.u32 %v337, 2246822519
        %v589 = vmul.u32 %v338, 2246822519
        %v590 = vmul.u32 %v339, 2246822519
        %v591 = vmul.u32 %v340, 2246822519
        %v592 = vmul.u32 %v341, 2246822519
        %v593 = vstv %s97
        %v594 = vadd.s32 %v354, %v593
        %v595 = vadd.s32 %v355, %v593
        %v596 = vadd.s32 %v356, %v593
        %v597 = vadd.s32 %v357, %v593
        %v598 = vadd.s32 %v358, %v593
        %v599 = vadd.s32 %v359, %v593
        %v600 = vadd.s32 %v360, %v593
        %v601 = vadd.s32 %v361, %v593
        %v602 = vadd.s32 %v362, %v593
        %v603 = vadd.s32 %v363, %v593
        %v604 = vadd.s32 %v364, %v593
        %v605 = vadd.s32 %v365, %v593
        %v606 = vadd.s32 %v366, %v593
        %v607 = vadd.s32 %v367, %v593
        %v608 = vadd.s32 %v368, %v593
        %v609 = vadd.s32 %v369, %v593
        %v610 = vadd.s32 %v370, %v593
        %v611 = vadd.s32 %v371, %v593
        %v612 = vadd.s32 %v372, %v593
        %v613 = vadd.s32 %v373, %v593
        %v614 = vadd.s32 %v374, %v593
        %v615 = vadd.s32 %v375, %v593
        %v616 = vadd.s32 %v376, %v593
        %v617 = vadd.s32 %v377, %v593
        %v618 = vadd.s32 %v378, %v593
        %v619 = vadd.s32 %v379, %v593
        %v620 = vadd.s32 %v380, %v593
        %v621 = vadd.s32 %v381, %v593
        %v622 = vadd.s32 %v382, %v593
        %v623 = vadd.s32 %v383, %v593
        %v624 = vadd.s32 %v384, %v593
        %v625 = vadd.s32 %v385, %v593
        %v626 = vadd.s32 %v386, %v593
        %v627 = vadd.s32 %v387, %v593
        %v628 = vadd.s32 %v388, %v593
        %v629 = vadd.s32 %v389, %v593
        %v630 = vadd.s32 %v390, %v593
        %v631 = vadd.s32 %v391, %v593
        %v632 = vadd.s32 %v392, %v593
        %v633 = vadd.s32 %v393, %v593
        %v634 = vadd.s32 %v394, %v593
        %v635 = vadd.s32 %v395, %v593
        %v636 = vadd.s32 %v396, %v593
        %v637 = vadd.s32 %v397, %v593
        %v638 = vadd.s32 %v398, %v593
        %v639 = vadd.s32 %v399, %v593
        %v640 = vadd.s32 %v400, %v593
        %v641 = vadd.s32 %v401, %v593
        %v642 = vadd.s32 %v402, %v593
        %v643 = vadd.s32 %v403, %v593
        %v644 = vadd.s32 %v404, %v593
        %v645 = vadd.s32 %v405, %v593
        %v646 = vadd.s32 %v406, %v593
        %v647 = vadd.s32 %v407, %v593
        %v648 = vadd.s32 %v408, %v593
        %v649 = vadd.s32 %v409, %v593
        %v650 = vadd.s32 %v410, %v593
        %v651 = vadd.s32 %v411, %v593
        %v652 = vadd.s32 %v412, %v593
        %v653 = vadd.s32 %v413, %v593
        %v654 = vadd.s32 %v414, %v593
        %v655 = vadd.s32 %v415, %v593
        %v656 = vadd.s32 %v416, %v593
        %v657 = vadd.s32 %v417, %v593
        %v658 = vadd.s32 %v418, %v593
        %v659 = vadd.s32 %v419, %v593
        %v660 = vadd.s32 %v420, %v593
        %v661 = vadd.s32 %v421, %v593
        %v662 = vadd.s32 %v422, %v593
        %v663 = vadd.s32 %v423, %v593
        %v664 = vadd.s32 %v424, %v593
        %v665 = vadd.s32 %v425, %v593
        %v666 = vadd.s32 %v426, %v593
        %v667 = vadd.s32 %v427, %v593
        %v668 = vadd.s32 %v428, %v593
        %v669 = vadd.s32 %v429, %v593
        %v670 = vadd.s32 %v430, %v593
        %v671 = vadd.s32 %v431, %v593
        %v672 = vadd.s32 %v432, %v593
        %v673 = vadd.s32 %v433, %v593
        %v674 = vadd.s32 %v434, %v593
        %v675 = vadd.s32 %v435, %v593
        %v676 = vadd.s32 %v436, %v593
        %v677 = vadd.s32 %v437, %v593
        %v678 = vadd.s32 %v438, %v593
        %v679 = vadd.s32 %v439, %v593
        %v680 = vadd.s32 %v440, %v593
        %v681 = vadd.s32 %v441, %v593
        %v682 = vadd.s32 %v442, %v593
        %v683 = vadd.s32 %v443, %v593
        %v684 = vadd.s32 %v444, %v593
        %v685 = vadd.s32 %v445, %v593
        %v686 = vadd.s32 %v446, %v593
        %v687 = vadd.s32 %v447, %v593
        %v688 = vadd.s32 %v448, %v593
        %v689 = vadd.s32 %v449, %v593
        %v690 = vadd.s32 %v450, %v593
        %v691 = vadd.s32 %v451, %v593
        %v692 = vadd.s32 %v452, %v593
        %v693 = vadd.s32 %v453, %v593
        %v694 = vadd.s32 %v454, %v593
        %v695 = vadd.s32 %v455, %v593
        %v696 = vadd.s32 %v456, %v593
        %v697 = vadd.s32 %v457, %v593
        %v698 = vadd.s32 %v458, %v593
        %v699 = vadd.s32 %v459, %v593
        %v700 = vadd.s32 %v460, %v593
        %v701 = vadd.s32 %v461, %v593
        %v702 = vadd.s32 %v462, %v593
        %v703 = vadd.s32 %v463, %v593
        %v704 = vadd.s32 %v464, %v593
        %v705 = vadd.s32 %v465, %v593
        %v706 = vadd.s32 %v466, %v593
        %v707 = vadd.s32 %v467, %v593
        %v708 = vadd.s32 %v468, %v593
        %v709 = vadd.s32 %v469, %v593
        %v710 = vadd.s32 %v470, %v593
        %v711 = vadd.s32 %v471, %v593
        %v712 = vadd.s32 %v472, %v593
        %v713 = vadd.s32 %v473, %v593
        %v714 = vadd.s32 %v474, %v593
        %v715 = vadd.s32 %v475, %v593
        %v716 = vadd.s32 %v476, %v593
        %v717 = vadd.s32 %v477, %v593
        %v718 = vadd.s32 %v478, %v593
        %v719 = vadd.s32 %v479, %v593
        %v720 = vadd.s32 %v480, %v593
        %v721 = vadd.s32 %v481, %v593
        %v722 = vadd.s32 %v482, %v593
        %v723 = vadd.s32 %v483, %v593
        %v724 = vadd.s32 %v484, %v593
        %v725 = vadd.s32 %v485, %v593
        %v726 = vadd.s32 %v486, %v593
        %v727 = vadd.s32 %v487, %v593
        %v728 = vadd.s32 %v488, %v593
        %v729 = vadd.s32 %v489, %v593
        %v730 = vadd.s32 %v490, %v593
        %v731 = vadd.s32 %v491, %v593
        %v732 = vadd.s32 %v492, %v593
        %v733 = vadd.s32 %v493, %v593
        %v734 = vadd.s32 %v494, %v593
        %v735 = vadd.s32 %v495, %v593
        %v736 = vadd.s32 %v496, %v593
        %v737 = vadd.s32 %v497, %v593
        %v738 = vadd.s32 %v498, %v593
        %v739 = vadd.s32 %v499, %v593
        %v740 = vadd.s32 %v500, %v593
        %v741 = vadd.s32 %v501, %v593
        %v742 = vadd.s32 %v502, %v593
        %v743 = vadd.s32 %v503, %v593
        %v744 = vadd.s32 %v504, %v593
        %v745 = vadd.s32 %v505, %v593
        %v746 = vadd.s32 %v506, %v593
        %v747 = vadd.s32 %v507, %v593
        %v748 = vadd.s32 %v508, %v593
        %v749 = vadd.s32 %v509, %v593
        %v750 = vadd.s32 %v510, %v593
        %v751 = vadd.s32 %v511, %v593
        %v752 = vadd.s32 %v512, %v593
        %v753 = vadd.s32 %v513, %v593
        %v754 = vadd.s32 %v514, %v593
        %v755 = vadd.s32 %v515, %v593
        %v756 = vadd.s32 %v516, %v593
        %v757 = vadd.s32 %v517, %v593
        %v758 = vadd.s32 %v518, %v593
        %v759 = vadd.s32 %v519, %v593
        %v760 = vadd.s32 %v520, %v593
        %v761 = vadd.s32 %v521, %v593
        %v762 = vadd.s32 %v522, %v593
        %v763 = vadd.s32 %v523, %v593
        %v764 = vadd.s32 %v524, %v593
        %v765 = vadd.s32 %v525, %v593
        %v766 = vadd.s32 %v526, %v593
        %v767 = vadd.s32 %v527, %v593
        %v768 = vadd.s32 %v528, %v593
        %v769 = vadd.s32 %v529, %v593
        %v770 = vadd.s32 %v530, %v593
        %v771 = vadd.s32 %v531, %v593
        %v772 = vadd.s32 %v532, %v593
        %v773 = vadd.s32 %v533, %v593
        %v774 = vadd.s32 %v534, %v593
        %v775 = vadd.s32 %v535, %v593
        %v776 = vadd.s32 %v536, %v593
        %v777 = vadd.s32 %v537, %v593
        %v778 = vadd.s32 %v538, %v593
        %v779 = vadd.s32 %v539, %v593
        %v780 = vadd.s32 %v540, %v593
        %v781 = vadd.s32 %v541, %v593
        %v782 = vadd.s32 %v542, %v593
        %v783 = vadd.s32 %v543, %v593
        %v784 = vadd.s32 %v544, %v593
        %v785 = vadd.s32 %v545, %v593
        %v786 = vadd.s32 %v546, %v593
        %v787 = vadd.s32 %v547, %v593
        %v788 = vadd.s32 %v548, %v593
        %v789 = vadd.s32 %v549, %v593
        %v790 = vadd.s32 %v550, %v593
        %v791 = vadd.s32 %v551, %v593
        %v792 = vadd.s32 %v552, %v593
        %v793 = vadd.s32 %v553, %v593
        %v794 = vadd.s32 %v554, %v593
        %v795 = vadd.s32 %v555, %v593
        %v796 = vadd.s32 %v556, %v593
        %v797 = vadd.s32 %v557, %v593
        %v798 = vadd.s32 %v558, %v593
        %v799 = vadd.s32 %v559, %v593
        %v800 = vadd.s32 %v560, %v593
        %v801 = vadd.s32 %v561, %v593
        %v802 = vadd.s32 %v562, %v593
        %v803 = vadd.s32 %v563, %v593
        %v804 = vadd.s32 %v564, %v593
        %v805 = vadd.s32 %v565, %v593
        %v806 = vadd.s32 %v566, %v593
        %v807 = vadd.s32 %v567, %v593
        %v808 = vadd.s32 %v568, %v593
        %v809 = vadd.s32 %v569, %v593
        %v810 = vadd.s32 %v570, %v593
        %v811 = vadd.s32 %v571, %v593
        %v812 = vadd.s32 %v572, %v593
        %v813 = vadd.s32 %v573, %v593
        %v814 = vadd.s32 %v574, %v593
        %v815 = vadd.s32 %v575, %v593
        %v816 = vadd.s32 %v576, %v593
        %v817 = vadd.s32 %v577, %v593
        %v818 = vadd.s32 %v578, %v593
        %v819 = vadd.s32 %v579, %v593
        %v820 = vadd.s32 %v580, %v593
        %v821 = vadd.s32 %v581, %v593
        %v822 = vadd.s32 %v582, %v593
        %v823 = vadd.s32 %v583, %v593
        %v824 = vadd.s32 %v584, %v593
        %v825 = vadd.s32 %v585, %v593
        %v826 = vadd.s32 %v586, %v593
        %v827 = vadd.s32 %v587, %v593
        %v828 = vadd.s32 %v588, %v593
        %v829 = vadd.s32 %v589, %v593
        %v830 = vadd.s32 %v590, %v593
        %v831 = vadd.s32 %v591, %v593
        %v832 = vadd.s32 %v592, %v593
        %v833 = vshrl.u32 %v594, 16
        %v834 = vshrl.u32 %v595, 16
        %v835 = vshrl.u32 %v596, 16
        %v836 = vshrl.u32 %v597, 16
        %v837 = vshrl.u32 %v598, 16
        %v838 = vshrl.u32 %v599, 16
        %v839 = vshrl.u32 %v600, 16
        %v840 = vshrl.u32 %v601, 16
        %v841 = vshrl.u32 %v602, 16
        %v842 = vshrl.u32 %v603, 16
        %v843 = vshrl.u32 %v604, 16
        %v844 = vshrl.u32 %v605, 16
        %v845 = vshrl.u32 %v606, 16
        %v846 = vshrl.u32 %v607, 16
        %v847 = vshrl.u32 %v608, 16
        %v848 = vshrl.u32 %v609, 16
        %v849 = vshrl.u32 %v610, 16
        %v850 = vshrl.u32 %v611, 16
        %v851 = vshrl.u32 %v612, 16
        %v852 = vshrl.u32 %v613, 16
        %v853 = vshrl.u32 %v614, 16
        %v854 = vshrl.u32 %v615, 16
        %v855 = vshrl.u32 %v616, 16
        %v856 = vshrl.u32 %v617, 16
        %v857 = vshrl.u32 %v618, 16
        %v858 = vshrl.u32 %v619, 16
        %v859 = vshrl.u32 %v620, 16
        %v860 = vshrl.u32 %v621, 16
        %v861 = vshrl.u32 %v622, 16
        %v862 = vshrl.u32 %v623, 16
        %v863 = vshrl.u32 %v624, 16
        %v864 = vshrl.u32 %v625, 16
        %v865 = vshrl.u32 %v626, 16
        %v866 = vshrl.u32 %v627, 16
        %v867 = vshrl.u32 %v628, 16
        %v868 = vshrl.u32 %v629, 16
        %v869 = vshrl.u32 %v630, 16
        %v870 = vshrl.u32 %v631, 16
        %v871 = vshrl.u32 %v632, 16
        %v872 = vshrl.u32 %v633, 16
        %v873 = vshrl.u32 %v634, 16
        %v874 = vshrl.u32 %v635, 16
        %v875 = vshrl.u32 %v636, 16
        %v876 = vshrl.u32 %v637, 16
        %v877 = vshrl.u32 %v638, 16
        %v878 = vshrl.u32 %v639, 16
        %v879 = vshrl.u32 %v640, 16
        %v880 = vshrl.u32 %v641, 16
        %v881 = vshrl.u32 %v642, 16
        %v882 = vshrl.u32 %v643, 16
        %v883 = vshrl.u32 %v644, 16
        %v884 = vshrl.u32 %v645, 16
        %v885 = vshrl.u32 %v646, 16
        %v886 = vshrl.u32 %v647, 16
        %v887 = vshrl.u32 %v648, 16
        %v888 = vshrl.u32 %v649, 16
        %v889 = vshrl.u32 %v650, 16
        %v890 = vshrl.u32 %v651, 16
        %v891 = vshrl.u32 %v652, 16
        %v892 = vshrl.u32 %v653, 16
        %v893 = vshrl.u32 %v654, 16
        %v894 = vshrl.u32 %v655, 16
        %v895 = vshrl.u32 %v656, 16
        %v896 = vshrl.u32 %v657, 16
        %v897 = vshrl.u32 %v658, 16
        %v898 = vshrl.u32 %v659, 16
        %v899 = vshrl.u32 %v660, 16
        %v900 = vshrl.u32 %v661, 16
        %v901 = vshrl.u32 %v662, 16
        %v902 = vshrl.u32 %v663, 16
        %v903 = vshrl.u32 %v664, 16
        %v904 = vshrl.u32 %v665, 16
        %v905 = vshrl.u32 %v666, 16
        %v906 = vshrl.u32 %v667, 16
        %v907 = vshrl.u32 %v668, 16
        %v908 = vshrl.u32 %v669, 16
        %v909 = vshrl.u32 %v670, 16
        %v910 = vshrl.u32 %v671, 16
        %v911 = vshrl.u32 %v672, 16
        %v912 = vshrl.u32 %v673, 16
        %v913 = vshrl.u32 %v674, 16
        %v914 = vshrl.u32 %v675, 16
        %v915 = vshrl.u32 %v676, 16
        %v916 = vshrl.u32 %v677, 16
        %v917 = vshrl.u32 %v678, 16
        %v918 = vshrl.u32 %v679, 16
        %v919 = vshrl.u32 %v680, 16
        %v920 = vshrl.u32 %v681, 16
        %v921 = vshrl.u32 %v682, 16
        %v922 = vshrl.u32 %v683, 16
        %v923 = vshrl.u32 %v684, 16
        %v924 = vshrl.u32 %v685, 16
        %v925 = vshrl.u32 %v686, 16
        %v926 = vshrl.u32 %v687, 16
        %v927 = vshrl.u32 %v688, 16
        %v928 = vshrl.u32 %v689, 16
        %v929 = vshrl.u32 %v690, 16
        %v930 = vshrl.u32 %v691, 16
        %v931 = vshrl.u32 %v692, 16
        %v932 = vshrl.u32 %v693, 16
        %v933 = vshrl.u32 %v694, 16
        %v934 = vshrl.u32 %v695, 16
        %v935 = vshrl.u32 %v696, 16
        %v936 = vshrl.u32 %v697, 16
        %v937 = vshrl.u32 %v698, 16
        %v938 = vshrl.u32 %v699, 16
        %v939 = vshrl.u32 %v700, 16
        %v940 = vshrl.u32 %v701, 16
        %v941 = vshrl.u32 %v702, 16
        %v942 = vshrl.u32 %v703, 16
        %v943 = vshrl.u32 %v704, 16
        %v944 = vshrl.u32 %v705, 16
        %v945 = vshrl.u32 %v706, 16
        %v946 = vshrl.u32 %v707, 16
        %v947 = vshrl.u32 %v708, 16
        %v948 = vshrl.u32 %v709, 16
        %v949 = vshrl.u32 %v710, 16
        %v950 = vshrl.u32 %v711, 16
        %v951 = vshrl.u32 %v712, 16
        %v952 = vshrl.u32 %v713, 16
        %v953 = vshrl.u32 %v714, 16
        %v954 = vshrl.u32 %v715, 16
        %v955 = vshrl.u32 %v716, 16
        %v956 = vshrl.u32 %v717, 16
        %v957 = vshrl.u32 %v718, 16
        %v958 = vshrl.u32 %v719, 16
        %v959 = vshrl.u32 %v720, 16
        %v960 = vshrl.u32 %v721, 16
        %v961 = vshrl.u32 %v722, 16
        %v962 = vshrl.u32 %v723, 16
        %v963 = vshrl.u32 %v724, 16
        %v964 = vshrl.u32 %v725, 16
        %v965 = vshrl.u32 %v726, 16
        %v966 = vshrl.u32 %v727, 16
        %v967 = vshrl.u32 %v728, 16
        %v968 = vshrl.u32 %v729, 16
        %v969 = vshrl.u32 %v730, 16
        %v970 = vshrl.u32 %v731, 16
        %v971 = vshrl.u32 %v732, 16
        %v972 = vshrl.u32 %v733, 16
        %v973 = vshrl.u32 %v734, 16
        %v974 = vshrl.u32 %v735, 16
        %v975 = vshrl.u32 %v736, 16
        %v976 = vshrl.u32 %v737, 16
        %v977 = vshrl.u32 %v738, 16
        %v978 = vshrl.u32 %v739, 16
        %v979 = vshrl.u32 %v740, 16
        %v980 = vshrl.u32 %v741, 16
        %v981 = vshrl.u32 %v742, 16
        %v982 = vshrl.u32 %v743, 16
        %v983 = vshrl.u32 %v744, 16
        %v984 = vshrl.u32 %v745, 16
        %v985 = vshrl.u32 %v746, 16
        %v986 = vshrl.u32 %v747, 16
        %v987 = vshrl.u32 %v748, 16
        %v988 = vshrl.u32 %v749, 16
        %v989 = vshrl.u32 %v750, 16
        %v990 = vshrl.u32 %v751, 16
        %v991 = vshrl.u32 %v752, 16
        %v992 = vshrl.u32 %v753, 16
        %v993 = vshrl.u32 %v754, 16
        %v994 = vshrl.u32 %v755, 16
        %v995 = vshrl.u32 %v756, 16
        %v996 = vshrl.u32 %v757, 16
        %v997 = vshrl.u32 %v758, 16
        %v998 = vshrl.u32 %v759, 16
        %v999 = vshrl.u32 %v760, 16
        %v1000 = vshrl.u32 %v761, 16
        %v1001 = vshrl.u32 %v762, 16
        %v1002 = vshrl.u32 %v763, 16
        %v1003 = vshrl.u32 %v764, 16
        %v1004 = vshrl.u32 %v765, 16
        %v1005 = vshrl.u32 %v766, 16
        %v1006 = vshrl.u32 %v767, 16
        %v1007 = vshrl.u32 %v768, 16
        %v1008 = vshrl.u32 %v769, 16
        %v1009 = vshrl.u32 %v770, 16
        %v1010 = vshrl.u32 %v771, 16
        %v1011 = vshrl.u32 %v772, 16
        %v1012 = vshrl.u32 %v773, 16
        %v1013 = vshrl.u32 %v774, 16
        %v1014 = vshrl.u32 %v775, 16
        %v1015 = vshrl.u32 %v776, 16
        %v1016 = vshrl.u32 %v777, 16
        %v1017 = vshrl.u32 %v778, 16
        %v1018 = vshrl.u32 %v779, 16
        %v1019 = vshrl.u32 %v780, 16
        %v1020 = vshrl.u32 %v781, 16
        %v1021 = vshrl.u32 %v782, 16
        %v1022 = vshrl.u32 %v783, 16
        %v1023 = vshrl.u32 %v784, 16
        %v1024 = vshrl.u32 %v785, 16
        %v1025 = vshrl.u32 %v786, 16
        %v1026 = vshrl.u32 %v787, 16
        %v1027 = vshrl.u32 %v788, 16
        %v1028 = vshrl.u32 %v789, 16
        %v1029 = vshrl.u32 %v790, 16
        %v1030 = vshrl.u32 %v791, 16
        %v1031 = vshrl.u32 %v792, 16
        %v1032 = vshrl.u32 %v793, 16
        %v1033 = vshrl.u32 %v794, 16
        %v1034 = vshrl.u32 %v795, 16
        %v1035 = vshrl.u32 %v796, 16
        %v1036 = vshrl.u32 %v797, 16
        %v1037 = vshrl.u32 %v798, 16
        %v1038 = vshrl.u32 %v799, 16
        %v1039 = vshrl.u32 %v800, 16
        %v1040 = vshrl.u32 %v801, 16
        %v1041 = vshrl.u32 %v802, 16
        %v1042 = vshrl.u32 %v803, 16
        %v1043 = vshrl.u32 %v804, 16
        %v1044 = vshrl.u32 %v805, 16
        %v1045 = vshrl.u32 %v806, 16
        %v1046 = vshrl.u32 %v807, 16
        %v1047 = vshrl.u32 %v808, 16
        %v1048 = vshrl.u32 %v809, 16
        %v1049 = vshrl.u32 %v810, 16
        %v1050 = vshrl.u32 %v811, 16
        %v1051 = vshrl.u32 %v812, 16
        %v1052 = vshrl.u32 %v813, 16
        %v1053 = vshrl.u32 %v814, 16
        %v1054 = vshrl.u32 %v815, 16
        %v1055 = vshrl.u32 %v816, 16
        %v1056 = vshrl.u32 %v817, 16
        %v1057 = vshrl.u32 %v818, 16
        %v1058 = vshrl.u32 %v819, 16
        %v1059 = vshrl.u32 %v820, 16
        %v1060 = vshrl.u32 %v821, 16
        %v1061 = vshrl.u32 %v822, 16
        %v1062 = vshrl.u32 %v823, 16
        %v1063 = vshrl.u32 %v824, 16
        %v1064 = vshrl.u32 %v825, 16
        %v1065 = vshrl.u32 %v826, 16
        %v1066 = vshrl.u32 %v827, 16
        %v1067 = vshrl.u32 %v828, 16
        %v1068 = vshrl.u32 %v829, 16
        %v1069 = vshrl.u32 %v830, 16
        %v1070 = vshrl.u32 %v831, 16
        %v1071 = vshrl.u32 %v832, 16
        %v1072 = vxor.u32 %v594, %v833
        %v1073 = vxor.u32 %v595, %v834
        %v1074 = vxor.u32 %v596, %v835
        %v1075 = vxor.u32 %v597, %v836
        %v1076 = vxor.u32 %v598, %v837
        %v1077 = vxor.u32 %v599, %v838
        %v1078 = vxor.u32 %v600, %v839
        %v1079 = vxor.u32 %v601, %v840
        %v1080 = vxor.u32 %v602, %v841
        %v1081 = vxor.u32 %v603, %v842
        %v1082 = vxor.u32 %v604, %v843
        %v1083 = vxor.u32 %v605, %v844
        %v1084 = vxor.u32 %v606, %v845
        %v1085 = vxor.u32 %v607, %v846
        %v1086 = vxor.u32 %v608, %v847
        %v1087 = vxor.u32 %v609, %v848
        %v1088 = vxor.u32 %v610, %v849
        %v1089 = vxor.u32 %v611, %v850
        %v1090 = vxor.u32 %v612, %v851
        %v1091 = vxor.u32 %v613, %v852
        %v1092 = vxor.u32 %v614, %v853
        %v1093 = vxor.u32 %v615, %v854
        %v1094 = vxor.u32 %v616, %v855
        %v1095 = vxor.u32 %v617, %v856
        %v1096 = vxor.u32 %v618, %v857
        %v1097 = vxor.u32 %v619, %v858
        %v1098 = vxor.u32 %v620, %v859
        %v1099 = vxor.u32 %v621, %v860
        %v1100 = vxor.u32 %v622, %v861
        %v1101 = vxor.u32 %v623, %v862
        %v1102 = vxor.u32 %v624, %v863
        %v1103 = vxor.u32 %v625, %v864
        %v1104 = vxor.u32 %v626, %v865
        %v1105 = vxor.u32 %v627, %v866
        %v1106 = vxor.u32 %v628, %v867
        %v1107 = vxor.u32 %v629, %v868
        %v1108 = vxor.u32 %v630, %v869
        %v1109 = vxor.u32 %v631, %v870
        %v1110 = vxor.u32 %v632, %v871
        %v1111 = vxor.u32 %v633, %v872
        %v1112 = vxor.u32 %v634, %v873
        %v1113 = vxor.u32 %v635, %v874
        %v1114 = vxor.u32 %v636, %v875
        %v1115 = vxor.u32 %v637, %v876
        %v1116 = vxor.u32 %v638, %v877
        %v1117 = vxor.u32 %v639, %v878
        %v1118 = vxor.u32 %v640, %v879
        %v1119 = vxor.u32 %v641, %v880
        %v1120 = vxor.u32 %v642, %v881
        %v1121 = vxor.u32 %v643, %v882
        %v1122 = vxor.u32 %v644, %v883
        %v1123 = vxor.u32 %v645, %v884
        %v1124 = vxor.u32 %v646, %v885
        %v1125 = vxor.u32 %v647, %v886
        %v1126 = vxor.u32 %v648, %v887
        %v1127 = vxor.u32 %v649, %v888
        %v1128 = vxor.u32 %v650, %v889
        %v1129 = vxor.u32 %v651, %v890
        %v1130 = vxor.u32 %v652, %v891
        %v1131 = vxor.u32 %v653, %v892
        %v1132 = vxor.u32 %v654, %v893
        %v1133 = vxor.u32 %v655, %v894
        %v1134 = vxor.u32 %v656, %v895
        %v1135 = vxor.u32 %v657, %v896
        %v1136 = vxor.u32 %v658, %v897
        %v1137 = vxor.u32 %v659, %v898
        %v1138 = vxor.u32 %v660, %v899
        %v1139 = vxor.u32 %v661, %v900
        %v1140 = vxor.u32 %v662, %v901
        %v1141 = vxor.u32 %v663, %v902
        %v1142 = vxor.u32 %v664, %v903
        %v1143 = vxor.u32 %v665, %v904
        %v1144 = vxor.u32 %v666, %v905
        %v1145 = vxor.u32 %v667, %v906
        %v1146 = vxor.u32 %v668, %v907
        %v1147 = vxor.u32 %v669, %v908
        %v1148 = vxor.u32 %v670, %v909
        %v1149 = vxor.u32 %v671, %v910
        %v1150 = vxor.u32 %v672, %v911
        %v1151 = vxor.u32 %v673, %v912
        %v1152 = vxor.u32 %v674, %v913
        %v1153 = vxor.u32 %v675, %v914
        %v1154 = vxor.u32 %v676, %v915
        %v1155 = vxor.u32 %v677, %v916
        %v1156 = vxor.u32 %v678, %v917
        %v1157 = vxor.u32 %v679, %v918
        %v1158 = vxor.u32 %v680, %v919
        %v1159 = vxor.u32 %v681, %v920
        %v1160 = vxor.u32 %v682, %v921
        %v1161 = vxor.u32 %v683, %v922
        %v1162 = vxor.u32 %v684, %v923
        %v1163 = vxor.u32 %v685, %v924
        %v1164 = vxor.u32 %v686, %v925
        %v1165 = vxor.u32 %v687, %v926
        %v1166 = vxor.u32 %v688, %v927
        %v1167 = vxor.u32 %v689, %v928
        %v1168 = vxor.u32 %v690, %v929
        %v1169 = vxor.u32 %v691, %v930
        %v1170 = vxor.u32 %v692, %v931
        %v1171 = vxor.u32 %v693, %v932
        %v1172 = vxor.u32 %v694, %v933
        %v1173 = vxor.u32 %v695, %v934
        %v1174 = vxor.u32 %v696, %v935
        %v1175 = vxor.u32 %v697, %v936
        %v1176 = vxor.u32 %v698, %v937
        %v1177 = vxor.u32 %v699, %v938
        %v1178 = vxor.u32 %v700, %v939
        %v1179 = vxor.u32 %v701, %v940
        %v1180 = vxor.u32 %v702, %v941
        %v1181 = vxor.u32 %v703, %v942
        %v1182 = vxor.u32 %v704, %v943
        %v1183 = vxor.u32 %v705, %v944
        %v1184 = vxor.u32 %v706, %v945
        %v1185 = vxor.u32 %v707, %v946
        %v1186 = vxor.u32 %v708, %v947
        %v1187 = vxor.u32 %v709, %v948
        %v1188 = vxor.u32 %v710, %v949
        %v1189 = vxor.u32 %v711, %v950
        %v1190 = vxor.u32 %v712, %v951
        %v1191 = vxor.u32 %v713, %v952
        %v1192 = vxor.u32 %v714, %v953
        %v1193 = vxor.u32 %v715, %v954
        %v1194 = vxor.u32 %v716, %v955
        %v1195 = vxor.u32 %v717, %v956
        %v1196 = vxor.u32 %v718, %v957
        %v1197 = vxor.u32 %v719, %v958
        %v1198 = vxor.u32 %v720, %v959
        %v1199 = vxor.u32 %v721, %v960
        %v1200 = vxor.u32 %v722, %v961
        %v1201 = vxor.u32 %v723, %v962
        %v1202 = vxor.u32 %v724, %v963
        %v1203 = vxor.u32 %v725, %v964
        %v1204 = vxor.u32 %v726, %v965
        %v1205 = vxor.u32 %v727, %v966
        %v1206 = vxor.u32 %v728, %v967
        %v1207 = vxor.u32 %v729, %v968
        %v1208 = vxor.u32 %v730, %v969
        %v1209 = vxor.u32 %v731, %v970
        %v1210 = vxor.u32 %v732, %v971
        %v1211 = vxor.u32 %v733, %v972
        %v1212 = vxor.u32 %v734, %v973
        %v1213 = vxor.u32 %v735, %v974
        %v1214 = vxor.u32 %v736, %v975
        %v1215 = vxor.u32 %v737, %v976
        %v1216 = vxor.u32 %v738, %v977
        %v1217 = vxor.u32 %v739, %v978
        %v1218 = vxor.u32 %v740, %v979
        %v1219 = vxor.u32 %v741, %v980
        %v1220 = vxor.u32 %v742, %v981
        %v1221 = vxor.u32 %v743, %v982
        %v1222 = vxor.u32 %v744, %v983
        %v1223 = vxor.u32 %v745, %v984
        %v1224 = vxor.u32 %v746, %v985
        %v1225 = vxor.u32 %v747, %v986
        %v1226 = vxor.u32 %v748, %v987
        %v1227 = vxor.u32 %v749, %v988
        %v1228 = vxor.u32 %v750, %v989
        %v1229 = vxor.u32 %v751, %v990
        %v1230 = vxor.u32 %v752, %v991
        %v1231 = vxor.u32 %v753, %v992
        %v1232 = vxor.u32 %v754, %v993
        %v1233 = vxor.u32 %v755, %v994
        %v1234 = vxor.u32 %v756, %v995
        %v1235 = vxor.u32 %v757, %v996
        %v1236 = vxor.u32 %v758, %v997
        %v1237 = vxor.u32 %v759, %v998
        %v1238 = vxor.u32 %v760, %v999
        %v1239 = vxor.u32 %v761, %v1000
        %v1240 = vxor.u32 %v762, %v1001
        %v1241 = vxor.u32 %v763, %v1002
        %v1242 = vxor.u32 %v764, %v1003
        %v1243 = vxor.u32 %v765, %v1004
        %v1244 = vxor.u32 %v766, %v1005
        %v1245 = vxor.u32 %v767, %v1006
        %v1246 = vxor.u32 %v768, %v1007
        %v1247 = vxor.u32 %v769, %v1008
        %v1248 = vxor.u32 %v770, %v1009
        %v1249 = vxor.u32 %v771, %v1010
        %v1250 = vxor.u32 %v772, %v1011
        %v1251 = vxor.u32 %v773, %v1012
        %v1252 = vxor.u32 %v774, %v1013
        %v1253 = vxor.u32 %v775, %v1014
        %v1254 = vxor.u32 %v776, %v1015
        %v1255 = vxor.u32 %v777, %v1016
        %v1256 = vxor.u32 %v778, %v1017
        %v1257 = vxor.u32 %v779, %v1018
        %v1258 = vxor.u32 %v780, %v1019
        %v1259 = vxor.u32 %v781, %v1020
        %v1260 = vxor.u32 %v782, %v1021
        %v1261 = vxor.u32 %v783, %v1022
        %v1262 = vxor.u32 %v784, %v1023
        %v1263 = vxor.u32 %v785, %v1024
        %v1264 = vxor.u32 %v786, %v1025
        %v1265 = vxor.u32 %v787, %v1026
        %v1266 = vxor.u32 %v788, %v1027
        %v1267 = vxor.u32 %v789, %v1028
        %v1268 = vxor.u32 %v790, %v1029
        %v1269 = vxor.u32 %v791, %v1030
        %v1270 = vxor.u32 %v792, %v1031
        %v1271 = vxor.u32 %v793, %v1032
        %v1272 = vxor.u32 %v794, %v1033
        %v1273 = vxor.u32 %v795, %v1034
        %v1274 = vxor.u32 %v796, %v1035
        %v1275 = vxor.u32 %v797, %v1036
        %v1276 = vxor.u32 %v798, %v1037
        %v1277 = vxor.u32 %v799, %v1038
        %v1278 = vxor.u32 %v800, %v1039
        %v1279 = vxor.u32 %v801, %v1040
        %v1280 = vxor.u32 %v802, %v1041
        %v1281 = vxor.u32 %v803, %v1042
        %v1282 = vxor.u32 %v804, %v1043
        %v1283 = vxor.u32 %v805, %v1044
        %v1284 = vxor.u32 %v806, %v1045
        %v1285 = vxor.u32 %v807, %v1046
        %v1286 = vxor.u32 %v808, %v1047
        %v1287 = vxor.u32 %v809, %v1048
        %v1288 = vxor.u32 %v810, %v1049
        %v1289 = vxor.u32 %v811, %v1050
        %v1290 = vxor.u32 %v812, %v1051
        %v1291 = vxor.u32 %v813, %v1052
        %v1292 = vxor.u32 %v814, %v1053
        %v1293 = vxor.u32 %v815, %v1054
        %v1294 = vxor.u32 %v816, %v1055
        %v1295 = vxor.u32 %v817, %v1056
        %v1296 = vxor.u32 %v818, %v1057
        %v1297 = vxor.u32 %v819, %v1058
        %v1298 = vxor.u32 %v820, %v1059
        %v1299 = vxor.u32 %v821, %v1060
        %v1300 = vxor.u32 %v822, %v1061
        %v1301 = vxor.u32 %v823, %v1062
        %v1302 = vxor.u32 %v824, %v1063
        %v1303 = vxor.u32 %v825, %v1064
        %v1304 = vxor.u32 %v826, %v1065
        %v1305 = vxor.u32 %v827, %v1066
        %v1306 = vxor.u32 %v828, %v1067
        %v1307 = vxor.u32 %v829, %v1068
        %v1308 = vxor.u32 %v830, %v1069
        %v1309 = vxor.u32 %v831, %v1070
        %v1310 = vxor.u32 %v832, %v1071
        %v1311 = vmul.u32 %v1072, 2146121005
        %v1312 = vmul.u32 %v1073, 2146121005
        %v1313 = vmul.u32 %v1074, 2146121005
        %v1314 = vmul.u32 %v1075, 2146121005
        %v1315 = vmul.u32 %v1076, 2146121005
        %v1316 = vmul.u32 %v1077, 2146121005
        %v1317 = vmul.u32 %v1078, 2146121005
        %v1318 = vmul.u32 %v1079, 2146121005
        %v1319 = vmul.u32 %v1080, 2146121005
        %v1320 = vmul.u32 %v1081, 2146121005
        %v1321 = vmul.u32 %v1082, 2146121005
        %v1322 = vmul.u32 %v1083, 2146121005
        %v1323 = vmul.u32 %v1084, 2146121005
        %v1324 = vmul.u32 %v1085, 2146121005
        %v1325 = vmul.u32 %v1086, 2146121005
        %v1326 = vmul.u32 %v1087, 2146121005
        %v1327 = vmul.u32 %v1088, 2146121005
        %v1328 = vmul.u32 %v1089, 2146121005
        %v1329 = vmul.u32 %v1090, 2146121005
        %v1330 = vmul.u32 %v1091, 2146121005
        %v1331 = vmul.u32 %v1092, 2146121005
        %v1332 = vmul.u32 %v1093, 2146121005
        %v1333 = vmul.u32 %v1094, 2146121005
        %v1334 = vmul.u32 %v1095, 2146121005
        %v1335 = vmul.u32 %v1096, 2146121005
        %v1336 = vmul.u32 %v1097, 2146121005
        %v1337 = vmul.u32 %v1098, 2146121005
        %v1338 = vmul.u32 %v1099, 2146121005
        %v1339 = vmul.u32 %v1100, 2146121005
        %v1340 = vmul.u32 %v1101, 2146121005
        %v1341 = vmul.u32 %v1102, 2146121005
        %v1342 = vmul.u32 %v1103, 2146121005
        %v1343 = vmul.u32 %v1104, 2146121005
        %v1344 = vmul.u32 %v1105, 2146121005
        %v1345 = vmul.u32 %v1106, 2146121005
        %v1346 = vmul.u32 %v1107, 2146121005
        %v1347 = vmul.u32 %v1108, 2146121005
        %v1348 = vmul.u32 %v1109, 2146121005
        %v1349 = vmul.u32 %v1110, 2146121005
        %v1350 = vmul.u32 %v1111, 2146121005
        %v1351 = vmul.u32 %v1112, 2146121005
        %v1352 = vmul.u32 %v1113, 2146121005
        %v1353 = vmul.u32 %v1114, 2146121005
        %v1354 = vmul.u32 %v1115, 2146121005
        %v1355 = vmul.u32 %v1116, 2146121005
        %v1356 = vmul.u32 %v1117, 2146121005
        %v1357 = vmul.u32 %v1118, 2146121005
        %v1358 = vmul.u32 %v1119, 2146121005
        %v1359 = vmul.u32 %v1120, 2146121005
        %v1360 = vmul.u32 %v1121, 2146121005
        %v1361 = vmul.u32 %v1122, 2146121005
        %v1362 = vmul.u32 %v1123, 2146121005
        %v1363 = vmul.u32 %v1124, 2146121005
        %v1364 = vmul.u32 %v1125, 2146121005
        %v1365 = vmul.u32 %v1126, 2146121005
        %v1366 = vmul.u32 %v1127, 2146121005
        %v1367 = vmul.u32 %v1128, 2146121005
        %v1368 = vmul.u32 %v1129, 2146121005
        %v1369 = vmul.u32 %v1130, 2146121005
        %v1370 = vmul.u32 %v1131, 2146121005
        %v1371 = vmul.u32 %v1132, 2146121005
        %v1372 = vmul.u32 %v1133, 2146121005
        %v1373 = vmul.u32 %v1134, 2146121005
        %v1374 = vmul.u32 %v1135, 2146121005
        %v1375 = vmul.u32 %v1136, 2146121005
        %v1376 = vmul.u32 %v1137, 2146121005
        %v1377 = vmul.u32 %v1138, 2146121005
        %v1378 = vmul.u32 %v1139, 2146121005
        %v1379 = vmul.u32 %v1140, 2146121005
        %v1380 = vmul.u32 %v1141, 2146121005
        %v1381 = vmul.u32 %v1142, 2146121005
        %v1382 = vmul.u32 %v1143, 2146121005
        %v1383 = vmul.u32 %v1144, 2146121005
        %v1384 = vmul.u32 %v1145, 2146121005
        %v1385 = vmul.u32 %v1146, 2146121005
        %v1386 = vmul.u32 %v1147, 2146121005
        %v1387 = vmul.u32 %v1148, 2146121005
        %v1388 = vmul.u32 %v1149, 2146121005
        %v1389 = vmul.u32 %v1150, 2146121005
        %v1390 = vmul.u32 %v1151, 2146121005
        %v1391 = vmul.u32 %v1152, 2146121005
        %v1392 = vmul.u32 %v1153, 2146121005
        %v1393 = vmul.u32 %v1154, 2146121005
        %v1394 = vmul.u32 %v1155, 2146121005
        %v1395 = vmul.u32 %v1156, 2146121005
        %v1396 = vmul.u32 %v1157, 2146121005
        %v1397 = vmul.u32 %v1158, 2146121005
        %v1398 = vmul.u32 %v1159, 2146121005
        %v1399 = vmul.u32 %v1160, 2146121005
        %v1400 = vmul.u32 %v1161, 2146121005
        %v1401 = vmul.u32 %v1162, 2146121005
        %v1402 = vmul.u32 %v1163, 2146121005
        %v1403 = vmul.u32 %v1164, 2146121005
        %v1404 = vmul.u32 %v1165, 2146121005
        %v1405 = vmul.u32 %v1166, 2146121005
        %v1406 = vmul.u32 %v1167, 2146121005
        %v1407 = vmul.u32 %v1168, 2146121005
        %v1408 = vmul.u32 %v1169, 2146121005
        %v1409 = vmul.u32 %v1170, 2146121005
        %v1410 = vmul.u32 %v1171, 2146121005
        %v1411 = vmul.u32 %v1172, 2146121005
        %v1412 = vmul.u32 %v1173, 2146121005
        %v1413 = vmul.u32 %v1174, 2146121005
        %v1414 = vmul.u32 %v1175, 2146121005
        %v1415 = vmul.u32 %v1176, 2146121005
        %v1416 = vmul.u32 %v1177, 2146121005
        %v1417 = vmul.u32 %v1178, 2146121005
        %v1418 = vmul.u32 %v1179, 2146121005
        %v1419 = vmul.u32 %v1180, 2146121005
        %v1420 = vmul.u32 %v1181, 2146121005
        %v1421 = vmul.u32 %v1182, 2146121005
        %v1422 = vmul.u32 %v1183, 2146121005
        %v1423 = vmul.u32 %v1184, 2146121005
        %v1424 = vmul.u32 %v1185, 2146121005
        %v1425 = vmul.u32 %v1186, 2146121005
        %v1426 = vmul.u32 %v1187, 2146121005
        %v1427 = vmul.u32 %v1188, 2146121005
        %v1428 = vmul.u32 %v1189, 2146121005
        %v1429 = vmul.u32 %v1190, 2146121005
        %v1430 = vmul.u32 %v1191, 2146121005
        %v1431 = vmul.u32 %v1192, 2146121005
        %v1432 = vmul.u32 %v1193, 2146121005
        %v1433 = vmul.u32 %v1194, 2146121005
        %v1434 = vmul.u32 %v1195, 2146121005
        %v1435 = vmul.u32 %v1196, 2146121005
        %v1436 = vmul.u32 %v1197, 2146121005
        %v1437 = vmul.u32 %v1198, 2146121005
        %v1438 = vmul.u32 %v1199, 2146121005
        %v1439 = vmul.u32 %v1200, 2146121005
        %v1440 = vmul.u32 %v1201, 2146121005
        %v1441 = vmul.u32 %v1202, 2146121005
        %v1442 = vmul.u32 %v1203, 2146121005
        %v1443 = vmul.u32 %v1204, 2146121005
        %v1444 = vmul.u32 %v1205, 2146121005
        %v1445 = vmul.u32 %v1206, 2146121005
        %v1446 = vmul.u32 %v1207, 2146121005
        %v1447 = vmul.u32 %v1208, 2146121005
        %v1448 = vmul.u32 %v1209, 2146121005
        %v1449 = vmul.u32 %v1210, 2146121005
        %v1450 = vmul.u32 %v1211, 2146121005
        %v1451 = vmul.u32 %v1212, 2146121005
        %v1452 = vmul.u32 %v1213, 2146121005
        %v1453 = vmul.u32 %v1214, 2146121005
        %v1454 = vmul.u32 %v1215, 2146121005
        %v1455 = vmul.u32 %v1216, 2146121005
        %v1456 = vmul.u32 %v1217, 2146121005
        %v1457 = vmul.u32 %v1218, 2146121005
        %v1458 = vmul.u32 %v1219, 2146121005
        %v1459 = vmul.u32 %v1220, 2146121005
        %v1460 = vmul.u32 %v1221, 2146121005
        %v1461 = vmul.u32 %v1222, 2146121005
        %v1462 = vmul.u32 %v1223, 2146121005
        %v1463 = vmul.u32 %v1224, 2146121005
        %v1464 = vmul.u32 %v1225, 2146121005
        %v1465 = vmul.u32 %v1226, 2146121005
        %v1466 = vmul.u32 %v1227, 2146121005
        %v1467 = vmul.u32 %v1228, 2146121005
        %v1468 = vmul.u32 %v1229, 2146121005
        %v1469 = vmul.u32 %v1230, 2146121005
        %v1470 = vmul.u32 %v1231, 2146121005
        %v1471 = vmul.u32 %v1232, 2146121005
        %v1472 = vmul.u32 %v1233, 2146121005
        %v1473 = vmul.u32 %v1234, 2146121005
        %v1474 = vmul.u32 %v1235, 2146121005
        %v1475 = vmul.u32 %v1236, 2146121005
        %v1476 = vmul.u32 %v1237, 2146121005
        %v1477 = vmul.u32 %v1238, 2146121005
        %v1478 = vmul.u32 %v1239, 2146121005
        %v1479 = vmul.u32 %v1240, 2146121005
        %v1480 = vmul.u32 %v1241, 2146121005
        %v1481 = vmul.u32 %v1242, 2146121005
        %v1482 = vmul.u32 %v1243, 2146121005
        %v1483 = vmul.u32 %v1244, 2146121005
        %v1484 = vmul.u32 %v1245, 2146121005
        %v1485 = vmul.u32 %v1246, 2146121005
        %v1486 = vmul.u32 %v1247, 2146121005
        %v1487 = vmul.u32 %v1248, 2146121005
        %v1488 = vmul.u32 %v1249, 2146121005
        %v1489 = vmul.u32 %v1250, 2146121005
        %v1490 = vmul.u32 %v1251, 2146121005
        %v1491 = vmul.u32 %v1252, 2146121005
        %v1492 = vmul.u32 %v1253, 2146121005
        %v1493 = vmul.u32 %v1254, 2146121005
        %v1494 = vmul.u32 %v1255, 2146121005
        %v1495 = vmul.u32 %v1256, 2146121005
        %v1496 = vmul.u32 %v1257, 2146121005
        %v1497 = vmul.u32 %v1258, 2146121005
        %v1498 = vmul.u32 %v1259, 2146121005
        %v1499 = vmul.u32 %v1260, 2146121005
        %v1500 = vmul.u32 %v1261, 2146121005
        %v1501 = vmul.u32 %v1262, 2146121005
        %v1502 = vmul.u32 %v1263, 2146121005
        %v1503 = vmul.u32 %v1264, 2146121005
        %v1504 = vmul.u32 %v1265, 2146121005
        %v1505 = vmul.u32 %v1266, 2146121005
        %v1506 = vmul.u32 %v1267, 2146121005
        %v1507 = vmul.u32 %v1268, 2146121005
        %v1508 = vmul.u32 %v1269, 2146121005
        %v1509 = vmul.u32 %v1270, 2146121005
        %v1510 = vmul.u32 %v1271, 2146121005
        %v1511 = vmul.u32 %v1272, 2146121005
        %v1512 = vmul.u32 %v1273, 2146121005
        %v1513 = vmul.u32 %v1274, 2146121005
        %v1514 = vmul.u32 %v1275, 2146121005
        %v1515 = vmul.u32 %v1276, 2146121005
        %v1516 = vmul.u32 %v1277, 2146121005
        %v1517 = vmul.u32 %v1278, 2146121005
        %v1518 = vmul.u32 %v1279, 2146121005
        %v1519 = vmul.u32 %v1280, 2146121005
        %v1520 = vmul.u32 %v1281, 2146121005
        %v1521 = vmul.u32 %v1282, 2146121005
        %v1522 = vmul.u32 %v1283, 2146121005
        %v1523 = vmul.u32 %v1284, 2146121005
        %v1524 = vmul.u32 %v1285, 2146121005
        %v1525 = vmul.u32 %v1286, 2146121005
        %v1526 = vmul.u32 %v1287, 2146121005
        %v1527 = vmul.u32 %v1288, 2146121005
        %v1528 = vmul.u32 %v1289, 2146121005
        %v1529 = vmul.u32 %v1290, 2146121005
        %v1530 = vmul.u32 %v1291, 2146121005
        %v1531 = vmul.u32 %v1292, 2146121005
        %v1532 = vmul.u32 %v1293, 2146121005
        %v1533 = vmul.u32 %v1294, 2146121005
        %v1534 = vmul.u32 %v1295, 2146121005
        %v1535 = vmul.u32 %v1296, 2146121005
        %v1536 = vmul.u32 %v1297, 2146121005
        %v1537 = vmul.u32 %v1298, 2146121005
        %v1538 = vmul.u32 %v1299, 2146121005
        %v1539 = vmul.u32 %v1300, 2146121005
        %v1540 = vmul.u32 %v1301, 2146121005
        %v1541 = vmul.u32 %v1302, 2146121005
        %v1542 = vmul.u32 %v1303, 2146121005
        %v1543 = vmul.u32 %v1304, 2146121005
        %v1544 = vmul.u32 %v1305, 2146121005
        %v1545 = vmul.u32 %v1306, 2146121005
        %v1546 = vmul.u32 %v1307, 2146121005
        %v1547 = vmul.u32 %v1308, 2146121005
        %v1548 = vmul.u32 %v1309, 2146121005
        %v1549 = vmul.u32 %v1310, 2146121005
        %v1550 = vshrl.u32 %v1311, 15
        %v1551 = vshrl.u32 %v1312, 15
        %v1552 = vshrl.u32 %v1313, 15
        %v1553 = vshrl.u32 %v1314, 15
        %v1554 = vshrl.u32 %v1315, 15
        %v1555 = vshrl.u32 %v1316, 15
        %v1556 = vshrl.u32 %v1317, 15
        %v1557 = vshrl.u32 %v1318, 15
        %v1558 = vshrl.u32 %v1319, 15
        %v1559 = vshrl.u32 %v1320, 15
        %v1560 = vshrl.u32 %v1321, 15
        %v1561 = vshrl.u32 %v1322, 15
        %v1562 = vshrl.u32 %v1323, 15
        %v1563 = vshrl.u32 %v1324, 15
        %v1564 = vshrl.u32 %v1325, 15
        %v1565 = vshrl.u32 %v1326, 15
        %v1566 = vshrl.u32 %v1327, 15
        %v1567 = vshrl.u32 %v1328, 15
        %v1568 = vshrl.u32 %v1329, 15
        %v1569 = vshrl.u32 %v1330, 15
        %v1570 = vshrl.u32 %v1331, 15
        %v1571 = vshrl.u32 %v1332, 15
        %v1572 = vshrl.u32 %v1333, 15
        %v1573 = vshrl.u32 %v1334, 15
        %v1574 = vshrl.u32 %v1335, 15
        %v1575 = vshrl.u32 %v1336, 15
        %v1576 = vshrl.u32 %v1337, 15
        %v1577 = vshrl.u32 %v1338, 15
        %v1578 = vshrl.u32 %v1339, 15
        %v1579 = vshrl.u32 %v1340, 15
        %v1580 = vshrl.u32 %v1341, 15
        %v1581 = vshrl.u32 %v1342, 15
        %v1582 = vshrl.u32 %v1343, 15
        %v1583 = vshrl.u32 %v1344, 15
        %v1584 = vshrl.u32 %v1345, 15
        %v1585 = vshrl.u32 %v1346, 15
        %v1586 = vshrl.u32 %v1347, 15
        %v1587 = vshrl.u32 %v1348, 15
        %v1588 = vshrl.u32 %v1349, 15
        %v1589 = vshrl.u32 %v1350, 15
        %v1590 = vshrl.u32 %v1351, 15
        %v1591 = vshrl.u32 %v1352, 15
        %v1592 = vshrl.u32 %v1353, 15
        %v1593 = vshrl.u32 %v1354, 15
        %v1594 = vshrl.u32 %v1355, 15
        %v1595 = vshrl.u32 %v1356, 15
        %v1596 = vshrl.u32 %v1357, 15
        %v1597 = vshrl.u32 %v1358, 15
        %v1598 = vshrl.u32 %v1359, 15
        %v1599 = vshrl.u32 %v1360, 15
        %v1600 = vshrl.u32 %v1361, 15
        %v1601 = vshrl.u32 %v1362, 15
        %v1602 = vshrl.u32 %v1363, 15
        %v1603 = vshrl.u32 %v1364, 15
        %v1604 = vshrl.u32 %v1365, 15
        %v1605 = vshrl.u32 %v1366, 15
        %v1606 = vshrl.u32 %v1367, 15
        %v1607 = vshrl.u32 %v1368, 15
        %v1608 = vshrl.u32 %v1369, 15
        %v1609 = vshrl.u32 %v1370, 15
        %v1610 = vshrl.u32 %v1371, 15
        %v1611 = vshrl.u32 %v1372, 15
        %v1612 = vshrl.u32 %v1373, 15
        %v1613 = vshrl.u32 %v1374, 15
        %v1614 = vshrl.u32 %v1375, 15
        %v1615 = vshrl.u32 %v1376, 15
        %v1616 = vshrl.u32 %v1377, 15
        %v1617 = vshrl.u32 %v1378, 15
        %v1618 = vshrl.u32 %v1379, 15
        %v1619 = vshrl.u32 %v1380, 15
        %v1620 = vshrl.u32 %v1381, 15
        %v1621 = vshrl.u32 %v1382, 15
        %v1622 = vshrl.u32 %v1383, 15
        %v1623 = vshrl.u32 %v1384, 15
        %v1624 = vshrl.u32 %v1385, 15
        %v1625 = vshrl.u32 %v1386, 15
        %v1626 = vshrl.u32 %v1387, 15
        %v1627 = vshrl.u32 %v1388, 15
        %v1628 = vshrl.u32 %v1389, 15
        %v1629 = vshrl.u32 %v1390, 15
        %v1630 = vshrl.u32 %v1391, 15
        %v1631 = vshrl.u32 %v1392, 15
        %v1632 = vshrl.u32 %v1393, 15
        %v1633 = vshrl.u32 %v1394, 15
        %v1634 = vshrl.u32 %v1395, 15
        %v1635 = vshrl.u32 %v1396, 15
        %v1636 = vshrl.u32 %v1397, 15
        %v1637 = vshrl.u32 %v1398, 15
        %v1638 = vshrl.u32 %v1399, 15
        %v1639 = vshrl.u32 %v1400, 15
        %v1640 = vshrl.u32 %v1401, 15
        %v1641 = vshrl.u32 %v1402, 15
        %v1642 = vshrl.u32 %v1403, 15
        %v1643 = vshrl.u32 %v1404, 15
        %v1644 = vshrl.u32 %v1405, 15
        %v1645 = vshrl.u32 %v1406, 15
        %v1646 = vshrl.u32 %v1407, 15
        %v1647 = vshrl.u32 %v1408, 15
        %v1648 = vshrl.u32 %v1409, 15
        %v1649 = vshrl.u32 %v1410, 15
        %v1650 = vshrl.u32 %v1411, 15
        %v1651 = vshrl.u32 %v1412, 15
        %v1652 = vshrl.u32 %v1413, 15
        %v1653 = vshrl.u32 %v1414, 15
        %v1654 = vshrl.u32 %v1415, 15
        %v1655 = vshrl.u32 %v1416, 15
        %v1656 = vshrl.u32 %v1417, 15
        %v1657 = vshrl.u32 %v1418, 15
        %v1658 = vshrl.u32 %v1419, 15
        %v1659 = vshrl.u32 %v1420, 15
        %v1660 = vshrl.u32 %v1421, 15
        %v1661 = vshrl.u32 %v1422, 15
        %v1662 = vshrl.u32 %v1423, 15
        %v1663 = vshrl.u32 %v1424, 15
        %v1664 = vshrl.u32 %v1425, 15
        %v1665 = vshrl.u32 %v1426, 15
        %v1666 = vshrl.u32 %v1427, 15
        %v1667 = vshrl.u32 %v1428, 15
        %v1668 = vshrl.u32 %v1429, 15
        %v1669 = vshrl.u32 %v1430, 15
        %v1670 = vshrl.u32 %v1431, 15
        %v1671 = vshrl.u32 %v1432, 15
        %v1672 = vshrl.u32 %v1433, 15
        %v1673 = vshrl.u32 %v1434, 15
        %v1674 = vshrl.u32 %v1435, 15
        %v1675 = vshrl.u32 %v1436, 15
        %v1676 = vshrl.u32 %v1437, 15
        %v1677 = vshrl.u32 %v1438, 15
        %v1678 = vshrl.u32 %v1439, 15
        %v1679 = vshrl.u32 %v1440, 15
        %v1680 = vshrl.u32 %v1441, 15
        %v1681 = vshrl.u32 %v1442, 15
        %v1682 = vshrl.u32 %v1443, 15
        %v1683 = vshrl.u32 %v1444, 15
        %v1684 = vshrl.u32 %v1445, 15
        %v1685 = vshrl.u32 %v1446, 15
        %v1686 = vshrl.u32 %v1447, 15
        %v1687 = vshrl.u32 %v1448, 15
        %v1688 = vshrl.u32 %v1449, 15
        %v1689 = vshrl.u32 %v1450, 15
        %v1690 = vshrl.u32 %v1451, 15
        %v1691 = vshrl.u32 %v1452, 15
        %v1692 = vshrl.u32 %v1453, 15
        %v1693 = vshrl.u32 %v1454, 15
        %v1694 = vshrl.u32 %v1455, 15
        %v1695 = vshrl.u32 %v1456, 15
        %v1696 = vshrl.u32 %v1457, 15
        %v1697 = vshrl.u32 %v1458, 15
        %v1698 = vshrl.u32 %v1459, 15
        %v1699 = vshrl.u32 %v1460, 15
        %v1700 = vshrl.u32 %v1461, 15
        %v1701 = vshrl.u32 %v1462, 15
        %v1702 = vshrl.u32 %v1463, 15
        %v1703 = vshrl.u32 %v1464, 15
        %v1704 = vshrl.u32 %v1465, 15
        %v1705 = vshrl.u32 %v1466, 15
        %v1706 = vshrl.u32 %v1467, 15
        %v1707 = vshrl.u32 %v1468, 15
        %v1708 = vshrl.u32 %v1469, 15
        %v1709 = vshrl.u32 %v1470, 15
        %v1710 = vshrl.u32 %v1471, 15
        %v1711 = vshrl.u32 %v1472, 15
        %v1712 = vshrl.u32 %v1473, 15
        %v1713 = vshrl.u32 %v1474, 15
        %v1714 = vshrl.u32 %v1475, 15
        %v1715 = vshrl.u32 %v1476, 15
        %v1716 = vshrl.u32 %v1477, 15
        %v1717 = vshrl.u32 %v1478, 15
        %v1718 = vshrl.u32 %v1479, 15
        %v1719 = vshrl.u32 %v1480, 15
        %v1720 = vshrl.u32 %v1481, 15
        %v1721 = vshrl.u32 %v1482, 15
        %v1722 = vshrl.u32 %v1483, 15
        %v1723 = vshrl.u32 %v1484, 15
        %v1724 = vshrl.u32 %v1485, 15
        %v1725 = vshrl.u32 %v1486, 15
        %v1726 = vshrl.u32 %v1487, 15
        %v1727 = vshrl.u32 %v1488, 15
        %v1728 = vshrl.u32 %v1489, 15
        %v1729 = vshrl.u32 %v1490, 15
        %v1730 = vshrl.u32 %v1491, 15
        %v1731 = vshrl.u32 %v1492, 15
        %v1732 = vshrl.u32 %v1493, 15
        %v1733 = vshrl.u32 %v1494, 15
        %v1734 = vshrl.u32 %v1495, 15
        %v1735 = vshrl.u32 %v1496, 15
        %v1736 = vshrl.u32 %v1497, 15
        %v1737 = vshrl.u32 %v1498, 15
        %v1738 = vshrl.u32 %v1499, 15
        %v1739 = vshrl.u32 %v1500, 15
        %v1740 = vshrl.u32 %v1501, 15
        %v1741 = vshrl.u32 %v1502, 15
        %v1742 = vshrl.u32 %v1503, 15
        %v1743 = vshrl.u32 %v1504, 15
        %v1744 = vshrl.u32 %v1505, 15
        %v1745 = vshrl.u32 %v1506, 15
        %v1746 = vshrl.u32 %v1507, 15
        %v1747 = vshrl.u32 %v1508, 15
        %v1748 = vshrl.u32 %v1509, 15
        %v1749 = vshrl.u32 %v1510, 15
        %v1750 = vshrl.u32 %v1511, 15
        %v1751 = vshrl.u32 %v1512, 15
        %v1752 = vshrl.u32 %v1513, 15
        %v1753 = vshrl.u32 %v1514, 15
        %v1754 = vshrl.u32 %v1515, 15
        %v1755 = vshrl.u32 %v1516, 15
        %v1756 = vshrl.u32 %v1517, 15
        %v1757 = vshrl.u32 %v1518, 15
        %v1758 = vshrl.u32 %v1519, 15
        %v1759 = vshrl.u32 %v1520, 15
        %v1760 = vshrl.u32 %v1521, 15
        %v1761 = vshrl.u32 %v1522, 15
        %v1762 = vshrl.u32 %v1523, 15
        %v1763 = vshrl.u32 %v1524, 15
        %v1764 = vshrl.u32 %v1525, 15
        %v1765 = vshrl.u32 %v1526, 15
        %v1766 = vshrl.u32 %v1527, 15
        %v1767 = vshrl.u32 %v1528, 15
        %v1768 = vshrl.u32 %v1529, 15
        %v1769 = vshrl.u32 %v1530, 15
        %v1770 = vshrl.u32 %v1531, 15
        %v1771 = vshrl.u32 %v1532, 15
        %v1772 = vshrl.u32 %v1533, 15
        %v1773 = vshrl.u32 %v1534, 15
        %v1774 = vshrl.u32 %v1535, 15
        %v1775 = vshrl.u32 %v1536, 15
        %v1776 = vshrl.u32 %v1537, 15
        %v1777 = vshrl.u32 %v1538, 15
        %v1778 = vshrl.u32 %v1539, 15
        %v1779 = vshrl.u32 %v1540, 15
        %v1780 = vshrl.u32 %v1541, 15
        %v1781 = vshrl.u32 %v1542, 15
        %v1782 = vshrl.u32 %v1543, 15
        %v1783 = vshrl.u32 %v1544, 15
        %v1784 = vshrl.u32 %v1545, 15
        %v1785 = vshrl.u32 %v1546, 15
        %v1786 = vshrl.u32 %v1547, 15
        %v1787 = vshrl.u32 %v1548, 15
        %v1788 = vshrl.u32 %v1549, 15
        %v1789 = vxor.u32 %v1311, %v1550
        %v1790 = vxor.u32 %v1312, %v1551
        %v1791 = vxor.u32 %v1313, %v1552
        %v1792 = vxor.u32 %v1314, %v1553
        %v1793 = vxor.u32 %v1315, %v1554
        %v1794 = vxor.u32 %v1316, %v1555
        %v1795 = vxor.u32 %v1317, %v1556
        %v1796 = vxor.u32 %v1318, %v1557
        %v1797 = vxor.u32 %v1319, %v1558
        %v1798 = vxor.u32 %v1320, %v1559
        %v1799 = vxor.u32 %v1321, %v1560
        %v1800 = vxor.u32 %v1322, %v1561
        %v1801 = vxor.u32 %v1323, %v1562
        %v1802 = vxor.u32 %v1324, %v1563
        %v1803 = vxor.u32 %v1325, %v1564
        %v1804 = vxor.u32 %v1326, %v1565
        %v1805 = vxor.u32 %v1327, %v1566
        %v1806 = vxor.u32 %v1328, %v1567
        %v1807 = vxor.u32 %v1329, %v1568
        %v1808 = vxor.u32 %v1330, %v1569
        %v1809 = vxor.u32 %v1331, %v1570
        %v1810 = vxor.u32 %v1332, %v1571
        %v1811 = vxor.u32 %v1333, %v1572
        %v1812 = vxor.u32 %v1334, %v1573
        %v1813 = vxor.u32 %v1335, %v1574
        %v1814 = vxor.u32 %v1336, %v1575
        %v1815 = vxor.u32 %v1337, %v1576
        %v1816 = vxor.u32 %v1338, %v1577
        %v1817 = vxor.u32 %v1339, %v1578
        %v1818 = vxor.u32 %v1340, %v1579
        %v1819 = vxor.u32 %v1341, %v1580
        %v1820 = vxor.u32 %v1342, %v1581
        %v1821 = vxor.u32 %v1343, %v1582
        %v1822 = vxor.u32 %v1344, %v1583
        %v1823 = vxor.u32 %v1345, %v1584
        %v1824 = vxor.u32 %v1346, %v1585
        %v1825 = vxor.u32 %v1347, %v1586
        %v1826 = vxor.u32 %v1348, %v1587
        %v1827 = vxor.u32 %v1349, %v1588
        %v1828 = vxor.u32 %v1350, %v1589
        %v1829 = vxor.u32 %v1351, %v1590
        %v1830 = vxor.u32 %v1352, %v1591
        %v1831 = vxor.u32 %v1353, %v1592
        %v1832 = vxor.u32 %v1354, %v1593
        %v1833 = vxor.u32 %v1355, %v1594
        %v1834 = vxor.u32 %v1356, %v1595
        %v1835 = vxor.u32 %v1357, %v1596
        %v1836 = vxor.u32 %v1358, %v1597
        %v1837 = vxor.u32 %v1359, %v1598
        %v1838 = vxor.u32 %v1360, %v1599
        %v1839 = vxor.u32 %v1361, %v1600
        %v1840 = vxor.u32 %v1362, %v1601
        %v1841 = vxor.u32 %v1363, %v1602
        %v1842 = vxor.u32 %v1364, %v1603
        %v1843 = vxor.u32 %v1365, %v1604
        %v1844 = vxor.u32 %v1366, %v1605
        %v1845 = vxor.u32 %v1367, %v1606
        %v1846 = vxor.u32 %v1368, %v1607
        %v1847 = vxor.u32 %v1369, %v1608
        %v1848 = vxor.u32 %v1370, %v1609
        %v1849 = vxor.u32 %v1371, %v1610
        %v1850 = vxor.u32 %v1372, %v1611
        %v1851 = vxor.u32 %v1373, %v1612
        %v1852 = vxor.u32 %v1374, %v1613
        %v1853 = vxor.u32 %v1375, %v1614
        %v1854 = vxor.u32 %v1376, %v1615
        %v1855 = vxor.u32 %v1377, %v1616
        %v1856 = vxor.u32 %v1378, %v1617
        %v1857 = vxor.u32 %v1379, %v1618
        %v1858 = vxor.u32 %v1380, %v1619
        %v1859 = vxor.u32 %v1381, %v1620
        %v1860 = vxor.u32 %v1382, %v1621
        %v1861 = vxor.u32 %v1383, %v1622
        %v1862 = vxor.u32 %v1384, %v1623
        %v1863 = vxor.u32 %v1385, %v1624
        %v1864 = vxor.u32 %v1386, %v1625
        %v1865 = vxor.u32 %v1387, %v1626
        %v1866 = vxor.u32 %v1388, %v1627
        %v1867 = vxor.u32 %v1389, %v1628
        %v1868 = vxor.u32 %v1390, %v1629
        %v1869 = vxor.u32 %v1391, %v1630
        %v1870 = vxor.u32 %v1392, %v1631
        %v1871 = vxor.u32 %v1393, %v1632
        %v1872 = vxor.u32 %v1394, %v1633
        %v1873 = vxor.u32 %v1395, %v1634
        %v1874 = vxor.u32 %v1396, %v1635
        %v1875 = vxor.u32 %v1397, %v1636
        %v1876 = vxor.u32 %v1398, %v1637
        %v1877 = vxor.u32 %v1399, %v1638
        %v1878 = vxor.u32 %v1400, %v1639
        %v1879 = vxor.u32 %v1401, %v1640
        %v1880 = vxor.u32 %v1402, %v1641
        %v1881 = vxor.u32 %v1403, %v1642
        %v1882 = vxor.u32 %v1404, %v1643
        %v1883 = vxor.u32 %v1405, %v1644
        %v1884 = vxor.u32 %v1406, %v1645
        %v1885 = vxor.u32 %v1407, %v1646
        %v1886 = vxor.u32 %v1408, %v1647
        %v1887 = vxor.u32 %v1409, %v1648
        %v1888 = vxor.u32 %v1410, %v1649
        %v1889 = vxor.u32 %v1411, %v1650
        %v1890 = vxor.u32 %v1412, %v1651
        %v1891 = vxor.u32 %v1413, %v1652
        %v1892 = vxor.u32 %v1414, %v1653
        %v1893 = vxor.u32 %v1415, %v1654
        %v1894 = vxor.u32 %v1416, %v1655
        %v1895 = vxor.u32 %v1417, %v1656
        %v1896 = vxor.u32 %v1418, %v1657
        %v1897 = vxor.u32 %v1419, %v1658
        %v1898 = vxor.u32 %v1420, %v1659
        %v1899 = vxor.u32 %v1421, %v1660
        %v1900 = vxor.u32 %v1422, %v1661
        %v1901 = vxor.u32 %v1423, %v1662
        %v1902 = vxor.u32 %v1424, %v1663
        %v1903 = vxor.u32 %v1425, %v1664
        %v1904 = vxor.u32 %v1426, %v1665
        %v1905 = vxor.u32 %v1427, %v1666
        %v1906 = vxor.u32 %v1428, %v1667
        %v1907 = vxor.u32 %v1429, %v1668
        %v1908 = vxor.u32 %v1430, %v1669
        %v1909 = vxor.u32 %v1431, %v1670
        %v1910 = vxor.u32 %v1432, %v1671
        %v1911 = vxor.u32 %v1433, %v1672
        %v1912 = vxor.u32 %v1434, %v1673
        %v1913 = vxor.u32 %v1435, %v1674
        %v1914 = vxor.u32 %v1436, %v1675
        %v1915 = vxor.u32 %v1437, %v1676
        %v1916 = vxor.u32 %v1438, %v1677
        %v1917 = vxor.u32 %v1439, %v1678
        %v1918 = vxor.u32 %v1440, %v1679
        %v1919 = vxor.u32 %v1441, %v1680
        %v1920 = vxor.u32 %v1442, %v1681
        %v1921 = vxor.u32 %v1443, %v1682
        %v1922 = vxor.u32 %v1444, %v1683
        %v1923 = vxor.u32 %v1445, %v1684
        %v1924 = vxor.u32 %v1446, %v1685
        %v1925 = vxor.u32 %v1447, %v1686
        %v1926 = vxor.u32 %v1448, %v1687
        %v1927 = vxor.u32 %v1449, %v1688
        %v1928 = vxor.u32 %v1450, %v1689
        %v1929 = vxor.u32 %v1451, %v1690
        %v1930 = vxor.u32 %v1452, %v1691
        %v1931 = vxor.u32 %v1453, %v1692
        %v1932 = vxor.u32 %v1454, %v1693
        %v1933 = vxor.u32 %v1455, %v1694
        %v1934 = vxor.u32 %v1456, %v1695
        %v1935 = vxor.u32 %v1457, %v1696
        %v1936 = vxor.u32 %v1458, %v1697
        %v1937 = vxor.u32 %v1459, %v1698
        %v1938 = vxor.u32 %v1460, %v1699
        %v1939 = vxor.u32 %v1461, %v1700
        %v1940 = vxor.u32 %v1462, %v1701
        %v1941 = vxor.u32 %v1463, %v1702
        %v1942 = vxor.u32 %v1464, %v1703
        %v1943 = vxor.u32 %v1465, %v1704
        %v1944 = vxor.u32 %v1466, %v1705
        %v1945 = vxor.u32 %v1467, %v1706
        %v1946 = vxor.u32 %v1468, %v1707
        %v1947 = vxor.u32 %v1469, %v1708
        %v1948 = vxor.u32 %v1470, %v1709
        %v1949 = vxor.u32 %v1471, %v1710
        %v1950 = vxor.u32 %v1472, %v1711
        %v1951 = vxor.u32 %v1473, %v1712
        %v1952 = vxor.u32 %v1474, %v1713
        %v1953 = vxor.u32 %v1475, %v1714
        %v1954 = vxor.u32 %v1476, %v1715
        %v1955 = vxor.u32 %v1477, %v1716
        %v1956 = vxor.u32 %v1478, %v1717
        %v1957 = vxor.u32 %v1479, %v1718
        %v1958 = vxor.u32 %v1480, %v1719
        %v1959 = vxor.u32 %v1481, %v1720
        %v1960 = vxor.u32 %v1482, %v1721
        %v1961 = vxor.u32 %v1483, %v1722
        %v1962 = vxor.u32 %v1484, %v1723
        %v1963 = vxor.u32 %v1485, %v1724
        %v1964 = vxor.u32 %v1486, %v1725
        %v1965 = vxor.u32 %v1487, %v1726
        %v1966 = vxor.u32 %v1488, %v1727
        %v1967 = vxor.u32 %v1489, %v1728
        %v1968 = vxor.u32 %v1490, %v1729
        %v1969 = vxor.u32 %v1491, %v1730
        %v1970 = vxor.u32 %v1492, %v1731
        %v1971 = vxor.u32 %v1493, %v1732
        %v1972 = vxor.u32 %v1494, %v1733
        %v1973 = vxor.u32 %v1495, %v1734
        %v1974 = vxor.u32 %v1496, %v1735
        %v1975 = vxor.u32 %v1497, %v1736
        %v1976 = vxor.u32 %v1498, %v1737
        %v1977 = vxor.u32 %v1499, %v1738
        %v1978 = vxor.u32 %v1500, %v1739
        %v1979 = vxor.u32 %v1501, %v1740
        %v1980 = vxor.u32 %v1502, %v1741
        %v1981 = vxor.u32 %v1503, %v1742
        %v1982 = vxor.u32 %v1504, %v1743
        %v1983 = vxor.u32 %v1505, %v1744
        %v1984 = vxor.u32 %v1506, %v1745
        %v1985 = vxor.u32 %v1507, %v1746
        %v1986 = vxor.u32 %v1508, %v1747
        %v1987 = vxor.u32 %v1509, %v1748
        %v1988 = vxor.u32 %v1510, %v1749
        %v1989 = vxor.u32 %v1511, %v1750
        %v1990 = vxor.u32 %v1512, %v1751
        %v1991 = vxor.u32 %v1513, %v1752
        %v1992 = vxor.u32 %v1514, %v1753
        %v1993 = vxor.u32 %v1515, %v1754
        %v1994 = vxor.u32 %v1516, %v1755
        %v1995 = vxor.u32 %v1517, %v1756
        %v1996 = vxor.u32 %v1518, %v1757
        %v1997 = vxor.u32 %v1519, %v1758
        %v1998 = vxor.u32 %v1520, %v1759
        %v1999 = vxor.u32 %v1521, %v1760
        %v2000 = vxor.u32 %v1522, %v1761
        %v2001 = vxor.u32 %v1523, %v1762
        %v2002 = vxor.u32 %v1524, %v1763
        %v2003 = vxor.u32 %v1525, %v1764
        %v2004 = vxor.u32 %v1526, %v1765
        %v2005 = vxor.u32 %v1527, %v1766
        %v2006 = vxor.u32 %v1528, %v1767
        %v2007 = vxor.u32 %v1529, %v1768
        %v2008 = vxor.u32 %v1530, %v1769
        %v2009 = vxor.u32 %v1531, %v1770
        %v2010 = vxor.u32 %v1532, %v1771
        %v2011 = vxor.u32 %v1533, %v1772
        %v2012 = vxor.u32 %v1534, %v1773
        %v2013 = vxor.u32 %v1535, %v1774
        %v2014 = vxor.u32 %v1536, %v1775
        %v2015 = vxor.u32 %v1537, %v1776
        %v2016 = vxor.u32 %v1538, %v1777
        %v2017 = vxor.u32 %v1539, %v1778
        %v2018 = vxor.u32 %v1540, %v1779
        %v2019 = vxor.u32 %v1541, %v1780
        %v2020 = vxor.u32 %v1542, %v1781
        %v2021 = vxor.u32 %v1543, %v1782
        %v2022 = vxor.u32 %v1544, %v1783
        %v2023 = vxor.u32 %v1545, %v1784
        %v2024 = vxor.u32 %v1546, %v1785
        %v2025 = vxor.u32 %v1547, %v1786
        %v2026 = vxor.u32 %v1548, %v1787
        %v2027 = vxor.u32 %v1549, %v1788
        %v2028 = vmul.u32 %v1789, 2221713035
        %v2029 = vmul.u32 %v1790, 2221713035
        %v2030 = vmul.u32 %v1791, 2221713035
        %v2031 = vmul.u32 %v1792, 2221713035
        %v2032 = vmul.u32 %v1793, 2221713035
        %v2033 = vmul.u32 %v1794, 2221713035
        %v2034 = vmul.u32 %v1795, 2221713035
        %v2035 = vmul.u32 %v1796, 2221713035
        %v2036 = vmul.u32 %v1797, 2221713035
        %v2037 = vmul.u32 %v1798, 2221713035
        %v2038 = vmul.u32 %v1799, 2221713035
        %v2039 = vmul.u32 %v1800, 2221713035
        %v2040 = vmul.u32 %v1801, 2221713035
        %v2041 = vmul.u32 %v1802, 2221713035
        %v2042 = vmul.u32 %v1803, 2221713035
        %v2043 = vmul.u32 %v1804, 2221713035
        %v2044 = vmul.u32 %v1805, 2221713035
        %v2045 = vmul.u32 %v1806, 2221713035
        %v2046 = vmul.u32 %v1807, 2221713035
        %v2047 = vmul.u32 %v1808, 2221713035
        %v2048 = vmul.u32 %v1809, 2221713035
        %v2049 = vmul.u32 %v1810, 2221713035
        %v2050 = vmul.u32 %v1811, 2221713035
        %v2051 = vmul.u32 %v1812, 2221713035
        %v2052 = vmul.u32 %v1813, 2221713035
        %v2053 = vmul.u32 %v1814, 2221713035
        %v2054 = vmul.u32 %v1815, 2221713035
        %v2055 = vmul.u32 %v1816, 2221713035
        %v2056 = vmul.u32 %v1817, 2221713035
        %v2057 = vmul.u32 %v1818, 2221713035
        %v2058 = vmul.u32 %v1819, 2221713035
        %v2059 = vmul.u32 %v1820, 2221713035
        %v2060 = vmul.u32 %v1821, 2221713035
        %v2061 = vmul.u32 %v1822, 2221713035
        %v2062 = vmul.u32 %v1823, 2221713035
        %v2063 = vmul.u32 %v1824, 2221713035
        %v2064 = vmul.u32 %v1825, 2221713035
        %v2065 = vmul.u32 %v1826, 2221713035
        %v2066 = vmul.u32 %v1827, 2221713035
        %v2067 = vmul.u32 %v1828, 2221713035
        %v2068 = vmul.u32 %v1829, 2221713035
        %v2069 = vmul.u32 %v1830, 2221713035
        %v2070 = vmul.u32 %v1831, 2221713035
        %v2071 = vmul.u32 %v1832, 2221713035
        %v2072 = vmul.u32 %v1833, 2221713035
        %v2073 = vmul.u32 %v1834, 2221713035
        %v2074 = vmul.u32 %v1835, 2221713035
        %v2075 = vmul.u32 %v1836, 2221713035
        %v2076 = vmul.u32 %v1837, 2221713035
        %v2077 = vmul.u32 %v1838, 2221713035
        %v2078 = vmul.u32 %v1839, 2221713035
        %v2079 = vmul.u32 %v1840, 2221713035
        %v2080 = vmul.u32 %v1841, 2221713035
        %v2081 = vmul.u32 %v1842, 2221713035
        %v2082 = vmul.u32 %v1843, 2221713035
        %v2083 = vmul.u32 %v1844, 2221713035
        %v2084 = vmul.u32 %v1845, 2221713035
        %v2085 = vmul.u32 %v1846, 2221713035
        %v2086 = vmul.u32 %v1847, 2221713035
        %v2087 = vmul.u32 %v1848, 2221713035
        %v2088 = vmul.u32 %v1849, 2221713035
        %v2089 = vmul.u32 %v1850, 2221713035
        %v2090 = vmul.u32 %v1851, 2221713035
        %v2091 = vmul.u32 %v1852, 2221713035
        %v2092 = vmul.u32 %v1853, 2221713035
        %v2093 = vmul.u32 %v1854, 2221713035
        %v2094 = vmul.u32 %v1855, 2221713035
        %v2095 = vmul.u32 %v1856, 2221713035
        %v2096 = vmul.u32 %v1857, 2221713035
        %v2097 = vmul.u32 %v1858, 2221713035
        %v2098 = vmul.u32 %v1859, 2221713035
        %v2099 = vmul.u32 %v1860, 2221713035
        %v2100 = vmul.u32 %v1861, 2221713035
        %v2101 = vmul.u32 %v1862, 2221713035
        %v2102 = vmul.u32 %v1863, 2221713035
        %v2103 = vmul.u32 %v1864, 2221713035
        %v2104 = vmul.u32 %v1865, 2221713035
        %v2105 = vmul.u32 %v1866, 2221713035
        %v2106 = vmul.u32 %v1867, 2221713035
        %v2107 = vmul.u32 %v1868, 2221713035
        %v2108 = vmul.u32 %v1869, 2221713035
        %v2109 = vmul.u32 %v1870, 2221713035
        %v2110 = vmul.u32 %v1871, 2221713035
        %v2111 = vmul.u32 %v1872, 2221713035
        %v2112 = vmul.u32 %v1873, 2221713035
        %v2113 = vmul.u32 %v1874, 2221713035
        %v2114 = vmul.u32 %v1875, 2221713035
        %v2115 = vmul.u32 %v1876, 2221713035
        %v2116 = vmul.u32 %v1877, 2221713035
        %v2117 = vmul.u32 %v1878, 2221713035
        %v2118 = vmul.u32 %v1879, 2221713035
        %v2119 = vmul.u32 %v1880, 2221713035
        %v2120 = vmul.u32 %v1881, 2221713035
        %v2121 = vmul.u32 %v1882, 2221713035
        %v2122 = vmul.u32 %v1883, 2221713035
        %v2123 = vmul.u32 %v1884, 2221713035
        %v2124 = vmul.u32 %v1885, 2221713035
        %v2125 = vmul.u32 %v1886, 2221713035
        %v2126 = vmul.u32 %v1887, 2221713035
        %v2127 = vmul.u32 %v1888, 2221713035
        %v2128 = vmul.u32 %v1889, 2221713035
        %v2129 = vmul.u32 %v1890, 2221713035
        %v2130 = vmul.u32 %v1891, 2221713035
        %v2131 = vmul.u32 %v1892, 2221713035
        %v2132 = vmul.u32 %v1893, 2221713035
        %v2133 = vmul.u32 %v1894, 2221713035
        %v2134 = vmul.u32 %v1895, 2221713035
        %v2135 = vmul.u32 %v1896, 2221713035
        %v2136 = vmul.u32 %v1897, 2221713035
        %v2137 = vmul.u32 %v1898, 2221713035
        %v2138 = vmul.u32 %v1899, 2221713035
        %v2139 = vmul.u32 %v1900, 2221713035
        %v2140 = vmul.u32 %v1901, 2221713035
        %v2141 = vmul.u32 %v1902, 2221713035
        %v2142 = vmul.u32 %v1903, 2221713035
        %v2143 = vmul.u32 %v1904, 2221713035
        %v2144 = vmul.u32 %v1905, 2221713035
        %v2145 = vmul.u32 %v1906, 2221713035
        %v2146 = vmul.u32 %v1907, 2221713035
        %v2147 = vmul.u32 %v1908, 2221713035
        %v2148 = vmul.u32 %v1909, 2221713035
        %v2149 = vmul.u32 %v1910, 2221713035
        %v2150 = vmul.u32 %v1911, 2221713035
        %v2151 = vmul.u32 %v1912, 2221713035
        %v2152 = vmul.u32 %v1913, 2221713035
        %v2153 = vmul.u32 %v1914, 2221713035
        %v2154 = vmul.u32 %v1915, 2221713035
        %v2155 = vmul.u32 %v1916, 2221713035
        %v2156 = vmul.u32 %v1917, 2221713035
        %v2157 = vmul.u32 %v1918, 2221713035
        %v2158 = vmul.u32 %v1919, 2221713035
        %v2159 = vmul.u32 %v1920, 2221713035
        %v2160 = vmul.u32 %v1921, 2221713035
        %v2161 = vmul.u32 %v1922, 2221713035
        %v2162 = vmul.u32 %v1923, 2221713035
        %v2163 = vmul.u32 %v1924, 2221713035
        %v2164 = vmul.u32 %v1925, 2221713035
        %v2165 = vmul.u32 %v1926, 2221713035
        %v2166 = vmul.u32 %v1927, 2221713035
        %v2167 = vmul.u32 %v1928, 2221713035
        %v2168 = vmul.u32 %v1929, 2221713035
        %v2169 = vmul.u32 %v1930, 2221713035
        %v2170 = vmul.u32 %v1931, 2221713035
        %v2171 = vmul.u32 %v1932, 2221713035
        %v2172 = vmul.u32 %v1933, 2221713035
        %v2173 = vmul.u32 %v1934, 2221713035
        %v2174 = vmul.u32 %v1935, 2221713035
        %v2175 = vmul.u32 %v1936, 2221713035
        %v2176 = vmul.u32 %v1937, 2221713035
        %v2177 = vmul.u32 %v1938, 2221713035
        %v2178 = vmul.u32 %v1939, 2221713035
        %v2179 = vmul.u32 %v1940, 2221713035
        %v2180 = vmul.u32 %v1941, 2221713035
        %v2181 = vmul.u32 %v1942, 2221713035
        %v2182 = vmul.u32 %v1943, 2221713035
        %v2183 = vmul.u32 %v1944, 2221713035
        %v2184 = vmul.u32 %v1945, 2221713035
        %v2185 = vmul.u32 %v1946, 2221713035
        %v2186 = vmul.u32 %v1947, 2221713035
        %v2187 = vmul.u32 %v1948, 2221713035
        %v2188 = vmul.u32 %v1949, 2221713035
        %v2189 = vmul.u32 %v1950, 2221713035
        %v2190 = vmul.u32 %v1951, 2221713035
        %v2191 = vmul.u32 %v1952, 2221713035
        %v2192 = vmul.u32 %v1953, 2221713035
        %v2193 = vmul.u32 %v1954, 2221713035
        %v2194 = vmul.u32 %v1955, 2221713035
        %v2195 = vmul.u32 %v1956, 2221713035
        %v2196 = vmul.u32 %v1957, 2221713035
        %v2197 = vmul.u32 %v1958, 2221713035
        %v2198 = vmul.u32 %v1959, 2221713035
        %v2199 = vmul.u32 %v1960, 2221713035
        %v2200 = vmul.u32 %v1961, 2221713035
        %v2201 = vmul.u32 %v1962, 2221713035
        %v2202 = vmul.u32 %v1963, 2221713035
        %v2203 = vmul.u32 %v1964, 2221713035
        %v2204 = vmul.u32 %v1965, 2221713035
        %v2205 = vmul.u32 %v1966, 2221713035
        %v2206 = vmul.u32 %v1967, 2221713035
        %v2207 = vmul.u32 %v1968, 2221713035
        %v2208 = vmul.u32 %v1969, 2221713035
        %v2209 = vmul.u32 %v1970, 2221713035
        %v2210 = vmul.u32 %v1971, 2221713035
        %v2211 = vmul.u32 %v1972, 2221713035
        %v2212 = vmul.u32 %v1973, 2221713035
        %v2213 = vmul.u32 %v1974, 2221713035
        %v2214 = vmul.u32 %v1975, 2221713035
        %v2215 = vmul.u32 %v1976, 2221713035
        %v2216 = vmul.u32 %v1977, 2221713035
        %v2217 = vmul.u32 %v1978, 2221713035
        %v2218 = vmul.u32 %v1979, 2221713035
        %v2219 = vmul.u32 %v1980, 2221713035
        %v2220 = vmul.u32 %v1981, 2221713035
        %v2221 = vmul.u32 %v1982, 2221713035
        %v2222 = vmul.u32 %v1983, 2221713035
        %v2223 = vmul.u32 %v1984, 2221713035
        %v2224 = vmul.u32 %v1985, 2221713035
        %v2225 = vmul.u32 %v1986, 2221713035
        %v2226 = vmul.u32 %v1987, 2221713035
        %v2227 = vmul.u32 %v1988, 2221713035
        %v2228 = vmul.u32 %v1989, 2221713035
        %v2229 = vmul.u32 %v1990, 2221713035
        %v2230 = vmul.u32 %v1991, 2221713035
        %v2231 = vmul.u32 %v1992, 2221713035
        %v2232 = vmul.u32 %v1993, 2221713035
        %v2233 = vmul.u32 %v1994, 2221713035
        %v2234 = vmul.u32 %v1995, 2221713035
        %v2235 = vmul.u32 %v1996, 2221713035
        %v2236 = vmul.u32 %v1997, 2221713035
        %v2237 = vmul.u32 %v1998, 2221713035
        %v2238 = vmul.u32 %v1999, 2221713035
        %v2239 = vmul.u32 %v2000, 2221713035
        %v2240 = vmul.u32 %v2001, 2221713035
        %v2241 = vmul.u32 %v2002, 2221713035
        %v2242 = vmul.u32 %v2003, 2221713035
        %v2243 = vmul.u32 %v2004, 2221713035
        %v2244 = vmul.u32 %v2005, 2221713035
        %v2245 = vmul.u32 %v2006, 2221713035
        %v2246 = vmul.u32 %v2007, 2221713035
        %v2247 = vmul.u32 %v2008, 2221713035
        %v2248 = vmul.u32 %v2009, 2221713035
        %v2249 = vmul.u32 %v2010, 2221713035
        %v2250 = vmul.u32 %v2011, 2221713035
        %v2251 = vmul.u32 %v2012, 2221713035
        %v2252 = vmul.u32 %v2013, 2221713035
        %v2253 = vmul.u32 %v2014, 2221713035
        %v2254 = vmul.u32 %v2015, 2221713035
        %v2255 = vmul.u32 %v2016, 2221713035
        %v2256 = vmul.u32 %v2017, 2221713035
        %v2257 = vmul.u32 %v2018, 2221713035
        %v2258 = vmul.u32 %v2019, 2221713035
        %v2259 = vmul.u32 %v2020, 2221713035
        %v2260 = vmul.u32 %v2021, 2221713035
        %v2261 = vmul.u32 %v2022, 2221713035
        %v2262 = vmul.u32 %v2023, 2221713035
        %v2263 = vmul.u32 %v2024, 2221713035
        %v2264 = vmul.u32 %v2025, 2221713035
        %v2265 = vmul.u32 %v2026, 2221713035
        %v2266 = vmul.u32 %v2027, 2221713035
        %v2267 = vshrl.u32 %v2028, 16
        %v2268 = vshrl.u32 %v2029, 16
        %v2269 = vshrl.u32 %v2030, 16
        %v2270 = vshrl.u32 %v2031, 16
        %v2271 = vshrl.u32 %v2032, 16
        %v2272 = vshrl.u32 %v2033, 16
        %v2273 = vshrl.u32 %v2034, 16
        %v2274 = vshrl.u32 %v2035, 16
        %v2275 = vshrl.u32 %v2036, 16
        %v2276 = vshrl.u32 %v2037, 16
        %v2277 = vshrl.u32 %v2038, 16
        %v2278 = vshrl.u32 %v2039, 16
        %v2279 = vshrl.u32 %v2040, 16
        %v2280 = vshrl.u32 %v2041, 16
        %v2281 = vshrl.u32 %v2042, 16
        %v2282 = vshrl.u32 %v2043, 16
        %v2283 = vshrl.u32 %v2044, 16
        %v2284 = vshrl.u32 %v2045, 16
        %v2285 = vshrl.u32 %v2046, 16
        %v2286 = vshrl.u32 %v2047, 16
        %v2287 = vshrl.u32 %v2048, 16
        %v2288 = vshrl.u32 %v2049, 16
        %v2289 = vshrl.u32 %v2050, 16
        %v2290 = vshrl.u32 %v2051, 16
        %v2291 = vshrl.u32 %v2052, 16
        %v2292 = vshrl.u32 %v2053, 16
        %v2293 = vshrl.u32 %v2054, 16
        %v2294 = vshrl.u32 %v2055, 16
        %v2295 = vshrl.u32 %v2056, 16
        %v2296 = vshrl.u32 %v2057, 16
        %v2297 = vshrl.u32 %v2058, 16
        %v2298 = vshrl.u32 %v2059, 16
        %v2299 = vshrl.u32 %v2060, 16
        %v2300 = vshrl.u32 %v2061, 16
        %v2301 = vshrl.u32 %v2062, 16
        %v2302 = vshrl.u32 %v2063, 16
        %v2303 = vshrl.u32 %v2064, 16
        %v2304 = vshrl.u32 %v2065, 16
        %v2305 = vshrl.u32 %v2066, 16
        %v2306 = vshrl.u32 %v2067, 16
        %v2307 = vshrl.u32 %v2068, 16
        %v2308 = vshrl.u32 %v2069, 16
        %v2309 = vshrl.u32 %v2070, 16
        %v2310 = vshrl.u32 %v2071, 16
        %v2311 = vshrl.u32 %v2072, 16
        %v2312 = vshrl.u32 %v2073, 16
        %v2313 = vshrl.u32 %v2074, 16
        %v2314 = vshrl.u32 %v2075, 16
        %v2315 = vshrl.u32 %v2076, 16
        %v2316 = vshrl.u32 %v2077, 16
        %v2317 = vshrl.u32 %v2078, 16
        %v2318 = vshrl.u32 %v2079, 16
        %v2319 = vshrl.u32 %v2080, 16
        %v2320 = vshrl.u32 %v2081, 16
        %v2321 = vshrl.u32 %v2082, 16
        %v2322 = vshrl.u32 %v2083, 16
        %v2323 = vshrl.u32 %v2084, 16
        %v2324 = vshrl.u32 %v2085, 16
        %v2325 = vshrl.u32 %v2086, 16
        %v2326 = vshrl.u32 %v2087, 16
        %v2327 = vshrl.u32 %v2088, 16
        %v2328 = vshrl.u32 %v2089, 16
        %v2329 = vshrl.u32 %v2090, 16
        %v2330 = vshrl.u32 %v2091, 16
        %v2331 = vshrl.u32 %v2092, 16
        %v2332 = vshrl.u32 %v2093, 16
        %v2333 = vshrl.u32 %v2094, 16
        %v2334 = vshrl.u32 %v2095, 16
        %v2335 = vshrl.u32 %v2096, 16
        %v2336 = vshrl.u32 %v2097, 16
        %v2337 = vshrl.u32 %v2098, 16
        %v2338 = vshrl.u32 %v2099, 16
        %v2339 = vshrl.u32 %v2100, 16
        %v2340 = vshrl.u32 %v2101, 16
        %v2341 = vshrl.u32 %v2102, 16
        %v2342 = vshrl.u32 %v2103, 16
        %v2343 = vshrl.u32 %v2104, 16
        %v2344 = vshrl.u32 %v2105, 16
        %v2345 = vshrl.u32 %v2106, 16
        %v2346 = vshrl.u32 %v2107, 16
        %v2347 = vshrl.u32 %v2108, 16
        %v2348 = vshrl.u32 %v2109, 16
        %v2349 = vshrl.u32 %v2110, 16
        %v2350 = vshrl.u32 %v2111, 16
        %v2351 = vshrl.u32 %v2112, 16
        %v2352 = vshrl.u32 %v2113, 16
        %v2353 = vshrl.u32 %v2114, 16
        %v2354 = vshrl.u32 %v2115, 16
        %v2355 = vshrl.u32 %v2116, 16
        %v2356 = vshrl.u32 %v2117, 16
        %v2357 = vshrl.u32 %v2118, 16
        %v2358 = vshrl.u32 %v2119, 16
        %v2359 = vshrl.u32 %v2120, 16
        %v2360 = vshrl.u32 %v2121, 16
        %v2361 = vshrl.u32 %v2122, 16
        %v2362 = vshrl.u32 %v2123, 16
        %v2363 = vshrl.u32 %v2124, 16
        %v2364 = vshrl.u32 %v2125, 16
        %v2365 = vshrl.u32 %v2126, 16
        %v2366 = vshrl.u32 %v2127, 16
        %v2367 = vshrl.u32 %v2128, 16
        %v2368 = vshrl.u32 %v2129, 16
        %v2369 = vshrl.u32 %v2130, 16
        %v2370 = vshrl.u32 %v2131, 16
        %v2371 = vshrl.u32 %v2132, 16
        %v2372 = vshrl.u32 %v2133, 16
        %v2373 = vshrl.u32 %v2134, 16
        %v2374 = vshrl.u32 %v2135, 16
        %v2375 = vshrl.u32 %v2136, 16
        %v2376 = vshrl.u32 %v2137, 16
        %v2377 = vshrl.u32 %v2138, 16
        %v2378 = vshrl.u32 %v2139, 16
        %v2379 = vshrl.u32 %v2140, 16
        %v2380 = vshrl.u32 %v2141, 16
        %v2381 = vshrl.u32 %v2142, 16
        %v2382 = vshrl.u32 %v2143, 16
        %v2383 = vshrl.u32 %v2144, 16
        %v2384 = vshrl.u32 %v2145, 16
        %v2385 = vshrl.u32 %v2146, 16
        %v2386 = vshrl.u32 %v2147, 16
        %v2387 = vshrl.u32 %v2148, 16
        %v2388 = vshrl.u32 %v2149, 16
        %v2389 = vshrl.u32 %v2150, 16
        %v2390 = vshrl.u32 %v2151, 16
        %v2391 = vshrl.u32 %v2152, 16
        %v2392 = vshrl.u32 %v2153, 16
        %v2393 = vshrl.u32 %v2154, 16
        %v2394 = vshrl.u32 %v2155, 16
        %v2395 = vshrl.u32 %v2156, 16
        %v2396 = vshrl.u32 %v2157, 16
        %v2397 = vshrl.u32 %v2158, 16
        %v2398 = vshrl.u32 %v2159, 16
        %v2399 = vshrl.u32 %v2160, 16
        %v2400 = vshrl.u32 %v2161, 16
        %v2401 = vshrl.u32 %v2162, 16
        %v2402 = vshrl.u32 %v2163, 16
        %v2403 = vshrl.u32 %v2164, 16
        %v2404 = vshrl.u32 %v2165, 16
        %v2405 = vshrl.u32 %v2166, 16
        %v2406 = vshrl.u32 %v2167, 16
        %v2407 = vshrl.u32 %v2168, 16
        %v2408 = vshrl.u32 %v2169, 16
        %v2409 = vshrl.u32 %v2170, 16
        %v2410 = vshrl.u32 %v2171, 16
        %v2411 = vshrl.u32 %v2172, 16
        %v2412 = vshrl.u32 %v2173, 16
        %v2413 = vshrl.u32 %v2174, 16
        %v2414 = vshrl.u32 %v2175, 16
        %v2415 = vshrl.u32 %v2176, 16
        %v2416 = vshrl.u32 %v2177, 16
        %v2417 = vshrl.u32 %v2178, 16
        %v2418 = vshrl.u32 %v2179, 16
        %v2419 = vshrl.u32 %v2180, 16
        %v2420 = vshrl.u32 %v2181, 16
        %v2421 = vshrl.u32 %v2182, 16
        %v2422 = vshrl.u32 %v2183, 16
        %v2423 = vshrl.u32 %v2184, 16
        %v2424 = vshrl.u32 %v2185, 16
        %v2425 = vshrl.u32 %v2186, 16
        %v2426 = vshrl.u32 %v2187, 16
        %v2427 = vshrl.u32 %v2188, 16
        %v2428 = vshrl.u32 %v2189, 16
        %v2429 = vshrl.u32 %v2190, 16
        %v2430 = vshrl.u32 %v2191, 16
        %v2431 = vshrl.u32 %v2192, 16
        %v2432 = vshrl.u32 %v2193, 16
        %v2433 = vshrl.u32 %v2194, 16
        %v2434 = vshrl.u32 %v2195, 16
        %v2435 = vshrl.u32 %v2196, 16
        %v2436 = vshrl.u32 %v2197, 16
        %v2437 = vshrl.u32 %v2198, 16
        %v2438 = vshrl.u32 %v2199, 16
        %v2439 = vshrl.u32 %v2200, 16
        %v2440 = vshrl.u32 %v2201, 16
        %v2441 = vshrl.u32 %v2202, 16
        %v2442 = vshrl.u32 %v2203, 16
        %v2443 = vshrl.u32 %v2204, 16
        %v2444 = vshrl.u32 %v2205, 16
        %v2445 = vshrl.u32 %v2206, 16
        %v2446 = vshrl.u32 %v2207, 16
        %v2447 = vshrl.u32 %v2208, 16
        %v2448 = vshrl.u32 %v2209, 16
        %v2449 = vshrl.u32 %v2210, 16
        %v2450 = vshrl.u32 %v2211, 16
        %v2451 = vshrl.u32 %v2212, 16
        %v2452 = vshrl.u32 %v2213, 16
        %v2453 = vshrl.u32 %v2214, 16
        %v2454 = vshrl.u32 %v2215, 16
        %v2455 = vshrl.u32 %v2216, 16
        %v2456 = vshrl.u32 %v2217, 16
        %v2457 = vshrl.u32 %v2218, 16
        %v2458 = vshrl.u32 %v2219, 16
        %v2459 = vshrl.u32 %v2220, 16
        %v2460 = vshrl.u32 %v2221, 16
        %v2461 = vshrl.u32 %v2222, 16
        %v2462 = vshrl.u32 %v2223, 16
        %v2463 = vshrl.u32 %v2224, 16
        %v2464 = vshrl.u32 %v2225, 16
        %v2465 = vshrl.u32 %v2226, 16
        %v2466 = vshrl.u32 %v2227, 16
        %v2467 = vshrl.u32 %v2228, 16
        %v2468 = vshrl.u32 %v2229, 16
        %v2469 = vshrl.u32 %v2230, 16
        %v2470 = vshrl.u32 %v2231, 16
        %v2471 = vshrl.u32 %v2232, 16
        %v2472 = vshrl.u32 %v2233, 16
        %v2473 = vshrl.u32 %v2234, 16
        %v2474 = vshrl.u32 %v2235, 16
        %v2475 = vshrl.u32 %v2236, 16
        %v2476 = vshrl.u32 %v2237, 16
        %v2477 = vshrl.u32 %v2238, 16
        %v2478 = vshrl.u32 %v2239, 16
        %v2479 = vshrl.u32 %v2240, 16
        %v2480 = vshrl.u32 %v2241, 16
        %v2481 = vshrl.u32 %v2242, 16
        %v2482 = vshrl.u32 %v2243, 16
        %v2483 = vshrl.u32 %v2244, 16
        %v2484 = vshrl.u32 %v2245, 16
        %v2485 = vshrl.u32 %v2246, 16
        %v2486 = vshrl.u32 %v2247, 16
        %v2487 = vshrl.u32 %v2248, 16
        %v2488 = vshrl.u32 %v2249, 16
        %v2489 = vshrl.u32 %v2250, 16
        %v2490 = vshrl.u32 %v2251, 16
        %v2491 = vshrl.u32 %v2252, 16
        %v2492 = vshrl.u32 %v2253, 16
        %v2493 = vshrl.u32 %v2254, 16
        %v2494 = vshrl.u32 %v2255, 16
        %v2495 = vshrl.u32 %v2256, 16
        %v2496 = vshrl.u32 %v2257, 16
        %v2497 = vshrl.u32 %v2258, 16
        %v2498 = vshrl.u32 %v2259, 16
        %v2499 = vshrl.u32 %v2260, 16
        %v2500 = vshrl.u32 %v2261, 16
        %v2501 = vshrl.u32 %v2262, 16
        %v2502 = vshrl.u32 %v2263, 16
        %v2503 = vshrl.u32 %v2264, 16
        %v2504 = vshrl.u32 %v2265, 16
        %v2505 = vshrl.u32 %v2266, 16
        %v2506 = vxor.u32 %v2028, %v2267
        %v2507 = vxor.u32 %v2029, %v2268
        %v2508 = vxor.u32 %v2030, %v2269
        %v2509 = vxor.u32 %v2031, %v2270
        %v2510 = vxor.u32 %v2032, %v2271
        %v2511 = vxor.u32 %v2033, %v2272
        %v2512 = vxor.u32 %v2034, %v2273
        %v2513 = vxor.u32 %v2035, %v2274
        %v2514 = vxor.u32 %v2036, %v2275
        %v2515 = vxor.u32 %v2037, %v2276
        %v2516 = vxor.u32 %v2038, %v2277
        %v2517 = vxor.u32 %v2039, %v2278
        %v2518 = vxor.u32 %v2040, %v2279
        %v2519 = vxor.u32 %v2041, %v2280
        %v2520 = vxor.u32 %v2042, %v2281
        %v2521 = vxor.u32 %v2043, %v2282
        %v2522 = vxor.u32 %v2044, %v2283
        %v2523 = vxor.u32 %v2045, %v2284
        %v2524 = vxor.u32 %v2046, %v2285
        %v2525 = vxor.u32 %v2047, %v2286
        %v2526 = vxor.u32 %v2048, %v2287
        %v2527 = vxor.u32 %v2049, %v2288
        %v2528 = vxor.u32 %v2050, %v2289
        %v2529 = vxor.u32 %v2051, %v2290
        %v2530 = vxor.u32 %v2052, %v2291
        %v2531 = vxor.u32 %v2053, %v2292
        %v2532 = vxor.u32 %v2054, %v2293
        %v2533 = vxor.u32 %v2055, %v2294
        %v2534 = vxor.u32 %v2056, %v2295
        %v2535 = vxor.u32 %v2057, %v2296
        %v2536 = vxor.u32 %v2058, %v2297
        %v2537 = vxor.u32 %v2059, %v2298
        %v2538 = vxor.u32 %v2060, %v2299
        %v2539 = vxor.u32 %v2061, %v2300
        %v2540 = vxor.u32 %v2062, %v2301
        %v2541 = vxor.u32 %v2063, %v2302
        %v2542 = vxor.u32 %v2064, %v2303
        %v2543 = vxor.u32 %v2065, %v2304
        %v2544 = vxor.u32 %v2066, %v2305
        %v2545 = vxor.u32 %v2067, %v2306
        %v2546 = vxor.u32 %v2068, %v2307
        %v2547 = vxor.u32 %v2069, %v2308
        %v2548 = vxor.u32 %v2070, %v2309
        %v2549 = vxor.u32 %v2071, %v2310
        %v2550 = vxor.u32 %v2072, %v2311
        %v2551 = vxor.u32 %v2073, %v2312
        %v2552 = vxor.u32 %v2074, %v2313
        %v2553 = vxor.u32 %v2075, %v2314
        %v2554 = vxor.u32 %v2076, %v2315
        %v2555 = vxor.u32 %v2077, %v2316
        %v2556 = vxor.u32 %v2078, %v2317
        %v2557 = vxor.u32 %v2079, %v2318
        %v2558 = vxor.u32 %v2080, %v2319
        %v2559 = vxor.u32 %v2081, %v2320
        %v2560 = vxor.u32 %v2082, %v2321
        %v2561 = vxor.u32 %v2083, %v2322
        %v2562 = vxor.u32 %v2084, %v2323
        %v2563 = vxor.u32 %v2085, %v2324
        %v2564 = vxor.u32 %v2086, %v2325
        %v2565 = vxor.u32 %v2087, %v2326
        %v2566 = vxor.u32 %v2088, %v2327
        %v2567 = vxor.u32 %v2089, %v2328
        %v2568 = vxor.u32 %v2090, %v2329
        %v2569 = vxor.u32 %v2091, %v2330
        %v2570 = vxor.u32 %v2092, %v2331
        %v2571 = vxor.u32 %v2093, %v2332
        %v2572 = vxor.u32 %v2094, %v2333
        %v2573 = vxor.u32 %v2095, %v2334
        %v2574 = vxor.u32 %v2096, %v2335
        %v2575 = vxor.u32 %v2097, %v2336
        %v2576 = vxor.u32 %v2098, %v2337
        %v2577 = vxor.u32 %v2099, %v2338
        %v2578 = vxor.u32 %v2100, %v2339
        %v2579 = vxor.u32 %v2101, %v2340
        %v2580 = vxor.u32 %v2102, %v2341
        %v2581 = vxor.u32 %v2103, %v2342
        %v2582 = vxor.u32 %v2104, %v2343
        %v2583 = vxor.u32 %v2105, %v2344
        %v2584 = vxor.u32 %v2106, %v2345
        %v2585 = vxor.u32 %v2107, %v2346
        %v2586 = vxor.u32 %v2108, %v2347
        %v2587 = vxor.u32 %v2109, %v2348
        %v2588 = vxor.u32 %v2110, %v2349
        %v2589 = vxor.u32 %v2111, %v2350
        %v2590 = vxor.u32 %v2112, %v2351
        %v2591 = vxor.u32 %v2113, %v2352
        %v2592 = vxor.u32 %v2114, %v2353
        %v2593 = vxor.u32 %v2115, %v2354
        %v2594 = vxor.u32 %v2116, %v2355
        %v2595 = vxor.u32 %v2117, %v2356
        %v2596 = vxor.u32 %v2118, %v2357
        %v2597 = vxor.u32 %v2119, %v2358
        %v2598 = vxor.u32 %v2120, %v2359
        %v2599 = vxor.u32 %v2121, %v2360
        %v2600 = vxor.u32 %v2122, %v2361
        %v2601 = vxor.u32 %v2123, %v2362
        %v2602 = vxor.u32 %v2124, %v2363
        %v2603 = vxor.u32 %v2125, %v2364
        %v2604 = vxor.u32 %v2126, %v2365
        %v2605 = vxor.u32 %v2127, %v2366
        %v2606 = vxor.u32 %v2128, %v2367
        %v2607 = vxor.u32 %v2129, %v2368
        %v2608 = vxor.u32 %v2130, %v2369
        %v2609 = vxor.u32 %v2131, %v2370
        %v2610 = vxor.u32 %v2132, %v2371
        %v2611 = vxor.u32 %v2133, %v2372
        %v2612 = vxor.u32 %v2134, %v2373
        %v2613 = vxor.u32 %v2135, %v2374
        %v2614 = vxor.u32 %v2136, %v2375
        %v2615 = vxor.u32 %v2137, %v2376
        %v2616 = vxor.u32 %v2138, %v2377
        %v2617 = vxor.u32 %v2139, %v2378
        %v2618 = vxor.u32 %v2140, %v2379
        %v2619 = vxor.u32 %v2141, %v2380
        %v2620 = vxor.u32 %v2142, %v2381
        %v2621 = vxor.u32 %v2143, %v2382
        %v2622 = vxor.u32 %v2144, %v2383
        %v2623 = vxor.u32 %v2145, %v2384
        %v2624 = vxor.u32 %v2146, %v2385
        %v2625 = vxor.u32 %v2147, %v2386
        %v2626 = vxor.u32 %v2148, %v2387
        %v2627 = vxor.u32 %v2149, %v2388
        %v2628 = vxor.u32 %v2150, %v2389
        %v2629 = vxor.u32 %v2151, %v2390
        %v2630 = vxor.u32 %v2152, %v2391
        %v2631 = vxor.u32 %v2153, %v2392
        %v2632 = vxor.u32 %v2154, %v2393
        %v2633 = vxor.u32 %v2155, %v2394
        %v2634 = vxor.u32 %v2156, %v2395
        %v2635 = vxor.u32 %v2157, %v2396
        %v2636 = vxor.u32 %v2158, %v2397
        %v2637 = vxor.u32 %v2159, %v2398
        %v2638 = vxor.u32 %v2160, %v2399
        %v2639 = vxor.u32 %v2161, %v2400
        %v2640 = vxor.u32 %v2162, %v2401
        %v2641 = vxor.u32 %v2163, %v2402
        %v2642 = vxor.u32 %v2164, %v2403
        %v2643 = vxor.u32 %v2165, %v2404
        %v2644 = vxor.u32 %v2166, %v2405
        %v2645 = vxor.u32 %v2167, %v2406
        %v2646 = vxor.u32 %v2168, %v2407
        %v2647 = vxor.u32 %v2169, %v2408
        %v2648 = vxor.u32 %v2170, %v2409
        %v2649 = vxor.u32 %v2171, %v2410
        %v2650 = vxor.u32 %v2172, %v2411
        %v2651 = vxor.u32 %v2173, %v2412
        %v2652 = vxor.u32 %v2174, %v2413
        %v2653 = vxor.u32 %v2175, %v2414
        %v2654 = vxor.u32 %v2176, %v2415
        %v2655 = vxor.u32 %v2177, %v2416
        %v2656 = vxor.u32 %v2178, %v2417
        %v2657 = vxor.u32 %v2179, %v2418
        %v2658 = vxor.u32 %v2180, %v2419
        %v2659 = vxor.u32 %v2181, %v2420
        %v2660 = vxor.u32 %v2182, %v2421
        %v2661 = vxor.u32 %v2183, %v2422
        %v2662 = vxor.u32 %v2184, %v2423
        %v2663 = vxor.u32 %v2185, %v2424
        %v2664 = vxor.u32 %v2186, %v2425
        %v2665 = vxor.u32 %v2187, %v2426
        %v2666 = vxor.u32 %v2188, %v2427
        %v2667 = vxor.u32 %v2189, %v2428
        %v2668 = vxor.u32 %v2190, %v2429
        %v2669 = vxor.u32 %v2191, %v2430
        %v2670 = vxor.u32 %v2192, %v2431
        %v2671 = vxor.u32 %v2193, %v2432
        %v2672 = vxor.u32 %v2194, %v2433
        %v2673 = vxor.u32 %v2195, %v2434
        %v2674 = vxor.u32 %v2196, %v2435
        %v2675 = vxor.u32 %v2197, %v2436
        %v2676 = vxor.u32 %v2198, %v2437
        %v2677 = vxor.u32 %v2199, %v2438
        %v2678 = vxor.u32 %v2200, %v2439
        %v2679 = vxor.u32 %v2201, %v2440
        %v2680 = vxor.u32 %v2202, %v2441
        %v2681 = vxor.u32 %v2203, %v2442
        %v2682 = vxor.u32 %v2204, %v2443
        %v2683 = vxor.u32 %v2205, %v2444
        %v2684 = vxor.u32 %v2206, %v2445
        %v2685 = vxor.u32 %v2207, %v2446
        %v2686 = vxor.u32 %v2208, %v2447
        %v2687 = vxor.u32 %v2209, %v2448
        %v2688 = vxor.u32 %v2210, %v2449
        %v2689 = vxor.u32 %v2211, %v2450
        %v2690 = vxor.u32 %v2212, %v2451
        %v2691 = vxor.u32 %v2213, %v2452
        %v2692 = vxor.u32 %v2214, %v2453
        %v2693 = vxor.u32 %v2215, %v2454
        %v2694 = vxor.u32 %v2216, %v2455
        %v2695 = vxor.u32 %v2217, %v2456
        %v2696 = vxor.u32 %v2218, %v2457
        %v2697 = vxor.u32 %v2219, %v2458
        %v2698 = vxor.u32 %v2220, %v2459
        %v2699 = vxor.u32 %v2221, %v2460
        %v2700 = vxor.u32 %v2222, %v2461
        %v2701 = vxor.u32 %v2223, %v2462
        %v2702 = vxor.u32 %v2224, %v2463
        %v2703 = vxor.u32 %v2225, %v2464
        %v2704 = vxor.u32 %v2226, %v2465
        %v2705 = vxor.u32 %v2227, %v2466
        %v2706 = vxor.u32 %v2228, %v2467
        %v2707 = vxor.u32 %v2229, %v2468
        %v2708 = vxor.u32 %v2230, %v2469
        %v2709 = vxor.u32 %v2231, %v2470
        %v2710 = vxor.u32 %v2232, %v2471
        %v2711 = vxor.u32 %v2233, %v2472
        %v2712 = vxor.u32 %v2234, %v2473
        %v2713 = vxor.u32 %v2235, %v2474
        %v2714 = vxor.u32 %v2236, %v2475
        %v2715 = vxor.u32 %v2237, %v2476
        %v2716 = vxor.u32 %v2238, %v2477
        %v2717 = vxor.u32 %v2239, %v2478
        %v2718 = vxor.u32 %v2240, %v2479
        %v2719 = vxor.u32 %v2241, %v2480
        %v2720 = vxor.u32 %v2242, %v2481
        %v2721 = vxor.u32 %v2243, %v2482
        %v2722 = vxor.u32 %v2244, %v2483
        %v2723 = vxor.u32 %v2245, %v2484
        %v2724 = vxor.u32 %v2246, %v2485
        %v2725 = vxor.u32 %v2247, %v2486
        %v2726 = vxor.u32 %v2248, %v2487
        %v2727 = vxor.u32 %v2249, %v2488
        %v2728 = vxor.u32 %v2250, %v2489
        %v2729 = vxor.u32 %v2251, %v2490
        %v2730 = vxor.u32 %v2252, %v2491
        %v2731 = vxor.u32 %v2253, %v2492
        %v2732 = vxor.u32 %v2254, %v2493
        %v2733 = vxor.u32 %v2255, %v2494
        %v2734 = vxor.u32 %v2256, %v2495
        %v2735 = vxor.u32 %v2257, %v2496
        %v2736 = vxor.u32 %v2258, %v2497
        %v2737 = vxor.u32 %v2259, %v2498
        %v2738 = vxor.u32 %v2260, %v2499
        %v2739 = vxor.u32 %v2261, %v2500
        %v2740 = vxor.u32 %v2262, %v2501
        %v2741 = vxor.u32 %v2263, %v2502
        %v2742 = vxor.u32 %v2264, %v2503
        %v2743 = vxor.u32 %v2265, %v2504
        %v2744 = vxor.u32 %v2266, %v2505
        %v2745 = vxor.u32 %v353, %v2506
        %v2746 = vxor.u32 %v353, %v2507
        %v2747 = vxor.u32 %v353, %v2508
        %v2748 = vxor.u32 %v353, %v2509
        %v2749 = vxor.u32 %v353, %v2510
        %v2750 = vxor.u32 %v353, %v2511
        %v2751 = vxor.u32 %v353, %v2512
        %v2752 = vxor.u32 %v353, %v2513
        %v2753 = vxor.u32 %v353, %v2514
        %v2754 = vxor.u32 %v353, %v2515
        %v2755 = vxor.u32 %v353, %v2516
        %v2756 = vxor.u32 %v353, %v2517
        %v2757 = vxor.u32 %v353, %v2518
        %v2758 = vxor.u32 %v353, %v2519
        %v2759 = vxor.u32 %v353, %v2520
        %v2760 = vxor.u32 %v353, %v2521
        %v2761 = vxor.u32 %v353, %v2522
        %v2762 = vxor.u32 %v353, %v2523
        %v2763 = vxor.u32 %v353, %v2524
        %v2764 = vxor.u32 %v353, %v2525
        %v2765 = vxor.u32 %v353, %v2526
        %v2766 = vxor.u32 %v353, %v2527
        %v2767 = vxor.u32 %v353, %v2528
        %v2768 = vxor.u32 %v353, %v2529
        %v2769 = vxor.u32 %v353, %v2530
        %v2770 = vxor.u32 %v353, %v2531
        %v2771 = vxor.u32 %v353, %v2532
        %v2772 = vxor.u32 %v353, %v2533
        %v2773 = vxor.u32 %v353, %v2534
        %v2774 = vxor.u32 %v353, %v2535
        %v2775 = vxor.u32 %v353, %v2536
        %v2776 = vxor.u32 %v353, %v2537
        %v2777 = vxor.u32 %v353, %v2538
        %v2778 = vxor.u32 %v353, %v2539
        %v2779 = vxor.u32 %v353, %v2540
        %v2780 = vxor.u32 %v353, %v2541
        %v2781 = vxor.u32 %v353, %v2542
        %v2782 = vxor.u32 %v353, %v2543
        %v2783 = vxor.u32 %v353, %v2544
        %v2784 = vxor.u32 %v353, %v2545
        %v2785 = vxor.u32 %v353, %v2546
        %v2786 = vxor.u32 %v353, %v2547
        %v2787 = vxor.u32 %v353, %v2548
        %v2788 = vxor.u32 %v353, %v2549
        %v2789 = vxor.u32 %v353, %v2550
        %v2790 = vxor.u32 %v353, %v2551
        %v2791 = vxor.u32 %v353, %v2552
        %v2792 = vxor.u32 %v353, %v2553
        %v2793 = vxor.u32 %v353, %v2554
        %v2794 = vxor.u32 %v353, %v2555
        %v2795 = vxor.u32 %v353, %v2556
        %v2796 = vxor.u32 %v353, %v2557
        %v2797 = vxor.u32 %v353, %v2558
        %v2798 = vxor.u32 %v353, %v2559
        %v2799 = vxor.u32 %v353, %v2560
        %v2800 = vxor.u32 %v353, %v2561
        %v2801 = vxor.u32 %v353, %v2562
        %v2802 = vxor.u32 %v353, %v2563
        %v2803 = vxor.u32 %v353, %v2564
        %v2804 = vxor.u32 %v353, %v2565
        %v2805 = vxor.u32 %v353, %v2566
        %v2806 = vxor.u32 %v353, %v2567
        %v2807 = vxor.u32 %v353, %v2568
        %v2808 = vxor.u32 %v353, %v2569
        %v2809 = vxor.u32 %v353, %v2570
        %v2810 = vxor.u32 %v353, %v2571
        %v2811 = vxor.u32 %v353, %v2572
        %v2812 = vxor.u32 %v353, %v2573
        %v2813 = vxor.u32 %v353, %v2574
        %v2814 = vxor.u32 %v353, %v2575
        %v2815 = vxor.u32 %v353, %v2576
        %v2816 = vxor.u32 %v353, %v2577
        %v2817 = vxor.u32 %v353, %v2578
        %v2818 = vxor.u32 %v353, %v2579
        %v2819 = vxor.u32 %v353, %v2580
        %v2820 = vxor.u32 %v353, %v2581
        %v2821 = vxor.u32 %v353, %v2582
        %v2822 = vxor.u32 %v353, %v2583
        %v2823 = vxor.u32 %v353, %v2584
        %v2824 = vxor.u32 %v353, %v2585
        %v2825 = vxor.u32 %v353, %v2586
        %v2826 = vxor.u32 %v353, %v2587
        %v2827 = vxor.u32 %v353, %v2588
        %v2828 = vxor.u32 %v353, %v2589
        %v2829 = vxor.u32 %v353, %v2590
        %v2830 = vxor.u32 %v353, %v2591
        %v2831 = vxor.u32 %v353, %v2592
        %v2832 = vxor.u32 %v353, %v2593
        %v2833 = vxor.u32 %v353, %v2594
        %v2834 = vxor.u32 %v353, %v2595
        %v2835 = vxor.u32 %v353, %v2596
        %v2836 = vxor.u32 %v353, %v2597
        %v2837 = vxor.u32 %v353, %v2598
        %v2838 = vxor.u32 %v353, %v2599
        %v2839 = vxor.u32 %v353, %v2600
        %v2840 = vxor.u32 %v353, %v2601
        %v2841 = vxor.u32 %v353, %v2602
        %v2842 = vxor.u32 %v353, %v2603
        %v2843 = vxor.u32 %v353, %v2604
        %v2844 = vxor.u32 %v353, %v2605
        %v2845 = vxor.u32 %v353, %v2606
        %v2846 = vxor.u32 %v353, %v2607
        %v2847 = vxor.u32 %v353, %v2608
        %v2848 = vxor.u32 %v353, %v2609
        %v2849 = vxor.u32 %v353, %v2610
        %v2850 = vxor.u32 %v353, %v2611
        %v2851 = vxor.u32 %v353, %v2612
        %v2852 = vxor.u32 %v353, %v2613
        %v2853 = vxor.u32 %v353, %v2614
        %v2854 = vxor.u32 %v353, %v2615
        %v2855 = vxor.u32 %v353, %v2616
        %v2856 = vxor.u32 %v353, %v2617
        %v2857 = vxor.u32 %v353, %v2618
        %v2858 = vxor.u32 %v353, %v2619
        %v2859 = vxor.u32 %v353, %v2620
        %v2860 = vxor.u32 %v353, %v2621
        %v2861 = vxor.u32 %v353, %v2622
        %v2862 = vxor.u32 %v353, %v2623
        %v2863 = vxor.u32 %v353, %v2624
        %v2864 = vxor.u32 %v353, %v2625
        %v2865 = vxor.u32 %v353, %v2626
        %v2866 = vxor.u32 %v353, %v2627
        %v2867 = vxor.u32 %v353, %v2628
        %v2868 = vxor.u32 %v353, %v2629
        %v2869 = vxor.u32 %v353, %v2630
        %v2870 = vxor.u32 %v353, %v2631
        %v2871 = vxor.u32 %v353, %v2632
        %v2872 = vxor.u32 %v353, %v2633
        %v2873 = vxor.u32 %v353, %v2634
        %v2874 = vxor.u32 %v353, %v2635
        %v2875 = vxor.u32 %v353, %v2636
        %v2876 = vxor.u32 %v353, %v2637
        %v2877 = vxor.u32 %v353, %v2638
        %v2878 = vxor.u32 %v353, %v2639
        %v2879 = vxor.u32 %v353, %v2640
        %v2880 = vxor.u32 %v353, %v2641
        %v2881 = vxor.u32 %v353, %v2642
        %v2882 = vxor.u32 %v353, %v2643
        %v2883 = vxor.u32 %v353, %v2644
        %v2884 = vxor.u32 %v353, %v2645
        %v2885 = vxor.u32 %v353, %v2646
        %v2886 = vxor.u32 %v353, %v2647
        %v2887 = vxor.u32 %v353, %v2648
        %v2888 = vxor.u32 %v353, %v2649
        %v2889 = vxor.u32 %v353, %v2650
        %v2890 = vxor.u32 %v353, %v2651
        %v2891 = vxor.u32 %v353, %v2652
        %v2892 = vxor.u32 %v353, %v2653
        %v2893 = vxor.u32 %v353, %v2654
        %v2894 = vxor.u32 %v353, %v2655
        %v2895 = vxor.u32 %v353, %v2656
        %v2896 = vxor.u32 %v353, %v2657
        %v2897 = vxor.u32 %v353, %v2658
        %v2898 = vxor.u32 %v353, %v2659
        %v2899 = vxor.u32 %v353, %v2660
        %v2900 = vxor.u32 %v353, %v2661
        %v2901 = vxor.u32 %v353, %v2662
        %v2902 = vxor.u32 %v353, %v2663
        %v2903 = vxor.u32 %v353, %v2664
        %v2904 = vxor.u32 %v353, %v2665
        %v2905 = vxor.u32 %v353, %v2666
        %v2906 = vxor.u32 %v353, %v2667
        %v2907 = vxor.u32 %v353, %v2668
        %v2908 = vxor.u32 %v353, %v2669
        %v2909 = vxor.u32 %v353, %v2670
        %v2910 = vxor.u32 %v353, %v2671
        %v2911 = vxor.u32 %v353, %v2672
        %v2912 = vxor.u32 %v353, %v2673
        %v2913 = vxor.u32 %v353, %v2674
        %v2914 = vxor.u32 %v353, %v2675
        %v2915 = vxor.u32 %v353, %v2676
        %v2916 = vxor.u32 %v353, %v2677
        %v2917 = vxor.u32 %v353, %v2678
        %v2918 = vxor.u32 %v353, %v2679
        %v2919 = vxor.u32 %v353, %v2680
        %v2920 = vxor.u32 %v353, %v2681
        %v2921 = vxor.u32 %v353, %v2682
        %v2922 = vxor.u32 %v353, %v2683
        %v2923 = vxor.u32 %v353, %v2684
        %v2924 = vxor.u32 %v353, %v2685
        %v2925 = vxor.u32 %v353, %v2686
        %v2926 = vxor.u32 %v353, %v2687
        %v2927 = vxor.u32 %v353, %v2688
        %v2928 = vxor.u32 %v353, %v2689
        %v2929 = vxor.u32 %v353, %v2690
        %v2930 = vxor.u32 %v353, %v2691
        %v2931 = vxor.u32 %v353, %v2692
        %v2932 = vxor.u32 %v353, %v2693
        %v2933 = vxor.u32 %v353, %v2694
        %v2934 = vxor.u32 %v353, %v2695
        %v2935 = vxor.u32 %v353, %v2696
        %v2936 = vxor.u32 %v353, %v2697
        %v2937 = vxor.u32 %v353, %v2698
        %v2938 = vxor.u32 %v353, %v2699
        %v2939 = vxor.u32 %v353, %v2700
        %v2940 = vxor.u32 %v353, %v2701
        %v2941 = vxor.u32 %v353, %v2702
        %v2942 = vxor.u32 %v353, %v2703
        %v2943 = vxor.u32 %v353, %v2704
        %v2944 = vxor.u32 %v353, %v2705
        %v2945 = vxor.u32 %v353, %v2706
        %v2946 = vxor.u32 %v353, %v2707
        %v2947 = vxor.u32 %v353, %v2708
        %v2948 = vxor.u32 %v353, %v2709
        %v2949 = vxor.u32 %v353, %v2710
        %v2950 = vxor.u32 %v353, %v2711
        %v2951 = vxor.u32 %v353, %v2712
        %v2952 = vxor.u32 %v353, %v2713
        %v2953 = vxor.u32 %v353, %v2714
        %v2954 = vxor.u32 %v353, %v2715
        %v2955 = vxor.u32 %v353, %v2716
        %v2956 = vxor.u32 %v353, %v2717
        %v2957 = vxor.u32 %v353, %v2718
        %v2958 = vxor.u32 %v353, %v2719
        %v2959 = vxor.u32 %v353, %v2720
        %v2960 = vxor.u32 %v353, %v2721
        %v2961 = vxor.u32 %v353, %v2722
        %v2962 = vxor.u32 %v353, %v2723
        %v2963 = vxor.u32 %v353, %v2724
        %v2964 = vxor.u32 %v353, %v2725
        %v2965 = vxor.u32 %v353, %v2726
        %v2966 = vxor.u32 %v353, %v2727
        %v2967 = vxor.u32 %v353, %v2728
        %v2968 = vxor.u32 %v353, %v2729
        %v2969 = vxor.u32 %v353, %v2730
        %v2970 = vxor.u32 %v353, %v2731
        %v2971 = vxor.u32 %v353, %v2732
        %v2972 = vxor.u32 %v353, %v2733
        %v2973 = vxor.u32 %v353, %v2734
        %v2974 = vxor.u32 %v353, %v2735
        %v2975 = vxor.u32 %v353, %v2736
        %v2976 = vxor.u32 %v353, %v2737
        %v2977 = vxor.u32 %v353, %v2738
        %v2978 = vxor.u32 %v353, %v2739
        %v2979 = vxor.u32 %v353, %v2740
        %v2980 = vxor.u32 %v353, %v2741
        %v2981 = vxor.u32 %v353, %v2742
        %v2982 = vxor.u32 %v353, %v2743
        %v2983 = vxor.u32 %v353, %v2744
        %v2984 = vmul.u32 %v2745, 2146121005
        %v2985 = vmul.u32 %v2746, 2146121005
        %v2986 = vmul.u32 %v2747, 2146121005
        %v2987 = vmul.u32 %v2748, 2146121005
        %v2988 = vmul.u32 %v2749, 2146121005
        %v2989 = vmul.u32 %v2750, 2146121005
        %v2990 = vmul.u32 %v2751, 2146121005
        %v2991 = vmul.u32 %v2752, 2146121005
        %v2992 = vmul.u32 %v2753, 2146121005
        %v2993 = vmul.u32 %v2754, 2146121005
        %v2994 = vmul.u32 %v2755, 2146121005
        %v2995 = vmul.u32 %v2756, 2146121005
        %v2996 = vmul.u32 %v2757, 2146121005
        %v2997 = vmul.u32 %v2758, 2146121005
        %v2998 = vmul.u32 %v2759, 2146121005
        %v2999 = vmul.u32 %v2760, 2146121005
        %v3000 = vmul.u32 %v2761, 2146121005
        %v3001 = vmul.u32 %v2762, 2146121005
        %v3002 = vmul.u32 %v2763, 2146121005
        %v3003 = vmul.u32 %v2764, 2146121005
        %v3004 = vmul.u32 %v2765, 2146121005
        %v3005 = vmul.u32 %v2766, 2146121005
        %v3006 = vmul.u32 %v2767, 2146121005
        %v3007 = vmul.u32 %v2768, 2146121005
        %v3008 = vmul.u32 %v2769, 2146121005
        %v3009 = vmul.u32 %v2770, 2146121005
        %v3010 = vmul.u32 %v2771, 2146121005
        %v3011 = vmul.u32 %v2772, 2146121005
        %v3012 = vmul.u32 %v2773, 2146121005
        %v3013 = vmul.u32 %v2774, 2146121005
        %v3014 = vmul.u32 %v2775, 2146121005
        %v3015 = vmul.u32 %v2776, 2146121005
        %v3016 = vmul.u32 %v2777, 2146121005
        %v3017 = vmul.u32 %v2778, 2146121005
        %v3018 = vmul.u32 %v2779, 2146121005
        %v3019 = vmul.u32 %v2780, 2146121005
        %v3020 = vmul.u32 %v2781, 2146121005
        %v3021 = vmul.u32 %v2782, 2146121005
        %v3022 = vmul.u32 %v2783, 2146121005
        %v3023 = vmul.u32 %v2784, 2146121005
        %v3024 = vmul.u32 %v2785, 2146121005
        %v3025 = vmul.u32 %v2786, 2146121005
        %v3026 = vmul.u32 %v2787, 2146121005
        %v3027 = vmul.u32 %v2788, 2146121005
        %v3028 = vmul.u32 %v2789, 2146121005
        %v3029 = vmul.u32 %v2790, 2146121005
        %v3030 = vmul.u32 %v2791, 2146121005
        %v3031 = vmul.u32 %v2792, 2146121005
        %v3032 = vmul.u32 %v2793, 2146121005
        %v3033 = vmul.u32 %v2794, 2146121005
        %v3034 = vmul.u32 %v2795, 2146121005
        %v3035 = vmul.u32 %v2796, 2146121005
        %v3036 = vmul.u32 %v2797, 2146121005
        %v3037 = vmul.u32 %v2798, 2146121005
        %v3038 = vmul.u32 %v2799, 2146121005
        %v3039 = vmul.u32 %v2800, 2146121005
        %v3040 = vmul.u32 %v2801, 2146121005
        %v3041 = vmul.u32 %v2802, 2146121005
        %v3042 = vmul.u32 %v2803, 2146121005
        %v3043 = vmul.u32 %v2804, 2146121005
        %v3044 = vmul.u32 %v2805, 2146121005
        %v3045 = vmul.u32 %v2806, 2146121005
        %v3046 = vmul.u32 %v2807, 2146121005
        %v3047 = vmul.u32 %v2808, 2146121005
        %v3048 = vmul.u32 %v2809, 2146121005
        %v3049 = vmul.u32 %v2810, 2146121005
        %v3050 = vmul.u32 %v2811, 2146121005
        %v3051 = vmul.u32 %v2812, 2146121005
        %v3052 = vmul.u32 %v2813, 2146121005
        %v3053 = vmul.u32 %v2814, 2146121005
        %v3054 = vmul.u32 %v2815, 2146121005
        %v3055 = vmul.u32 %v2816, 2146121005
        %v3056 = vmul.u32 %v2817, 2146121005
        %v3057 = vmul.u32 %v2818, 2146121005
        %v3058 = vmul.u32 %v2819, 2146121005
        %v3059 = vmul.u32 %v2820, 2146121005
        %v3060 = vmul.u32 %v2821, 2146121005
        %v3061 = vmul.u32 %v2822, 2146121005
        %v3062 = vmul.u32 %v2823, 2146121005
        %v3063 = vmul.u32 %v2824, 2146121005
        %v3064 = vmul.u32 %v2825, 2146121005
        %v3065 = vmul.u32 %v2826, 2146121005
        %v3066 = vmul.u32 %v2827, 2146121005
        %v3067 = vmul.u32 %v2828, 2146121005
        %v3068 = vmul.u32 %v2829, 2146121005
        %v3069 = vmul.u32 %v2830, 2146121005
        %v3070 = vmul.u32 %v2831, 2146121005
        %v3071 = vmul.u32 %v2832, 2146121005
        %v3072 = vmul.u32 %v2833, 2146121005
        %v3073 = vmul.u32 %v2834, 2146121005
        %v3074 = vmul.u32 %v2835, 2146121005
        %v3075 = vmul.u32 %v2836, 2146121005
        %v3076 = vmul.u32 %v2837, 2146121005
        %v3077 = vmul.u32 %v2838, 2146121005
        %v3078 = vmul.u32 %v2839, 2146121005
        %v3079 = vmul.u32 %v2840, 2146121005
        %v3080 = vmul.u32 %v2841, 2146121005
        %v3081 = vmul.u32 %v2842, 2146121005
        %v3082 = vmul.u32 %v2843, 2146121005
        %v3083 = vmul.u32 %v2844, 2146121005
        %v3084 = vmul.u32 %v2845, 2146121005
        %v3085 = vmul.u32 %v2846, 2146121005
        %v3086 = vmul.u32 %v2847, 2146121005
        %v3087 = vmul.u32 %v2848, 2146121005
        %v3088 = vmul.u32 %v2849, 2146121005
        %v3089 = vmul.u32 %v2850, 2146121005
        %v3090 = vmul.u32 %v2851, 2146121005
        %v3091 = vmul.u32 %v2852, 2146121005
        %v3092 = vmul.u32 %v2853, 2146121005
        %v3093 = vmul.u32 %v2854, 2146121005
        %v3094 = vmul.u32 %v2855, 2146121005
        %v3095 = vmul.u32 %v2856, 2146121005
        %v3096 = vmul.u32 %v2857, 2146121005
        %v3097 = vmul.u32 %v2858, 2146121005
        %v3098 = vmul.u32 %v2859, 2146121005
        %v3099 = vmul.u32 %v2860, 2146121005
        %v3100 = vmul.u32 %v2861, 2146121005
        %v3101 = vmul.u32 %v2862, 2146121005
        %v3102 = vmul.u32 %v2863, 2146121005
        %v3103 = vmul.u32 %v2864, 2146121005
        %v3104 = vmul.u32 %v2865, 2146121005
        %v3105 = vmul.u32 %v2866, 2146121005
        %v3106 = vmul.u32 %v2867, 2146121005
        %v3107 = vmul.u32 %v2868, 2146121005
        %v3108 = vmul.u32 %v2869, 2146121005
        %v3109 = vmul.u32 %v2870, 2146121005
        %v3110 = vmul.u32 %v2871, 2146121005
        %v3111 = vmul.u32 %v2872, 2146121005
        %v3112 = vmul.u32 %v2873, 2146121005
        %v3113 = vmul.u32 %v2874, 2146121005
        %v3114 = vmul.u32 %v2875, 2146121005
        %v3115 = vmul.u32 %v2876, 2146121005
        %v3116 = vmul.u32 %v2877, 2146121005
        %v3117 = vmul.u32 %v2878, 2146121005
        %v3118 = vmul.u32 %v2879, 2146121005
        %v3119 = vmul.u32 %v2880, 2146121005
        %v3120 = vmul.u32 %v2881, 2146121005
        %v3121 = vmul.u32 %v2882, 2146121005
        %v3122 = vmul.u32 %v2883, 2146121005
        %v3123 = vmul.u32 %v2884, 2146121005
        %v3124 = vmul.u32 %v2885, 2146121005
        %v3125 = vmul.u32 %v2886, 2146121005
        %v3126 = vmul.u32 %v2887, 2146121005
        %v3127 = vmul.u32 %v2888, 2146121005
        %v3128 = vmul.u32 %v2889, 2146121005
        %v3129 = vmul.u32 %v2890, 2146121005
        %v3130 = vmul.u32 %v2891, 2146121005
        %v3131 = vmul.u32 %v2892, 2146121005
        %v3132 = vmul.u32 %v2893, 2146121005
        %v3133 = vmul.u32 %v2894, 2146121005
        %v3134 = vmul.u32 %v2895, 2146121005
        %v3135 = vmul.u32 %v2896, 2146121005
        %v3136 = vmul.u32 %v2897, 2146121005
        %v3137 = vmul.u32 %v2898, 2146121005
        %v3138 = vmul.u32 %v2899, 2146121005
        %v3139 = vmul.u32 %v2900, 2146121005
        %v3140 = vmul.u32 %v2901, 2146121005
        %v3141 = vmul.u32 %v2902, 2146121005
        %v3142 = vmul.u32 %v2903, 2146121005
        %v3143 = vmul.u32 %v2904, 2146121005
        %v3144 = vmul.u32 %v2905, 2146121005
        %v3145 = vmul.u32 %v2906, 2146121005
        %v3146 = vmul.u32 %v2907, 2146121005
        %v3147 = vmul.u32 %v2908, 2146121005
        %v3148 = vmul.u32 %v2909, 2146121005
        %v3149 = vmul.u32 %v2910, 2146121005
        %v3150 = vmul.u32 %v2911, 2146121005
        %v3151 = vmul.u32 %v2912, 2146121005
        %v3152 = vmul.u32 %v2913, 2146121005
        %v3153 = vmul.u32 %v2914, 2146121005
        %v3154 = vmul.u32 %v2915, 2146121005
        %v3155 = vmul.u32 %v2916, 2146121005
        %v3156 = vmul.u32 %v2917, 2146121005
        %v3157 = vmul.u32 %v2918, 2146121005
        %v3158 = vmul.u32 %v2919, 2146121005
        %v3159 = vmul.u32 %v2920, 2146121005
        %v3160 = vmul.u32 %v2921, 2146121005
        %v3161 = vmul.u32 %v2922, 2146121005
        %v3162 = vmul.u32 %v2923, 2146121005
        %v3163 = vmul.u32 %v2924, 2146121005
        %v3164 = vmul.u32 %v2925, 2146121005
        %v3165 = vmul.u32 %v2926, 2146121005
        %v3166 = vmul.u32 %v2927, 2146121005
        %v3167 = vmul.u32 %v2928, 2146121005
        %v3168 = vmul.u32 %v2929, 2146121005
        %v3169 = vmul.u32 %v2930, 2146121005
        %v3170 = vmul.u32 %v2931, 2146121005
        %v3171 = vmul.u32 %v2932, 2146121005
        %v3172 = vmul.u32 %v2933, 2146121005
        %v3173 = vmul.u32 %v2934, 2146121005
        %v3174 = vmul.u32 %v2935, 2146121005
        %v3175 = vmul.u32 %v2936, 2146121005
        %v3176 = vmul.u32 %v2937, 2146121005
        %v3177 = vmul.u32 %v2938, 2146121005
        %v3178 = vmul.u32 %v2939, 2146121005
        %v3179 = vmul.u32 %v2940, 2146121005
        %v3180 = vmul.u32 %v2941, 2146121005
        %v3181 = vmul.u32 %v2942, 2146121005
        %v3182 = vmul.u32 %v2943, 2146121005
        %v3183 = vmul.u32 %v2944, 2146121005
        %v3184 = vmul.u32 %v2945, 2146121005
        %v3185 = vmul.u32 %v2946, 2146121005
        %v3186 = vmul.u32 %v2947, 2146121005
        %v3187 = vmul.u32 %v2948, 2146121005
        %v3188 = vmul.u32 %v2949, 2146121005
        %v3189 = vmul.u32 %v2950, 2146121005
        %v3190 = vmul.u32 %v2951, 2146121005
        %v3191 = vmul.u32 %v2952, 2146121005
        %v3192 = vmul.u32 %v2953, 2146121005
        %v3193 = vmul.u32 %v2954, 2146121005
        %v3194 = vmul.u32 %v2955, 2146121005
        %v3195 = vmul.u32 %v2956, 2146121005
        %v3196 = vmul.u32 %v2957, 2146121005
        %v3197 = vmul.u32 %v2958, 2146121005
        %v3198 = vmul.u32 %v2959, 2146121005
        %v3199 = vmul.u32 %v2960, 2146121005
        %v3200 = vmul.u32 %v2961, 2146121005
        %v3201 = vmul.u32 %v2962, 2146121005
        %v3202 = vmul.u32 %v2963, 2146121005
        %v3203 = vmul.u32 %v2964, 2146121005
        %v3204 = vmul.u32 %v2965, 2146121005
        %v3205 = vmul.u32 %v2966, 2146121005
        %v3206 = vmul.u32 %v2967, 2146121005
        %v3207 = vmul.u32 %v2968, 2146121005
        %v3208 = vmul.u32 %v2969, 2146121005
        %v3209 = vmul.u32 %v2970, 2146121005
        %v3210 = vmul.u32 %v2971, 2146121005
        %v3211 = vmul.u32 %v2972, 2146121005
        %v3212 = vmul.u32 %v2973, 2146121005
        %v3213 = vmul.u32 %v2974, 2146121005
        %v3214 = vmul.u32 %v2975, 2146121005
        %v3215 = vmul.u32 %v2976, 2146121005
        %v3216 = vmul.u32 %v2977, 2146121005
        %v3217 = vmul.u32 %v2978, 2146121005
        %v3218 = vmul.u32 %v2979, 2146121005
        %v3219 = vmul.u32 %v2980, 2146121005
        %v3220 = vmul.u32 %v2981, 2146121005
        %v3221 = vmul.u32 %v2982, 2146121005
        %v3222 = vmul.u32 %v2983, 2146121005
        %v3223 = vshrl.u32 %v2984, 15
        %v3224 = vshrl.u32 %v2985, 15
        %v3225 = vshrl.u32 %v2986, 15
        %v3226 = vshrl.u32 %v2987, 15
        %v3227 = vshrl.u32 %v2988, 15
        %v3228 = vshrl.u32 %v2989, 15
        %v3229 = vshrl.u32 %v2990, 15
        %v3230 = vshrl.u32 %v2991, 15
        %v3231 = vshrl.u32 %v2992, 15
        %v3232 = vshrl.u32 %v2993, 15
        %v3233 = vshrl.u32 %v2994, 15
        %v3234 = vshrl.u32 %v2995, 15
        %v3235 = vshrl.u32 %v2996, 15
        %v3236 = vshrl.u32 %v2997, 15
        %v3237 = vshrl.u32 %v2998, 15
        %v3238 = vshrl.u32 %v2999, 15
        %v3239 = vshrl.u32 %v3000, 15
        %v3240 = vshrl.u32 %v3001, 15
        %v3241 = vshrl.u32 %v3002, 15
        %v3242 = vshrl.u32 %v3003, 15
        %v3243 = vshrl.u32 %v3004, 15
        %v3244 = vshrl.u32 %v3005, 15
        %v3245 = vshrl.u32 %v3006, 15
        %v3246 = vshrl.u32 %v3007, 15
        %v3247 = vshrl.u32 %v3008, 15
        %v3248 = vshrl.u32 %v3009, 15
        %v3249 = vshrl.u32 %v3010, 15
        %v3250 = vshrl.u32 %v3011, 15
        %v3251 = vshrl.u32 %v3012, 15
        %v3252 = vshrl.u32 %v3013, 15
        %v3253 = vshrl.u32 %v3014, 15
        %v3254 = vshrl.u32 %v3015, 15
        %v3255 = vshrl.u32 %v3016, 15
        %v3256 = vshrl.u32 %v3017, 15
        %v3257 = vshrl.u32 %v3018, 15
        %v3258 = vshrl.u32 %v3019, 15
        %v3259 = vshrl.u32 %v3020, 15
        %v3260 = vshrl.u32 %v3021, 15
        %v3261 = vshrl.u32 %v3022, 15
        %v3262 = vshrl.u32 %v3023, 15
        %v3263 = vshrl.u32 %v3024, 15
        %v3264 = vshrl.u32 %v3025, 15
        %v3265 = vshrl.u32 %v3026, 15
        %v3266 = vshrl.u32 %v3027, 15
        %v3267 = vshrl.u32 %v3028, 15
        %v3268 = vshrl.u32 %v3029, 15
        %v3269 = vshrl.u32 %v3030, 15
        %v3270 = vshrl.u32 %v3031, 15
        %v3271 = vshrl.u32 %v3032, 15
        %v3272 = vshrl.u32 %v3033, 15
        %v3273 = vshrl.u32 %v3034, 15
        %v3274 = vshrl.u32 %v3035, 15
        %v3275 = vshrl.u32 %v3036, 15
        %v3276 = vshrl.u32 %v3037, 15
        %v3277 = vshrl.u32 %v3038, 15
        %v3278 = vshrl.u32 %v3039, 15
        %v3279 = vshrl.u32 %v3040, 15
        %v3280 = vshrl.u32 %v3041, 15
        %v3281 = vshrl.u32 %v3042, 15
        %v3282 = vshrl.u32 %v3043, 15
        %v3283 = vshrl.u32 %v3044, 15
        %v3284 = vshrl.u32 %v3045, 15
        %v3285 = vshrl.u32 %v3046, 15
        %v3286 = vshrl.u32 %v3047, 15
        %v3287 = vshrl.u32 %v3048, 15
        %v3288 = vshrl.u32 %v3049, 15
        %v3289 = vshrl.u32 %v3050, 15
        %v3290 = vshrl.u32 %v3051, 15
        %v3291 = vshrl.u32 %v3052, 15
        %v3292 = vshrl.u32 %v3053, 15
        %v3293 = vshrl.u32 %v3054, 15
        %v3294 = vshrl.u32 %v3055, 15
        %v3295 = vshrl.u32 %v3056, 15
        %v3296 = vshrl.u32 %v3057, 15
        %v3297 = vshrl.u32 %v3058, 15
        %v3298 = vshrl.u32 %v3059, 15
        %v3299 = vshrl.u32 %v3060, 15
        %v3300 = vshrl.u32 %v3061, 15
        %v3301 = vshrl.u32 %v3062, 15
        %v3302 = vshrl.u32 %v3063, 15
        %v3303 = vshrl.u32 %v3064, 15
        %v3304 = vshrl.u32 %v3065, 15
        %v3305 = vshrl.u32 %v3066, 15
        %v3306 = vshrl.u32 %v3067, 15
        %v3307 = vshrl.u32 %v3068, 15
        %v3308 = vshrl.u32 %v3069, 15
        %v3309 = vshrl.u32 %v3070, 15
        %v3310 = vshrl.u32 %v3071, 15
        %v3311 = vshrl.u32 %v3072, 15
        %v3312 = vshrl.u32 %v3073, 15
        %v3313 = vshrl.u32 %v3074, 15
        %v3314 = vshrl.u32 %v3075, 15
        %v3315 = vshrl.u32 %v3076, 15
        %v3316 = vshrl.u32 %v3077, 15
        %v3317 = vshrl.u32 %v3078, 15
        %v3318 = vshrl.u32 %v3079, 15
        %v3319 = vshrl.u32 %v3080, 15
        %v3320 = vshrl.u32 %v3081, 15
        %v3321 = vshrl.u32 %v3082, 15
        %v3322 = vshrl.u32 %v3083, 15
        %v3323 = vshrl.u32 %v3084, 15
        %v3324 = vshrl.u32 %v3085, 15
        %v3325 = vshrl.u32 %v3086, 15
        %v3326 = vshrl.u32 %v3087, 15
        %v3327 = vshrl.u32 %v3088, 15
        %v3328 = vshrl.u32 %v3089, 15
        %v3329 = vshrl.u32 %v3090, 15
        %v3330 = vshrl.u32 %v3091, 15
        %v3331 = vshrl.u32 %v3092, 15
        %v3332 = vshrl.u32 %v3093, 15
        %v3333 = vshrl.u32 %v3094, 15
        %v3334 = vshrl.u32 %v3095, 15
        %v3335 = vshrl.u32 %v3096, 15
        %v3336 = vshrl.u32 %v3097, 15
        %v3337 = vshrl.u32 %v3098, 15
        %v3338 = vshrl.u32 %v3099, 15
        %v3339 = vshrl.u32 %v3100, 15
        %v3340 = vshrl.u32 %v3101, 15
        %v3341 = vshrl.u32 %v3102, 15
        %v3342 = vshrl.u32 %v3103, 15
        %v3343 = vshrl.u32 %v3104, 15
        %v3344 = vshrl.u32 %v3105, 15
        %v3345 = vshrl.u32 %v3106, 15
        %v3346 = vshrl.u32 %v3107, 15
        %v3347 = vshrl.u32 %v3108, 15
        %v3348 = vshrl.u32 %v3109, 15
        %v3349 = vshrl.u32 %v3110, 15
        %v3350 = vshrl.u32 %v3111, 15
        %v3351 = vshrl.u32 %v3112, 15
        %v3352 = vshrl.u32 %v3113, 15
        %v3353 = vshrl.u32 %v3114, 15
        %v3354 = vshrl.u32 %v3115, 15
        %v3355 = vshrl.u32 %v3116, 15
        %v3356 = vshrl.u32 %v3117, 15
        %v3357 = vshrl.u32 %v3118, 15
        %v3358 = vshrl.u32 %v3119, 15
        %v3359 = vshrl.u32 %v3120, 15
        %v3360 = vshrl.u32 %v3121, 15
        %v3361 = vshrl.u32 %v3122, 15
        %v3362 = vshrl.u32 %v3123, 15
        %v3363 = vshrl.u32 %v3124, 15
        %v3364 = vshrl.u32 %v3125, 15
        %v3365 = vshrl.u32 %v3126, 15
        %v3366 = vshrl.u32 %v3127, 15
        %v3367 = vshrl.u32 %v3128, 15
        %v3368 = vshrl.u32 %v3129, 15
        %v3369 = vshrl.u32 %v3130, 15
        %v3370 = vshrl.u32 %v3131, 15
        %v3371 = vshrl.u32 %v3132, 15
        %v3372 = vshrl.u32 %v3133, 15
        %v3373 = vshrl.u32 %v3134, 15
        %v3374 = vshrl.u32 %v3135, 15
        %v3375 = vshrl.u32 %v3136, 15
        %v3376 = vshrl.u32 %v3137, 15
        %v3377 = vshrl.u32 %v3138, 15
        %v3378 = vshrl.u32 %v3139, 15
        %v3379 = vshrl.u32 %v3140, 15
        %v3380 = vshrl.u32 %v3141, 15
        %v3381 = vshrl.u32 %v3142, 15
        %v3382 = vshrl.u32 %v3143, 15
        %v3383 = vshrl.u32 %v3144, 15
        %v3384 = vshrl.u32 %v3145, 15
        %v3385 = vshrl.u32 %v3146, 15
        %v3386 = vshrl.u32 %v3147, 15
        %v3387 = vshrl.u32 %v3148, 15
        %v3388 = vshrl.u32 %v3149, 15
        %v3389 = vshrl.u32 %v3150, 15
        %v3390 = vshrl.u32 %v3151, 15
        %v3391 = vshrl.u32 %v3152, 15
        %v3392 = vshrl.u32 %v3153, 15
        %v3393 = vshrl.u32 %v3154, 15
        %v3394 = vshrl.u32 %v3155, 15
        %v3395 = vshrl.u32 %v3156, 15
        %v3396 = vshrl.u32 %v3157, 15
        %v3397 = vshrl.u32 %v3158, 15
        %v3398 = vshrl.u32 %v3159, 15
        %v3399 = vshrl.u32 %v3160, 15
        %v3400 = vshrl.u32 %v3161, 15
        %v3401 = vshrl.u32 %v3162, 15
        %v3402 = vshrl.u32 %v3163, 15
        %v3403 = vshrl.u32 %v3164, 15
        %v3404 = vshrl.u32 %v3165, 15
        %v3405 = vshrl.u32 %v3166, 15
        %v3406 = vshrl.u32 %v3167, 15
        %v3407 = vshrl.u32 %v3168, 15
        %v3408 = vshrl.u32 %v3169, 15
        %v3409 = vshrl.u32 %v3170, 15
        %v3410 = vshrl.u32 %v3171, 15
        %v3411 = vshrl.u32 %v3172, 15
        %v3412 = vshrl.u32 %v3173, 15
        %v3413 = vshrl.u32 %v3174, 15
        %v3414 = vshrl.u32 %v3175, 15
        %v3415 = vshrl.u32 %v3176, 15
        %v3416 = vshrl.u32 %v3177, 15
        %v3417 = vshrl.u32 %v3178, 15
        %v3418 = vshrl.u32 %v3179, 15
        %v3419 = vshrl.u32 %v3180, 15
        %v3420 = vshrl.u32 %v3181, 15
        %v3421 = vshrl.u32 %v3182, 15
        %v3422 = vshrl.u32 %v3183, 15
        %v3423 = vshrl.u32 %v3184, 15
        %v3424 = vshrl.u32 %v3185, 15
        %v3425 = vshrl.u32 %v3186, 15
        %v3426 = vshrl.u32 %v3187, 15
        %v3427 = vshrl.u32 %v3188, 15
        %v3428 = vshrl.u32 %v3189, 15
        %v3429 = vshrl.u32 %v3190, 15
        %v3430 = vshrl.u32 %v3191, 15
        %v3431 = vshrl.u32 %v3192, 15
        %v3432 = vshrl.u32 %v3193, 15
        %v3433 = vshrl.u32 %v3194, 15
        %v3434 = vshrl.u32 %v3195, 15
        %v3435 = vshrl.u32 %v3196, 15
        %v3436 = vshrl.u32 %v3197, 15
        %v3437 = vshrl.u32 %v3198, 15
        %v3438 = vshrl.u32 %v3199, 15
        %v3439 = vshrl.u32 %v3200, 15
        %v3440 = vshrl.u32 %v3201, 15
        %v3441 = vshrl.u32 %v3202, 15
        %v3442 = vshrl.u32 %v3203, 15
        %v3443 = vshrl.u32 %v3204, 15
        %v3444 = vshrl.u32 %v3205, 15
        %v3445 = vshrl.u32 %v3206, 15
        %v3446 = vshrl.u32 %v3207, 15
        %v3447 = vshrl.u32 %v3208, 15
        %v3448 = vshrl.u32 %v3209, 15
        %v3449 = vshrl.u32 %v3210, 15
        %v3450 = vshrl.u32 %v3211, 15
        %v3451 = vshrl.u32 %v3212, 15
        %v3452 = vshrl.u32 %v3213, 15
        %v3453 = vshrl.u32 %v3214, 15
        %v3454 = vshrl.u32 %v3215, 15
        %v3455 = vshrl.u32 %v3216, 15
        %v3456 = vshrl.u32 %v3217, 15
        %v3457 = vshrl.u32 %v3218, 15
        %v3458 = vshrl.u32 %v3219, 15
        %v3459 = vshrl.u32 %v3220, 15
        %v3460 = vshrl.u32 %v3221, 15
        %v3461 = vshrl.u32 %v3222, 15
        %v3462 = vxor.u32 %v2984, %v3223
        %v3463 = vxor.u32 %v2985, %v3224
        %v3464 = vxor.u32 %v2986, %v3225
        %v3465 = vxor.u32 %v2987, %v3226
        %v3466 = vxor.u32 %v2988, %v3227
        %v3467 = vxor.u32 %v2989, %v3228
        %v3468 = vxor.u32 %v2990, %v3229
        %v3469 = vxor.u32 %v2991, %v3230
        %v3470 = vxor.u32 %v2992, %v3231
        %v3471 = vxor.u32 %v2993, %v3232
        %v3472 = vxor.u32 %v2994, %v3233
        %v3473 = vxor.u32 %v2995, %v3234
        %v3474 = vxor.u32 %v2996, %v3235
        %v3475 = vxor.u32 %v2997, %v3236
        %v3476 = vxor.u32 %v2998, %v3237
        %v3477 = vxor.u32 %v2999, %v3238
        %v3478 = vxor.u32 %v3000, %v3239
        %v3479 = vxor.u32 %v3001, %v3240
        %v3480 = vxor.u32 %v3002, %v3241
        %v3481 = vxor.u32 %v3003, %v3242
        %v3482 = vxor.u32 %v3004, %v3243
        %v3483 = vxor.u32 %v3005, %v3244
        %v3484 = vxor.u32 %v3006, %v3245
        %v3485 = vxor.u32 %v3007, %v3246
        %v3486 = vxor.u32 %v3008, %v3247
        %v3487 = vxor.u32 %v3009, %v3248
        %v3488 = vxor.u32 %v3010, %v3249
        %v3489 = vxor.u32 %v3011, %v3250
        %v3490 = vxor.u32 %v3012, %v3251
        %v3491 = vxor.u32 %v3013, %v3252
        %v3492 = vxor.u32 %v3014, %v3253
        %v3493 = vxor.u32 %v3015, %v3254
        %v3494 = vxor.u32 %v3016, %v3255
        %v3495 = vxor.u32 %v3017, %v3256
        %v3496 = vxor.u32 %v3018, %v3257
        %v3497 = vxor.u32 %v3019, %v3258
        %v3498 = vxor.u32 %v3020, %v3259
        %v3499 = vxor.u32 %v3021, %v3260
        %v3500 = vxor.u32 %v3022, %v3261
        %v3501 = vxor.u32 %v3023, %v3262
        %v3502 = vxor.u32 %v3024, %v3263
        %v3503 = vxor.u32 %v3025, %v3264
        %v3504 = vxor.u32 %v3026, %v3265
        %v3505 = vxor.u32 %v3027, %v3266
        %v3506 = vxor.u32 %v3028, %v3267
        %v3507 = vxor.u32 %v3029, %v3268
        %v3508 = vxor.u32 %v3030, %v3269
        %v3509 = vxor.u32 %v3031, %v3270
        %v3510 = vxor.u32 %v3032, %v3271
        %v3511 = vxor.u32 %v3033, %v3272
        %v3512 = vxor.u32 %v3034, %v3273
        %v3513 = vxor.u32 %v3035, %v3274
        %v3514 = vxor.u32 %v3036, %v3275
        %v3515 = vxor.u32 %v3037, %v3276
        %v3516 = vxor.u32 %v3038, %v3277
        %v3517 = vxor.u32 %v3039, %v3278
        %v3518 = vxor.u32 %v3040, %v3279
        %v3519 = vxor.u32 %v3041, %v3280
        %v3520 = vxor.u32 %v3042, %v3281
        %v3521 = vxor.u32 %v3043, %v3282
        %v3522 = vxor.u32 %v3044, %v3283
        %v3523 = vxor.u32 %v3045, %v3284
        %v3524 = vxor.u32 %v3046, %v3285
        %v3525 = vxor.u32 %v3047, %v3286
        %v3526 = vxor.u32 %v3048, %v3287
        %v3527 = vxor.u32 %v3049, %v3288
        %v3528 = vxor.u32 %v3050, %v3289
        %v3529 = vxor.u32 %v3051, %v3290
        %v3530 = vxor.u32 %v3052, %v3291
        %v3531 = vxor.u32 %v3053, %v3292
        %v3532 = vxor.u32 %v3054, %v3293
        %v3533 = vxor.u32 %v3055, %v3294
        %v3534 = vxor.u32 %v3056, %v3295
        %v3535 = vxor.u32 %v3057, %v3296
        %v3536 = vxor.u32 %v3058, %v3297
        %v3537 = vxor.u32 %v3059, %v3298
        %v3538 = vxor.u32 %v3060, %v3299
        %v3539 = vxor.u32 %v3061, %v3300
        %v3540 = vxor.u32 %v3062, %v3301
        %v3541 = vxor.u32 %v3063, %v3302
        %v3542 = vxor.u32 %v3064, %v3303
        %v3543 = vxor.u32 %v3065, %v3304
        %v3544 = vxor.u32 %v3066, %v3305
        %v3545 = vxor.u32 %v3067, %v3306
        %v3546 = vxor.u32 %v3068, %v3307
        %v3547 = vxor.u32 %v3069, %v3308
        %v3548 = vxor.u32 %v3070, %v3309
        %v3549 = vxor.u32 %v3071, %v3310
        %v3550 = vxor.u32 %v3072, %v3311
        %v3551 = vxor.u32 %v3073, %v3312
        %v3552 = vxor.u32 %v3074, %v3313
        %v3553 = vxor.u32 %v3075, %v3314
        %v3554 = vxor.u32 %v3076, %v3315
        %v3555 = vxor.u32 %v3077, %v3316
        %v3556 = vxor.u32 %v3078, %v3317
        %v3557 = vxor.u32 %v3079, %v3318
        %v3558 = vxor.u32 %v3080, %v3319
        %v3559 = vxor.u32 %v3081, %v3320
        %v3560 = vxor.u32 %v3082, %v3321
        %v3561 = vxor.u32 %v3083, %v3322
        %v3562 = vxor.u32 %v3084, %v3323
        %v3563 = vxor.u32 %v3085, %v3324
        %v3564 = vxor.u32 %v3086, %v3325
        %v3565 = vxor.u32 %v3087, %v3326
        %v3566 = vxor.u32 %v3088, %v3327
        %v3567 = vxor.u32 %v3089, %v3328
        %v3568 = vxor.u32 %v3090, %v3329
        %v3569 = vxor.u32 %v3091, %v3330
        %v3570 = vxor.u32 %v3092, %v3331
        %v3571 = vxor.u32 %v3093, %v3332
        %v3572 = vxor.u32 %v3094, %v3333
        %v3573 = vxor.u32 %v3095, %v3334
        %v3574 = vxor.u32 %v3096, %v3335
        %v3575 = vxor.u32 %v3097, %v3336
        %v3576 = vxor.u32 %v3098, %v3337
        %v3577 = vxor.u32 %v3099, %v3338
        %v3578 = vxor.u32 %v3100, %v3339
        %v3579 = vxor.u32 %v3101, %v3340
        %v3580 = vxor.u32 %v3102, %v3341
        %v3581 = vxor.u32 %v3103, %v3342
        %v3582 = vxor.u32 %v3104, %v3343
        %v3583 = vxor.u32 %v3105, %v3344
        %v3584 = vxor.u32 %v3106, %v3345
        %v3585 = vxor.u32 %v3107, %v3346
        %v3586 = vxor.u32 %v3108, %v3347
        %v3587 = vxor.u32 %v3109, %v3348
        %v3588 = vxor.u32 %v3110, %v3349
        %v3589 = vxor.u32 %v3111, %v3350
        %v3590 = vxor.u32 %v3112, %v3351
        %v3591 = vxor.u32 %v3113, %v3352
        %v3592 = vxor.u32 %v3114, %v3353
        %v3593 = vxor.u32 %v3115, %v3354
        %v3594 = vxor.u32 %v3116, %v3355
        %v3595 = vxor.u32 %v3117, %v3356
        %v3596 = vxor.u32 %v3118, %v3357
        %v3597 = vxor.u32 %v3119, %v3358
        %v3598 = vxor.u32 %v3120, %v3359
        %v3599 = vxor.u32 %v3121, %v3360
        %v3600 = vxor.u32 %v3122, %v3361
        %v3601 = vxor.u32 %v3123, %v3362
        %v3602 = vxor.u32 %v3124, %v3363
        %v3603 = vxor.u32 %v3125, %v3364
        %v3604 = vxor.u32 %v3126, %v3365
        %v3605 = vxor.u32 %v3127, %v3366
        %v3606 = vxor.u32 %v3128, %v3367
        %v3607 = vxor.u32 %v3129, %v3368
        %v3608 = vxor.u32 %v3130, %v3369
        %v3609 = vxor.u32 %v3131, %v3370
        %v3610 = vxor.u32 %v3132, %v3371
        %v3611 = vxor.u32 %v3133, %v3372
        %v3612 = vxor.u32 %v3134, %v3373
        %v3613 = vxor.u32 %v3135, %v3374
        %v3614 = vxor.u32 %v3136, %v3375
        %v3615 = vxor.u32 %v3137, %v3376
        %v3616 = vxor.u32 %v3138, %v3377
        %v3617 = vxor.u32 %v3139, %v3378
        %v3618 = vxor.u32 %v3140, %v3379
        %v3619 = vxor.u32 %v3141, %v3380
        %v3620 = vxor.u32 %v3142, %v3381
        %v3621 = vxor.u32 %v3143, %v3382
        %v3622 = vxor.u32 %v3144, %v3383
        %v3623 = vxor.u32 %v3145, %v3384
        %v3624 = vxor.u32 %v3146, %v3385
        %v3625 = vxor.u32 %v3147, %v3386
        %v3626 = vxor.u32 %v3148, %v3387
        %v3627 = vxor.u32 %v3149, %v3388
        %v3628 = vxor.u32 %v3150, %v3389
        %v3629 = vxor.u32 %v3151, %v3390
        %v3630 = vxor.u32 %v3152, %v3391
        %v3631 = vxor.u32 %v3153, %v3392
        %v3632 = vxor.u32 %v3154, %v3393
        %v3633 = vxor.u32 %v3155, %v3394
        %v3634 = vxor.u32 %v3156, %v3395
        %v3635 = vxor.u32 %v3157, %v3396
        %v3636 = vxor.u32 %v3158, %v3397
        %v3637 = vxor.u32 %v3159, %v3398
        %v3638 = vxor.u32 %v3160, %v3399
        %v3639 = vxor.u32 %v3161, %v3400
        %v3640 = vxor.u32 %v3162, %v3401
        %v3641 = vxor.u32 %v3163, %v3402
        %v3642 = vxor.u32 %v3164, %v3403
        %v3643 = vxor.u32 %v3165, %v3404
        %v3644 = vxor.u32 %v3166, %v3405
        %v3645 = vxor.u32 %v3167, %v3406
        %v3646 = vxor.u32 %v3168, %v3407
        %v3647 = vxor.u32 %v3169, %v3408
        %v3648 = vxor.u32 %v3170, %v3409
        %v3649 = vxor.u32 %v3171, %v3410
        %v3650 = vxor.u32 %v3172, %v3411
        %v3651 = vxor.u32 %v3173, %v3412
        %v3652 = vxor.u32 %v3174, %v3413
        %v3653 = vxor.u32 %v3175, %v3414
        %v3654 = vxor.u32 %v3176, %v3415
        %v3655 = vxor.u32 %v3177, %v3416
        %v3656 = vxor.u32 %v3178, %v3417
        %v3657 = vxor.u32 %v3179, %v3418
        %v3658 = vxor.u32 %v3180, %v3419
        %v3659 = vxor.u32 %v3181, %v3420
        %v3660 = vxor.u32 %v3182, %v3421
        %v3661 = vxor.u32 %v3183, %v3422
        %v3662 = vxor.u32 %v3184, %v3423
        %v3663 = vxor.u32 %v3185, %v3424
        %v3664 = vxor.u32 %v3186, %v3425
        %v3665 = vxor.u32 %v3187, %v3426
        %v3666 = vxor.u32 %v3188, %v3427
        %v3667 = vxor.u32 %v3189, %v3428
        %v3668 = vxor.u32 %v3190, %v3429
        %v3669 = vxor.u32 %v3191, %v3430
        %v3670 = vxor.u32 %v3192, %v3431
        %v3671 = vxor.u32 %v3193, %v3432
        %v3672 = vxor.u32 %v3194, %v3433
        %v3673 = vxor.u32 %v3195, %v3434
        %v3674 = vxor.u32 %v3196, %v3435
        %v3675 = vxor.u32 %v3197, %v3436
        %v3676 = vxor.u32 %v3198, %v3437
        %v3677 = vxor.u32 %v3199, %v3438
        %v3678 = vxor.u32 %v3200, %v3439
        %v3679 = vxor.u32 %v3201, %v3440
        %v3680 = vxor.u32 %v3202, %v3441
        %v3681 = vxor.u32 %v3203, %v3442
        %v3682 = vxor.u32 %v3204, %v3443
        %v3683 = vxor.u32 %v3205, %v3444
        %v3684 = vxor.u32 %v3206, %v3445
        %v3685 = vxor.u32 %v3207, %v3446
        %v3686 = vxor.u32 %v3208, %v3447
        %v3687 = vxor.u32 %v3209, %v3448
        %v3688 = vxor.u32 %v3210, %v3449
        %v3689 = vxor.u32 %v3211, %v3450
        %v3690 = vxor.u32 %v3212, %v3451
        %v3691 = vxor.u32 %v3213, %v3452
        %v3692 = vxor.u32 %v3214, %v3453
        %v3693 = vxor.u32 %v3215, %v3454
        %v3694 = vxor.u32 %v3216, %v3455
        %v3695 = vxor.u32 %v3217, %v3456
        %v3696 = vxor.u32 %v3218, %v3457
        %v3697 = vxor.u32 %v3219, %v3458
        %v3698 = vxor.u32 %v3220, %v3459
        %v3699 = vxor.u32 %v3221, %v3460
        %v3700 = vxor.u32 %v3222, %v3461
        %v3701 = vshrl.u32 %v3462, 9
        %v3702 = vshrl.u32 %v3463, 9
        %v3703 = vshrl.u32 %v3464, 9
        %v3704 = vshrl.u32 %v3465, 9
        %v3705 = vshrl.u32 %v3466, 9
        %v3706 = vshrl.u32 %v3467, 9
        %v3707 = vshrl.u32 %v3468, 9
        %v3708 = vshrl.u32 %v3469, 9
        %v3709 = vshrl.u32 %v3470, 9
        %v3710 = vshrl.u32 %v3471, 9
        %v3711 = vshrl.u32 %v3472, 9
        %v3712 = vshrl.u32 %v3473, 9
        %v3713 = vshrl.u32 %v3474, 9
        %v3714 = vshrl.u32 %v3475, 9
        %v3715 = vshrl.u32 %v3476, 9
        %v3716 = vshrl.u32 %v3477, 9
        %v3717 = vshrl.u32 %v3478, 9
        %v3718 = vshrl.u32 %v3479, 9
        %v3719 = vshrl.u32 %v3480, 9
        %v3720 = vshrl.u32 %v3481, 9
        %v3721 = vshrl.u32 %v3482, 9
        %v3722 = vshrl.u32 %v3483, 9
        %v3723 = vshrl.u32 %v3484, 9
        %v3724 = vshrl.u32 %v3485, 9
        %v3725 = vshrl.u32 %v3486, 9
        %v3726 = vshrl.u32 %v3487, 9
        %v3727 = vshrl.u32 %v3488, 9
        %v3728 = vshrl.u32 %v3489, 9
        %v3729 = vshrl.u32 %v3490, 9
        %v3730 = vshrl.u32 %v3491, 9
        %v3731 = vshrl.u32 %v3492, 9
        %v3732 = vshrl.u32 %v3493, 9
        %v3733 = vshrl.u32 %v3494, 9
        %v3734 = vshrl.u32 %v3495, 9
        %v3735 = vshrl.u32 %v3496, 9
        %v3736 = vshrl.u32 %v3497, 9
        %v3737 = vshrl.u32 %v3498, 9
        %v3738 = vshrl.u32 %v3499, 9
        %v3739 = vshrl.u32 %v3500, 9
        %v3740 = vshrl.u32 %v3501, 9
        %v3741 = vshrl.u32 %v3502, 9
        %v3742 = vshrl.u32 %v3503, 9
        %v3743 = vshrl.u32 %v3504, 9
        %v3744 = vshrl.u32 %v3505, 9
        %v3745 = vshrl.u32 %v3506, 9
        %v3746 = vshrl.u32 %v3507, 9
        %v3747 = vshrl.u32 %v3508, 9
        %v3748 = vshrl.u32 %v3509, 9
        %v3749 = vshrl.u32 %v3510, 9
        %v3750 = vshrl.u32 %v3511, 9
        %v3751 = vshrl.u32 %v3512, 9
        %v3752 = vshrl.u32 %v3513, 9
        %v3753 = vshrl.u32 %v3514, 9
        %v3754 = vshrl.u32 %v3515, 9
        %v3755 = vshrl.u32 %v3516, 9
        %v3756 = vshrl.u32 %v3517, 9
        %v3757 = vshrl.u32 %v3518, 9
        %v3758 = vshrl.u32 %v3519, 9
        %v3759 = vshrl.u32 %v3520, 9
        %v3760 = vshrl.u32 %v3521, 9
        %v3761 = vshrl.u32 %v3522, 9
        %v3762 = vshrl.u32 %v3523, 9
        %v3763 = vshrl.u32 %v3524, 9
        %v3764 = vshrl.u32 %v3525, 9
        %v3765 = vshrl.u32 %v3526, 9
        %v3766 = vshrl.u32 %v3527, 9
        %v3767 = vshrl.u32 %v3528, 9
        %v3768 = vshrl.u32 %v3529, 9
        %v3769 = vshrl.u32 %v3530, 9
        %v3770 = vshrl.u32 %v3531, 9
        %v3771 = vshrl.u32 %v3532, 9
        %v3772 = vshrl.u32 %v3533, 9
        %v3773 = vshrl.u32 %v3534, 9
        %v3774 = vshrl.u32 %v3535, 9
        %v3775 = vshrl.u32 %v3536, 9
        %v3776 = vshrl.u32 %v3537, 9
        %v3777 = vshrl.u32 %v3538, 9
        %v3778 = vshrl.u32 %v3539, 9
        %v3779 = vshrl.u32 %v3540, 9
        %v3780 = vshrl.u32 %v3541, 9
        %v3781 = vshrl.u32 %v3542, 9
        %v3782 = vshrl.u32 %v3543, 9
        %v3783 = vshrl.u32 %v3544, 9
        %v3784 = vshrl.u32 %v3545, 9
        %v3785 = vshrl.u32 %v3546, 9
        %v3786 = vshrl.u32 %v3547, 9
        %v3787 = vshrl.u32 %v3548, 9
        %v3788 = vshrl.u32 %v3549, 9
        %v3789 = vshrl.u32 %v3550, 9
        %v3790 = vshrl.u32 %v3551, 9
        %v3791 = vshrl.u32 %v3552, 9
        %v3792 = vshrl.u32 %v3553, 9
        %v3793 = vshrl.u32 %v3554, 9
        %v3794 = vshrl.u32 %v3555, 9
        %v3795 = vshrl.u32 %v3556, 9
        %v3796 = vshrl.u32 %v3557, 9
        %v3797 = vshrl.u32 %v3558, 9
        %v3798 = vshrl.u32 %v3559, 9
        %v3799 = vshrl.u32 %v3560, 9
        %v3800 = vshrl.u32 %v3561, 9
        %v3801 = vshrl.u32 %v3562, 9
        %v3802 = vshrl.u32 %v3563, 9
        %v3803 = vshrl.u32 %v3564, 9
        %v3804 = vshrl.u32 %v3565, 9
        %v3805 = vshrl.u32 %v3566, 9
        %v3806 = vshrl.u32 %v3567, 9
        %v3807 = vshrl.u32 %v3568, 9
        %v3808 = vshrl.u32 %v3569, 9
        %v3809 = vshrl.u32 %v3570, 9
        %v3810 = vshrl.u32 %v3571, 9
        %v3811 = vshrl.u32 %v3572, 9
        %v3812 = vshrl.u32 %v3573, 9
        %v3813 = vshrl.u32 %v3574, 9
        %v3814 = vshrl.u32 %v3575, 9
        %v3815 = vshrl.u32 %v3576, 9
        %v3816 = vshrl.u32 %v3577, 9
        %v3817 = vshrl.u32 %v3578, 9
        %v3818 = vshrl.u32 %v3579, 9
        %v3819 = vshrl.u32 %v3580, 9
        %v3820 = vshrl.u32 %v3581, 9
        %v3821 = vshrl.u32 %v3582, 9
        %v3822 = vshrl.u32 %v3583, 9
        %v3823 = vshrl.u32 %v3584, 9
        %v3824 = vshrl.u32 %v3585, 9
        %v3825 = vshrl.u32 %v3586, 9
        %v3826 = vshrl.u32 %v3587, 9
        %v3827 = vshrl.u32 %v3588, 9
        %v3828 = vshrl.u32 %v3589, 9
        %v3829 = vshrl.u32 %v3590, 9
        %v3830 = vshrl.u32 %v3591, 9
        %v3831 = vshrl.u32 %v3592, 9
        %v3832 = vshrl.u32 %v3593, 9
        %v3833 = vshrl.u32 %v3594, 9
        %v3834 = vshrl.u32 %v3595, 9
        %v3835 = vshrl.u32 %v3596, 9
        %v3836 = vshrl.u32 %v3597, 9
        %v3837 = vshrl.u32 %v3598, 9
        %v3838 = vshrl.u32 %v3599, 9
        %v3839 = vshrl.u32 %v3600, 9
        %v3840 = vshrl.u32 %v3601, 9
        %v3841 = vshrl.u32 %v3602, 9
        %v3842 = vshrl.u32 %v3603, 9
        %v3843 = vshrl.u32 %v3604, 9
        %v3844 = vshrl.u32 %v3605, 9
        %v3845 = vshrl.u32 %v3606, 9
        %v3846 = vshrl.u32 %v3607, 9
        %v3847 = vshrl.u32 %v3608, 9
        %v3848 = vshrl.u32 %v3609, 9
        %v3849 = vshrl.u32 %v3610, 9
        %v3850 = vshrl.u32 %v3611, 9
        %v3851 = vshrl.u32 %v3612, 9
        %v3852 = vshrl.u32 %v3613, 9
        %v3853 = vshrl.u32 %v3614, 9
        %v3854 = vshrl.u32 %v3615, 9
        %v3855 = vshrl.u32 %v3616, 9
        %v3856 = vshrl.u32 %v3617, 9
        %v3857 = vshrl.u32 %v3618, 9
        %v3858 = vshrl.u32 %v3619, 9
        %v3859 = vshrl.u32 %v3620, 9
        %v3860 = vshrl.u32 %v3621, 9
        %v3861 = vshrl.u32 %v3622, 9
        %v3862 = vshrl.u32 %v3623, 9
        %v3863 = vshrl.u32 %v3624, 9
        %v3864 = vshrl.u32 %v3625, 9
        %v3865 = vshrl.u32 %v3626, 9
        %v3866 = vshrl.u32 %v3627, 9
        %v3867 = vshrl.u32 %v3628, 9
        %v3868 = vshrl.u32 %v3629, 9
        %v3869 = vshrl.u32 %v3630, 9
        %v3870 = vshrl.u32 %v3631, 9
        %v3871 = vshrl.u32 %v3632, 9
        %v3872 = vshrl.u32 %v3633, 9
        %v3873 = vshrl.u32 %v3634, 9
        %v3874 = vshrl.u32 %v3635, 9
        %v3875 = vshrl.u32 %v3636, 9
        %v3876 = vshrl.u32 %v3637, 9
        %v3877 = vshrl.u32 %v3638, 9
        %v3878 = vshrl.u32 %v3639, 9
        %v3879 = vshrl.u32 %v3640, 9
        %v3880 = vshrl.u32 %v3641, 9
        %v3881 = vshrl.u32 %v3642, 9
        %v3882 = vshrl.u32 %v3643, 9
        %v3883 = vshrl.u32 %v3644, 9
        %v3884 = vshrl.u32 %v3645, 9
        %v3885 = vshrl.u32 %v3646, 9
        %v3886 = vshrl.u32 %v3647, 9
        %v3887 = vshrl.u32 %v3648, 9
        %v3888 = vshrl.u32 %v3649, 9
        %v3889 = vshrl.u32 %v3650, 9
        %v3890 = vshrl.u32 %v3651, 9
        %v3891 = vshrl.u32 %v3652, 9
        %v3892 = vshrl.u32 %v3653, 9
        %v3893 = vshrl.u32 %v3654, 9
        %v3894 = vshrl.u32 %v3655, 9
        %v3895 = vshrl.u32 %v3656, 9
        %v3896 = vshrl.u32 %v3657, 9
        %v3897 = vshrl.u32 %v3658, 9
        %v3898 = vshrl.u32 %v3659, 9
        %v3899 = vshrl.u32 %v3660, 9
        %v3900 = vshrl.u32 %v3661, 9
        %v3901 = vshrl.u32 %v3662, 9
        %v3902 = vshrl.u32 %v3663, 9
        %v3903 = vshrl.u32 %v3664, 9
        %v3904 = vshrl.u32 %v3665, 9
        %v3905 = vshrl.u32 %v3666, 9
        %v3906 = vshrl.u32 %v3667, 9
        %v3907 = vshrl.u32 %v3668, 9
        %v3908 = vshrl.u32 %v3669, 9
        %v3909 = vshrl.u32 %v3670, 9
        %v3910 = vshrl.u32 %v3671, 9
        %v3911 = vshrl.u32 %v3672, 9
        %v3912 = vshrl.u32 %v3673, 9
        %v3913 = vshrl.u32 %v3674, 9
        %v3914 = vshrl.u32 %v3675, 9
        %v3915 = vshrl.u32 %v3676, 9
        %v3916 = vshrl.u32 %v3677, 9
        %v3917 = vshrl.u32 %v3678, 9
        %v3918 = vshrl.u32 %v3679, 9
        %v3919 = vshrl.u32 %v3680, 9
        %v3920 = vshrl.u32 %v3681, 9
        %v3921 = vshrl.u32 %v3682, 9
        %v3922 = vshrl.u32 %v3683, 9
        %v3923 = vshrl.u32 %v3684, 9
        %v3924 = vshrl.u32 %v3685, 9
        %v3925 = vshrl.u32 %v3686, 9
        %v3926 = vshrl.u32 %v3687, 9
        %v3927 = vshrl.u32 %v3688, 9
        %v3928 = vshrl.u32 %v3689, 9
        %v3929 = vshrl.u32 %v3690, 9
        %v3930 = vshrl.u32 %v3691, 9
        %v3931 = vshrl.u32 %v3692, 9
        %v3932 = vshrl.u32 %v3693, 9
        %v3933 = vshrl.u32 %v3694, 9
        %v3934 = vshrl.u32 %v3695, 9
        %v3935 = vshrl.u32 %v3696, 9
        %v3936 = vshrl.u32 %v3697, 9
        %v3937 = vshrl.u32 %v3698, 9
        %v3938 = vshrl.u32 %v3699, 9
        %v3939 = vshrl.u32 %v3700, 9
        %v3940 = vor.u32 %v3701, 1065353216
        %v3941 = vor.u32 %v3702, 1065353216
        %v3942 = vor.u32 %v3703, 1065353216
        %v3943 = vor.u32 %v3704, 1065353216
        %v3944 = vor.u32 %v3705, 1065353216
        %v3945 = vor.u32 %v3706, 1065353216
        %v3946 = vor.u32 %v3707, 1065353216
        %v3947 = vor.u32 %v3708, 1065353216
        %v3948 = vor.u32 %v3709, 1065353216
        %v3949 = vor.u32 %v3710, 1065353216
        %v3950 = vor.u32 %v3711, 1065353216
        %v3951 = vor.u32 %v3712, 1065353216
        %v3952 = vor.u32 %v3713, 1065353216
        %v3953 = vor.u32 %v3714, 1065353216
        %v3954 = vor.u32 %v3715, 1065353216
        %v3955 = vor.u32 %v3716, 1065353216
        %v3956 = vor.u32 %v3717, 1065353216
        %v3957 = vor.u32 %v3718, 1065353216
        %v3958 = vor.u32 %v3719, 1065353216
        %v3959 = vor.u32 %v3720, 1065353216
        %v3960 = vor.u32 %v3721, 1065353216
        %v3961 = vor.u32 %v3722, 1065353216
        %v3962 = vor.u32 %v3723, 1065353216
        %v3963 = vor.u32 %v3724, 1065353216
        %v3964 = vor.u32 %v3725, 1065353216
        %v3965 = vor.u32 %v3726, 1065353216
        %v3966 = vor.u32 %v3727, 1065353216
        %v3967 = vor.u32 %v3728, 1065353216
        %v3968 = vor.u32 %v3729, 1065353216
        %v3969 = vor.u32 %v3730, 1065353216
        %v3970 = vor.u32 %v3731, 1065353216
        %v3971 = vor.u32 %v3732, 1065353216
        %v3972 = vor.u32 %v3733, 1065353216
        %v3973 = vor.u32 %v3734, 1065353216
        %v3974 = vor.u32 %v3735, 1065353216
        %v3975 = vor.u32 %v3736, 1065353216
        %v3976 = vor.u32 %v3737, 1065353216
        %v3977 = vor.u32 %v3738, 1065353216
        %v3978 = vor.u32 %v3739, 1065353216
        %v3979 = vor.u32 %v3740, 1065353216
        %v3980 = vor.u32 %v3741, 1065353216
        %v3981 = vor.u32 %v3742, 1065353216
        %v3982 = vor.u32 %v3743, 1065353216
        %v3983 = vor.u32 %v3744, 1065353216
        %v3984 = vor.u32 %v3745, 1065353216
        %v3985 = vor.u32 %v3746, 1065353216
        %v3986 = vor.u32 %v3747, 1065353216
        %v3987 = vor.u32 %v3748, 1065353216
        %v3988 = vor.u32 %v3749, 1065353216
        %v3989 = vor.u32 %v3750, 1065353216
        %v3990 = vor.u32 %v3751, 1065353216
        %v3991 = vor.u32 %v3752, 1065353216
        %v3992 = vor.u32 %v3753, 1065353216
        %v3993 = vor.u32 %v3754, 1065353216
        %v3994 = vor.u32 %v3755, 1065353216
        %v3995 = vor.u32 %v3756, 1065353216
        %v3996 = vor.u32 %v3757, 1065353216
        %v3997 = vor.u32 %v3758, 1065353216
        %v3998 = vor.u32 %v3759, 1065353216
        %v3999 = vor.u32 %v3760, 1065353216
        %v4000 = vor.u32 %v3761, 1065353216
        %v4001 = vor.u32 %v3762, 1065353216
        %v4002 = vor.u32 %v3763, 1065353216
        %v4003 = vor.u32 %v3764, 1065353216
        %v4004 = vor.u32 %v3765, 1065353216
        %v4005 = vor.u32 %v3766, 1065353216
        %v4006 = vor.u32 %v3767, 1065353216
        %v4007 = vor.u32 %v3768, 1065353216
        %v4008 = vor.u32 %v3769, 1065353216
        %v4009 = vor.u32 %v3770, 1065353216
        %v4010 = vor.u32 %v3771, 1065353216
        %v4011 = vor.u32 %v3772, 1065353216
        %v4012 = vor.u32 %v3773, 1065353216
        %v4013 = vor.u32 %v3774, 1065353216
        %v4014 = vor.u32 %v3775, 1065353216
        %v4015 = vor.u32 %v3776, 1065353216
        %v4016 = vor.u32 %v3777, 1065353216
        %v4017 = vor.u32 %v3778, 1065353216
        %v4018 = vor.u32 %v3779, 1065353216
        %v4019 = vor.u32 %v3780, 1065353216
        %v4020 = vor.u32 %v3781, 1065353216
        %v4021 = vor.u32 %v3782, 1065353216
        %v4022 = vor.u32 %v3783, 1065353216
        %v4023 = vor.u32 %v3784, 1065353216
        %v4024 = vor.u32 %v3785, 1065353216
        %v4025 = vor.u32 %v3786, 1065353216
        %v4026 = vor.u32 %v3787, 1065353216
        %v4027 = vor.u32 %v3788, 1065353216
        %v4028 = vor.u32 %v3789, 1065353216
        %v4029 = vor.u32 %v3790, 1065353216
        %v4030 = vor.u32 %v3791, 1065353216
        %v4031 = vor.u32 %v3792, 1065353216
        %v4032 = vor.u32 %v3793, 1065353216
        %v4033 = vor.u32 %v3794, 1065353216
        %v4034 = vor.u32 %v3795, 1065353216
        %v4035 = vor.u32 %v3796, 1065353216
        %v4036 = vor.u32 %v3797, 1065353216
        %v4037 = vor.u32 %v3798, 1065353216
        %v4038 = vor.u32 %v3799, 1065353216
        %v4039 = vor.u32 %v3800, 1065353216
        %v4040 = vor.u32 %v3801, 1065353216
        %v4041 = vor.u32 %v3802, 1065353216
        %v4042 = vor.u32 %v3803, 1065353216
        %v4043 = vor.u32 %v3804, 1065353216
        %v4044 = vor.u32 %v3805, 1065353216
        %v4045 = vor.u32 %v3806, 1065353216
        %v4046 = vor.u32 %v3807, 1065353216
        %v4047 = vor.u32 %v3808, 1065353216
        %v4048 = vor.u32 %v3809, 1065353216
        %v4049 = vor.u32 %v3810, 1065353216
        %v4050 = vor.u32 %v3811, 1065353216
        %v4051 = vor.u32 %v3812, 1065353216
        %v4052 = vor.u32 %v3813, 1065353216
        %v4053 = vor.u32 %v3814, 1065353216
        %v4054 = vor.u32 %v3815, 1065353216
        %v4055 = vor.u32 %v3816, 1065353216
        %v4056 = vor.u32 %v3817, 1065353216
        %v4057 = vor.u32 %v3818, 1065353216
        %v4058 = vor.u32 %v3819, 1065353216
        %v4059 = vor.u32 %v3820, 1065353216
        %v4060 = vor.u32 %v3821, 1065353216
        %v4061 = vor.u32 %v3822, 1065353216
        %v4062 = vor.u32 %v3823, 1065353216
        %v4063 = vor.u32 %v3824, 1065353216
        %v4064 = vor.u32 %v3825, 1065353216
        %v4065 = vor.u32 %v3826, 1065353216
        %v4066 = vor.u32 %v3827, 1065353216
        %v4067 = vor.u32 %v3828, 1065353216
        %v4068 = vor.u32 %v3829, 1065353216
        %v4069 = vor.u32 %v3830, 1065353216
        %v4070 = vor.u32 %v3831, 1065353216
        %v4071 = vor.u32 %v3832, 1065353216
        %v4072 = vor.u32 %v3833, 1065353216
        %v4073 = vor.u32 %v3834, 1065353216
        %v4074 = vor.u32 %v3835, 1065353216
        %v4075 = vor.u32 %v3836, 1065353216
        %v4076 = vor.u32 %v3837, 1065353216
        %v4077 = vor.u32 %v3838, 1065353216
        %v4078 = vor.u32 %v3839, 1065353216
        %v4079 = vor.u32 %v3840, 1065353216
        %v4080 = vor.u32 %v3841, 1065353216
        %v4081 = vor.u32 %v3842, 1065353216
        %v4082 = vor.u32 %v3843, 1065353216
        %v4083 = vor.u32 %v3844, 1065353216
        %v4084 = vor.u32 %v3845, 1065353216
        %v4085 = vor.u32 %v3846, 1065353216
        %v4086 = vor.u32 %v3847, 1065353216
        %v4087 = vor.u32 %v3848, 1065353216
        %v4088 = vor.u32 %v3849, 1065353216
        %v4089 = vor.u32 %v3850, 1065353216
        %v4090 = vor.u32 %v3851, 1065353216
        %v4091 = vor.u32 %v3852, 1065353216
        %v4092 = vor.u32 %v3853, 1065353216
        %v4093 = vor.u32 %v3854, 1065353216
        %v4094 = vor.u32 %v3855, 1065353216
        %v4095 = vor.u32 %v3856, 1065353216
        %v4096 = vor.u32 %v3857, 1065353216
        %v4097 = vor.u32 %v3858, 1065353216
        %v4098 = vor.u32 %v3859, 1065353216
        %v4099 = vor.u32 %v3860, 1065353216
        %v4100 = vor.u32 %v3861, 1065353216
        %v4101 = vor.u32 %v3862, 1065353216
        %v4102 = vor.u32 %v3863, 1065353216
        %v4103 = vor.u32 %v3864, 1065353216
        %v4104 = vor.u32 %v3865, 1065353216
        %v4105 = vor.u32 %v3866, 1065353216
        %v4106 = vor.u32 %v3867, 1065353216
        %v4107 = vor.u32 %v3868, 1065353216
        %v4108 = vor.u32 %v3869, 1065353216
        %v4109 = vor.u32 %v3870, 1065353216
        %v4110 = vor.u32 %v3871, 1065353216
        %v4111 = vor.u32 %v3872, 1065353216
        %v4112 = vor.u32 %v3873, 1065353216
        %v4113 = vor.u32 %v3874, 1065353216
        %v4114 = vor.u32 %v3875, 1065353216
        %v4115 = vor.u32 %v3876, 1065353216
        %v4116 = vor.u32 %v3877, 1065353216
        %v4117 = vor.u32 %v3878, 1065353216
        %v4118 = vor.u32 %v3879, 1065353216
        %v4119 = vor.u32 %v3880, 1065353216
        %v4120 = vor.u32 %v3881, 1065353216
        %v4121 = vor.u32 %v3882, 1065353216
        %v4122 = vor.u32 %v3883, 1065353216
        %v4123 = vor.u32 %v3884, 1065353216
        %v4124 = vor.u32 %v3885, 1065353216
        %v4125 = vor.u32 %v3886, 1065353216
        %v4126 = vor.u32 %v3887, 1065353216
        %v4127 = vor.u32 %v3888, 1065353216
        %v4128 = vor.u32 %v3889, 1065353216
        %v4129 = vor.u32 %v3890, 1065353216
        %v4130 = vor.u32 %v3891, 1065353216
        %v4131 = vor.u32 %v3892, 1065353216
        %v4132 = vor.u32 %v3893, 1065353216
        %v4133 = vor.u32 %v3894, 1065353216
        %v4134 = vor.u32 %v3895, 1065353216
        %v4135 = vor.u32 %v3896, 1065353216
        %v4136 = vor.u32 %v3897, 1065353216
        %v4137 = vor.u32 %v3898, 1065353216
        %v4138 = vor.u32 %v3899, 1065353216
        %v4139 = vor.u32 %v3900, 1065353216
        %v4140 = vor.u32 %v3901, 1065353216
        %v4141 = vor.u32 %v3902, 1065353216
        %v4142 = vor.u32 %v3903, 1065353216
        %v4143 = vor.u32 %v3904, 1065353216
        %v4144 = vor.u32 %v3905, 1065353216
        %v4145 = vor.u32 %v3906, 1065353216
        %v4146 = vor.u32 %v3907, 1065353216
        %v4147 = vor.u32 %v3908, 1065353216
        %v4148 = vor.u32 %v3909, 1065353216
        %v4149 = vor.u32 %v3910, 1065353216
        %v4150 = vor.u32 %v3911, 1065353216
        %v4151 = vor.u32 %v3912, 1065353216
        %v4152 = vor.u32 %v3913, 1065353216
        %v4153 = vor.u32 %v3914, 1065353216
        %v4154 = vor.u32 %v3915, 1065353216
        %v4155 = vor.u32 %v3916, 1065353216
        %v4156 = vor.u32 %v3917, 1065353216
        %v4157 = vor.u32 %v3918, 1065353216
        %v4158 = vor.u32 %v3919, 1065353216
        %v4159 = vor.u32 %v3920, 1065353216
        %v4160 = vor.u32 %v3921, 1065353216
        %v4161 = vor.u32 %v3922, 1065353216
        %v4162 = vor.u32 %v3923, 1065353216
        %v4163 = vor.u32 %v3924, 1065353216
        %v4164 = vor.u32 %v3925, 1065353216
        %v4165 = vor.u32 %v3926, 1065353216
        %v4166 = vor.u32 %v3927, 1065353216
        %v4167 = vor.u32 %v3928, 1065353216
        %v4168 = vor.u32 %v3929, 1065353216
        %v4169 = vor.u32 %v3930, 1065353216
        %v4170 = vor.u32 %v3931, 1065353216
        %v4171 = vor.u32 %v3932, 1065353216
        %v4172 = vor.u32 %v3933, 1065353216
        %v4173 = vor.u32 %v3934, 1065353216
        %v4174 = vor.u32 %v3935, 1065353216
        %v4175 = vor.u32 %v3936, 1065353216
        %v4176 = vor.u32 %v3937, 1065353216
        %v4177 = vor.u32 %v3938, 1065353216
        %v4178 = vor.u32 %v3939, 1065353216
        %v4418 = vsub.f32 %v3940, 1.0
        %v4419 = vsub.f32 %v3941, 1.0
        %v4420 = vsub.f32 %v3942, 1.0
        %v4421 = vsub.f32 %v3943, 1.0
        %v4422 = vsub.f32 %v3944, 1.0
        %v4423 = vsub.f32 %v3945, 1.0
        %v4424 = vsub.f32 %v3946, 1.0
        %v4425 = vsub.f32 %v3947, 1.0
        %v4426 = vsub.f32 %v3948, 1.0
        %v4427 = vsub.f32 %v3949, 1.0
        %v4428 = vsub.f32 %v3950, 1.0
        %v4429 = vsub.f32 %v3951, 1.0
        %v4430 = vsub.f32 %v3952, 1.0
        %v4431 = vsub.f32 %v3953, 1.0
        %v4432 = vsub.f32 %v3954, 1.0
        %v4433 = vsub.f32 %v3955, 1.0
        %v4434 = vsub.f32 %v3956, 1.0
        %v4435 = vsub.f32 %v3957, 1.0
        %v4436 = vsub.f32 %v3958, 1.0
        %v4437 = vsub.f32 %v3959, 1.0
        %v4438 = vsub.f32 %v3960, 1.0
        %v4439 = vsub.f32 %v3961, 1.0
        %v4440 = vsub.f32 %v3962, 1.0
        %v4441 = vsub.f32 %v3963, 1.0
        %v4442 = vsub.f32 %v3964, 1.0
        %v4443 = vsub.f32 %v3965, 1.0
        %v4444 = vsub.f32 %v3966, 1.0
        %v4445 = vsub.f32 %v3967, 1.0
        %v4446 = vsub.f32 %v3968, 1.0
        %v4447 = vsub.f32 %v3969, 1.0
        %v4448 = vsub.f32 %v3970, 1.0
        %v4449 = vsub.f32 %v3971, 1.0
        %v4450 = vsub.f32 %v3972, 1.0
        %v4451 = vsub.f32 %v3973, 1.0
        %v4452 = vsub.f32 %v3974, 1.0
        %v4453 = vsub.f32 %v3975, 1.0
        %v4454 = vsub.f32 %v3976, 1.0
        %v4455 = vsub.f32 %v3977, 1.0
        %v4456 = vsub.f32 %v3978, 1.0
        %v4457 = vsub.f32 %v3979, 1.0
        %v4458 = vsub.f32 %v3980, 1.0
        %v4459 = vsub.f32 %v3981, 1.0
        %v4460 = vsub.f32 %v3982, 1.0
        %v4461 = vsub.f32 %v3983, 1.0
        %v4462 = vsub.f32 %v3984, 1.0
        %v4463 = vsub.f32 %v3985, 1.0
        %v4464 = vsub.f32 %v3986, 1.0
        %v4465 = vsub.f32 %v3987, 1.0
        %v4466 = vsub.f32 %v3988, 1.0
        %v4467 = vsub.f32 %v3989, 1.0
        %v4468 = vsub.f32 %v3990, 1.0
        %v4469 = vsub.f32 %v3991, 1.0
        %v4470 = vsub.f32 %v3992, 1.0
        %v4471 = vsub.f32 %v3993, 1.0
        %v4472 = vsub.f32 %v3994, 1.0
        %v4473 = vsub.f32 %v3995, 1.0
        %v4474 = vsub.f32 %v3996, 1.0
        %v4475 = vsub.f32 %v3997, 1.0
        %v4476 = vsub.f32 %v3998, 1.0
        %v4477 = vsub.f32 %v3999, 1.0
        %v4478 = vsub.f32 %v4000, 1.0
        %v4479 = vsub.f32 %v4001, 1.0
        %v4480 = vsub.f32 %v4002, 1.0
        %v4481 = vsub.f32 %v4003, 1.0
        %v4482 = vsub.f32 %v4004, 1.0
        %v4483 = vsub.f32 %v4005, 1.0
        %v4484 = vsub.f32 %v4006, 1.0
        %v4485 = vsub.f32 %v4007, 1.0
        %v4486 = vsub.f32 %v4008, 1.0
        %v4487 = vsub.f32 %v4009, 1.0
        %v4488 = vsub.f32 %v4010, 1.0
        %v4489 = vsub.f32 %v4011, 1.0
        %v4490 = vsub.f32 %v4012, 1.0
        %v4491 = vsub.f32 %v4013, 1.0
        %v4492 = vsub.f32 %v4014, 1.0
        %v4493 = vsub.f32 %v4015, 1.0
        %v4494 = vsub.f32 %v4016, 1.0
        %v4495 = vsub.f32 %v4017, 1.0
        %v4496 = vsub.f32 %v4018, 1.0
        %v4497 = vsub.f32 %v4019, 1.0
        %v4498 = vsub.f32 %v4020, 1.0
        %v4499 = vsub.f32 %v4021, 1.0
        %v4500 = vsub.f32 %v4022, 1.0
        %v4501 = vsub.f32 %v4023, 1.0
        %v4502 = vsub.f32 %v4024, 1.0
        %v4503 = vsub.f32 %v4025, 1.0
        %v4504 = vsub.f32 %v4026, 1.0
        %v4505 = vsub.f32 %v4027, 1.0
        %v4506 = vsub.f32 %v4028, 1.0
        %v4507 = vsub.f32 %v4029, 1.0
        %v4508 = vsub.f32 %v4030, 1.0
        %v4509 = vsub.f32 %v4031, 1.0
        %v4510 = vsub.f32 %v4032, 1.0
        %v4511 = vsub.f32 %v4033, 1.0
        %v4512 = vsub.f32 %v4034, 1.0
        %v4513 = vsub.f32 %v4035, 1.0
        %v4514 = vsub.f32 %v4036, 1.0
        %v4515 = vsub.f32 %v4037, 1.0
        %v4516 = vsub.f32 %v4038, 1.0
        %v4517 = vsub.f32 %v4039, 1.0
        %v4518 = vsub.f32 %v4040, 1.0
        %v4519 = vsub.f32 %v4041, 1.0
        %v4520 = vsub.f32 %v4042, 1.0
        %v4521 = vsub.f32 %v4043, 1.0
        %v4522 = vsub.f32 %v4044, 1.0
        %v4523 = vsub.f32 %v4045, 1.0
        %v4524 = vsub.f32 %v4046, 1.0
        %v4525 = vsub.f32 %v4047, 1.0
        %v4526 = vsub.f32 %v4048, 1.0
        %v4527 = vsub.f32 %v4049, 1.0
        %v4528 = vsub.f32 %v4050, 1.0
        %v4529 = vsub.f32 %v4051, 1.0
        %v4530 = vsub.f32 %v4052, 1.0
        %v4531 = vsub.f32 %v4053, 1.0
        %v4532 = vsub.f32 %v4054, 1.0
        %v4533 = vsub.f32 %v4055, 1.0
        %v4534 = vsub.f32 %v4056, 1.0
        %v4535 = vsub.f32 %v4057, 1.0
        %v4536 = vsub.f32 %v4058, 1.0
        %v4537 = vsub.f32 %v4059, 1.0
        %v4538 = vsub.f32 %v4060, 1.0
        %v4539 = vsub.f32 %v4061, 1.0
        %v4540 = vsub.f32 %v4062, 1.0
        %v4541 = vsub.f32 %v4063, 1.0
        %v4542 = vsub.f32 %v4064, 1.0
        %v4543 = vsub.f32 %v4065, 1.0
        %v4544 = vsub.f32 %v4066, 1.0
        %v4545 = vsub.f32 %v4067, 1.0
        %v4546 = vsub.f32 %v4068, 1.0
        %v4547 = vsub.f32 %v4069, 1.0
        %v4548 = vsub.f32 %v4070, 1.0
        %v4549 = vsub.f32 %v4071, 1.0
        %v4550 = vsub.f32 %v4072, 1.0
        %v4551 = vsub.f32 %v4073, 1.0
        %v4552 = vsub.f32 %v4074, 1.0
        %v4553 = vsub.f32 %v4075, 1.0
        %v4554 = vsub.f32 %v4076, 1.0
        %v4555 = vsub.f32 %v4077, 1.0
        %v4556 = vsub.f32 %v4078, 1.0
        %v4557 = vsub.f32 %v4079, 1.0
        %v4558 = vsub.f32 %v4080, 1.0
        %v4559 = vsub.f32 %v4081, 1.0
        %v4560 = vsub.f32 %v4082, 1.0
        %v4561 = vsub.f32 %v4083, 1.0
        %v4562 = vsub.f32 %v4084, 1.0
        %v4563 = vsub.f32 %v4085, 1.0
        %v4564 = vsub.f32 %v4086, 1.0
        %v4565 = vsub.f32 %v4087, 1.0
        %v4566 = vsub.f32 %v4088, 1.0
        %v4567 = vsub.f32 %v4089, 1.0
        %v4568 = vsub.f32 %v4090, 1.0
        %v4569 = vsub.f32 %v4091, 1.0
        %v4570 = vsub.f32 %v4092, 1.0
        %v4571 = vsub.f32 %v4093, 1.0
        %v4572 = vsub.f32 %v4094, 1.0
        %v4573 = vsub.f32 %v4095, 1.0
        %v4574 = vsub.f32 %v4096, 1.0
        %v4575 = vsub.f32 %v4097, 1.0
        %v4576 = vsub.f32 %v4098, 1.0
        %v4577 = vsub.f32 %v4099, 1.0
        %v4578 = vsub.f32 %v4100, 1.0
        %v4579 = vsub.f32 %v4101, 1.0
        %v4580 = vsub.f32 %v4102, 1.0
        %v4581 = vsub.f32 %v4103, 1.0
        %v4582 = vsub.f32 %v4104, 1.0
        %v4583 = vsub.f32 %v4105, 1.0
        %v4584 = vsub.f32 %v4106, 1.0
        %v4585 = vsub.f32 %v4107, 1.0
        %v4586 = vsub.f32 %v4108, 1.0
        %v4587 = vsub.f32 %v4109, 1.0
        %v4588 = vsub.f32 %v4110, 1.0
        %v4589 = vsub.f32 %v4111, 1.0
        %v4590 = vsub.f32 %v4112, 1.0
        %v4591 = vsub.f32 %v4113, 1.0
        %v4592 = vsub.f32 %v4114, 1.0
        %v4593 = vsub.f32 %v4115, 1.0
        %v4594 = vsub.f32 %v4116, 1.0
        %v4595 = vsub.f32 %v4117, 1.0
        %v4596 = vsub.f32 %v4118, 1.0
        %v4597 = vsub.f32 %v4119, 1.0
        %v4598 = vsub.f32 %v4120, 1.0
        %v4599 = vsub.f32 %v4121, 1.0
        %v4600 = vsub.f32 %v4122, 1.0
        %v4601 = vsub.f32 %v4123, 1.0
        %v4602 = vsub.f32 %v4124, 1.0
        %v4603 = vsub.f32 %v4125, 1.0
        %v4604 = vsub.f32 %v4126, 1.0
        %v4605 = vsub.f32 %v4127, 1.0
        %v4606 = vsub.f32 %v4128, 1.0
        %v4607 = vsub.f32 %v4129, 1.0
        %v4608 = vsub.f32 %v4130, 1.0
        %v4609 = vsub.f32 %v4131, 1.0
        %v4610 = vsub.f32 %v4132, 1.0
        %v4611 = vsub.f32 %v4133, 1.0
        %v4612 = vsub.f32 %v4134, 1.0
        %v4613 = vsub.f32 %v4135, 1.0
        %v4614 = vsub.f32 %v4136, 1.0
        %v4615 = vsub.f32 %v4137, 1.0
        %v4616 = vsub.f32 %v4138, 1.0
        %v4617 = vsub.f32 %v4139, 1.0
        %v4618 = vsub.f32 %v4140, 1.0
        %v4619 = vsub.f32 %v4141, 1.0
        %v4620 = vsub.f32 %v4142, 1.0
        %v4621 = vsub.f32 %v4143, 1.0
        %v4622 = vsub.f32 %v4144, 1.0
        %v4623 = vsub.f32 %v4145, 1.0
        %v4624 = vsub.f32 %v4146, 1.0
        %v4625 = vsub.f32 %v4147, 1.0
        %v4626 = vsub.f32 %v4148, 1.0
        %v4627 = vsub.f32 %v4149, 1.0
        %v4628 = vsub.f32 %v4150, 1.0
        %v4629 = vsub.f32 %v4151, 1.0
        %v4630 = vsub.f32 %v4152, 1.0
        %v4631 = vsub.f32 %v4153, 1.0
        %v4632 = vsub.f32 %v4154, 1.0
        %v4633 = vsub.f32 %v4155, 1.0
        %v4634 = vsub.f32 %v4156, 1.0
        %v4635 = vsub.f32 %v4157, 1.0
        %v4636 = vsub.f32 %v4158, 1.0
        %v4637 = vsub.f32 %v4159, 1.0
        %v4638 = vsub.f32 %v4160, 1.0
        %v4639 = vsub.f32 %v4161, 1.0
        %v4640 = vsub.f32 %v4162, 1.0
        %v4641 = vsub.f32 %v4163, 1.0
        %v4642 = vsub.f32 %v4164, 1.0
        %v4643 = vsub.f32 %v4165, 1.0
        %v4644 = vsub.f32 %v4166, 1.0
        %v4645 = vsub.f32 %v4167, 1.0
        %v4646 = vsub.f32 %v4168, 1.0
        %v4647 = vsub.f32 %v4169, 1.0
        %v4648 = vsub.f32 %v4170, 1.0
        %v4649 = vsub.f32 %v4171, 1.0
        %v4650 = vsub.f32 %v4172, 1.0
        %v4651 = vsub.f32 %v4173, 1.0
        %v4652 = vsub.f32 %v4174, 1.0
        %v4653 = vsub.f32 %v4175, 1.0
        %v4654 = vsub.f32 %v4176, 1.0
        %v4655 = vsub.f32 %v4177, 1.0
        %v4656 = vsub.f32 %v4178, 1.0
        %4657 = vst [vmem:[%s95] sm:$0xff] %v4418
        %4658 = vst [vmem:[%s95 + $0x8] sm:$0xff] %v4419
        %4659 = vst [vmem:[%s95 + $0x10] sm:$0xff] %v4420
        %4660 = vst [vmem:[%s95 + $0x18] sm:$0xff] %v4421
        %4661 = vst [vmem:[%s95 + $0x20] sm:$0xff] %v4422
        %4662 = vst [vmem:[%s95 + $0x28] sm:$0xff] %v4423
        %4663 = vst [vmem:[%s95 + $0x30] sm:$0xff] %v4424
        %4664 = vst [vmem:[%s95 + $0x38] sm:$0xff] %v4425
        %4665 = vst [vmem:[%s95 + $0x40] sm:$0xff] %v4426
        %4666 = vst [vmem:[%s95 + $0x48] sm:$0xff] %v4427
        %4667 = vst [vmem:[%s95 + $0x50] sm:$0xff] %v4428
        %4668 = vst [vmem:[%s95 + $0x58] sm:$0xff] %v4429
        %4669 = vst [vmem:[%s95 + $0x60] sm:$0xff] %v4430
        %4670 = vst [vmem:[%s95 + $0x68] sm:$0xff] %v4431
        %4671 = vst [vmem:[%s95 + $0x70] sm:$0xff] %v4432
        %4672 = vst [vmem:[%s95 + $0x78] sm:$0xff] %v4433
        %4673 = vst [vmem:[%s95 + $0x80] sm:$0xff] %v4434
        %4674 = vst [vmem:[%s95 + $0x88] sm:$0xff] %v4435
        %4675 = vst [vmem:[%s95 + $0x90] sm:$0xff] %v4436
        %4676 = vst [vmem:[%s95 + $0x98] sm:$0xff] %v4437
        %4677 = vst [vmem:[%s95 + $0xa0] sm:$0xff] %v4438
        %4678 = vst [vmem:[%s95 + $0xa8] sm:$0xff] %v4439
        %4679 = vst [vmem:[%s95 + $0xb0] sm:$0xff] %v4440
        %4680 = vst [vmem:[%s95 + $0xb8] sm:$0xff] %v4441
        %4681 = vst [vmem:[%s95 + $0xc0] sm:$0xff] %v4442
        %4682 = vst [vmem:[%s95 + $0xc8] sm:$0xff] %v4443
        %4683 = vst [vmem:[%s95 + $0xd0] sm:$0xff] %v4444
        %4684 = vst [vmem:[%s95 + $0xd8] sm:$0xff] %v4445
        %4685 = vst [vmem:[%s95 + $0xe0] sm:$0xff] %v4446
        %4686 = vst [vmem:[%s95 + $0xe8] sm:$0xff] %v4447
        %4687 = vst [vmem:[%s95 + $0xf0] sm:$0xff] %v4448
        %4688 = vst [vmem:[%s95 + $0xf8] sm:$0xff] %v4449
        %4689 = vst [vmem:[%s95 + $0x100] sm:$0xff] %v4450
        %4690 = vst [vmem:[%s95 + $0x108] sm:$0xff] %v4451
        %4691 = vst [vmem:[%s95 + $0x110] sm:$0xff] %v4452
        %4692 = vst [vmem:[%s95 + $0x118] sm:$0xff] %v4453
        %4693 = vst [vmem:[%s95 + $0x120] sm:$0xff] %v4454
        %4694 = vst [vmem:[%s95 + $0x128] sm:$0xff] %v4455
        %4695 = vst [vmem:[%s95 + $0x130] sm:$0xff] %v4456
        %4696 = vst [vmem:[%s95 + $0x138] sm:$0xff] %v4457
        %4697 = vst [vmem:[%s95 + $0x140] sm:$0xff] %v4458
        %4698 = vst [vmem:[%s95 + $0x148] sm:$0xff] %v4459
        %4699 = vst [vmem:[%s95 + $0x150] sm:$0xff] %v4460
        %4700 = vst [vmem:[%s95 + $0x158] sm:$0xff] %v4461
        %4701 = vst [vmem:[%s95 + $0x160] sm:$0xff] %v4462
        %4702 = vst [vmem:[%s95 + $0x168] sm:$0xff] %v4463
        %4703 = vst [vmem:[%s95 + $0x170] sm:$0xff] %v4464
        %4704 = vst [vmem:[%s95 + $0x178] sm:$0xff] %v4465
        %4705 = vst [vmem:[%s95 + $0x180] sm:$0xff] %v4466
        %4706 = vst [vmem:[%s95 + $0x188] sm:$0xff] %v4467
        %4707 = vst [vmem:[%s95 + $0x190] sm:$0xff] %v4468
        %4708 = vst [vmem:[%s95 + $0x198] sm:$0xff] %v4469
        %4709 = vst [vmem:[%s95 + $0x1a0] sm:$0xff] %v4470
        %4710 = vst [vmem:[%s95 + $0x1a8] sm:$0xff] %v4471
        %4711 = vst [vmem:[%s95 + $0x1b0] sm:$0xff] %v4472
        %4712 = vst [vmem:[%s95 + $0x1b8] sm:$0xff] %v4473
        %4713 = vst [vmem:[%s95 + $0x1c0] sm:$0xff] %v4474
        %4714 = vst [vmem:[%s95 + $0x1c8] sm:$0xff] %v4475
        %4715 = vst [vmem:[%s95 + $0x1d0] sm:$0xff] %v4476
        %4716 = vst [vmem:[%s95 + $0x1d8] sm:$0xff] %v4477
        %4717 = vst [vmem:[%s95 + $0x1e0] sm:$0xff] %v4478
        %4718 = vst [vmem:[%s95 + $0x1e8] sm:$0xff] %v4479
        %4719 = vst [vmem:[%s95 + $0x1f0] sm:$0xff] %v4480
        %4720 = vst [vmem:[%s95 + $0x1f8] sm:$0xff] %v4481
        %4721 = vst [vmem:[%s95 + $0x200] sm:$0xff] %v4482
        %4722 = vst [vmem:[%s95 + $0x208] sm:$0xff] %v4483
        %4723 = vst [vmem:[%s95 + $0x210] sm:$0xff] %v4484
        %4724 = vst [vmem:[%s95 + $0x218] sm:$0xff] %v4485
        %4725 = vst [vmem:[%s95 + $0x220] sm:$0xff] %v4486
        %4726 = vst [vmem:[%s95 + $0x228] sm:$0xff] %v4487
        %4727 = vst [vmem:[%s95 + $0x230] sm:$0xff] %v4488
        %4728 = vst [vmem:[%s95 + $0x238] sm:$0xff] %v4489
        %4729 = vst [vmem:[%s95 + $0x240] sm:$0xff] %v4490
        %4730 = vst [vmem:[%s95 + $0x248] sm:$0xff] %v4491
        %4731 = vst [vmem:[%s95 + $0x250] sm:$0xff] %v4492
        %4732 = vst [vmem:[%s95 + $0x258] sm:$0xff] %v4493
        %4733 = vst [vmem:[%s95 + $0x260] sm:$0xff] %v4494
        %4734 = vst [vmem:[%s95 + $0x268] sm:$0xff] %v4495
        %4735 = vst [vmem:[%s95 + $0x270] sm:$0xff] %v4496
        %4736 = vst [vmem:[%s95 + $0x278] sm:$0xff] %v4497
        %4737 = vst [vmem:[%s95 + $0x280] sm:$0xff] %v4498
        %4738 = vst [vmem:[%s95 + $0x288] sm:$0xff] %v4499
        %4739 = vst [vmem:[%s95 + $0x290] sm:$0xff] %v4500
        %4740 = vst [vmem:[%s95 + $0x298] sm:$0xff] %v4501
        %4741 = vst [vmem:[%s95 + $0x2a0] sm:$0xff] %v4502
        %4742 = vst [vmem:[%s95 + $0x2a8] sm:$0xff] %v4503
        %4743 = vst [vmem:[%s95 + $0x2b0] sm:$0xff] %v4504
        %4744 = vst [vmem:[%s95 + $0x2b8] sm:$0xff] %v4505
        %4745 = vst [vmem:[%s95 + $0x2c0] sm:$0xff] %v4506
        %4746 = vst [vmem:[%s95 + $0x2c8] sm:$0xff] %v4507
        %4747 = vst [vmem:[%s95 + $0x2d0] sm:$0xff] %v4508
        %4748 = vst [vmem:[%s95 + $0x2d8] sm:$0xff] %v4509
        %4749 = vst [vmem:[%s95 + $0x2e0] sm:$0xff] %v4510
        %4750 = vst [vmem:[%s95 + $0x2e8] sm:$0xff] %v4511
        %4751 = vst [vmem:[%s95 + $0x2f0] sm:$0xff] %v4512
        %4752 = vst [vmem:[%s95 + $0x2f8] sm:$0xff] %v4513
        %4753 = vst [vmem:[%s95 + $0x300] sm:$0xff] %v4514
        %4754 = vst [vmem:[%s95 + $0x308] sm:$0xff] %v4515
        %4755 = vst [vmem:[%s95 + $0x310] sm:$0xff] %v4516
        %4756 = vst [vmem:[%s95 + $0x318] sm:$0xff] %v4517
        %4757 = vst [vmem:[%s95 + $0x320] sm:$0xff] %v4518
        %4758 = vst [vmem:[%s95 + $0x328] sm:$0xff] %v4519
        %4759 = vst [vmem:[%s95 + $0x330] sm:$0xff] %v4520
        %4760 = vst [vmem:[%s95 + $0x338] sm:$0xff] %v4521
        %4761 = vst [vmem:[%s95 + $0x340] sm:$0xff] %v4522
        %4762 = vst [vmem:[%s95 + $0x348] sm:$0xff] %v4523
        %4763 = vst [vmem:[%s95 + $0x350] sm:$0xff] %v4524
        %4764 = vst [vmem:[%s95 + $0x358] sm:$0xff] %v4525
        %4765 = vst [vmem:[%s95 + $0x360] sm:$0xff] %v4526
        %4766 = vst [vmem:[%s95 + $0x368] sm:$0xff] %v4527
        %4767 = vst [vmem:[%s95 + $0x370] sm:$0xff] %v4528
        %4768 = vst [vmem:[%s95 + $0x378] sm:$0xff] %v4529
        %4769 = vst [vmem:[%s95 + $0x380] sm:$0xff] %v4530
        %4770 = vst [vmem:[%s95 + $0x388] sm:$0xff] %v4531
        %4771 = vst [vmem:[%s95 + $0x390] sm:$0xff] %v4532
        %4772 = vst [vmem:[%s95 + $0x398] sm:$0xff] %v4533
        %4773 = vst [vmem:[%s95 + $0x3a0] sm:$0xff] %v4534
        %4774 = vst [vmem:[%s95 + $0x3a8] sm:$0xff] %v4535
        %4775 = vst [vmem:[%s95 + $0x3b0] sm:$0xff] %v4536
        %4776 = vst [vmem:[%s95 + $0x3b8] sm:$0xff] %v4537
        %4777 = vst [vmem:[%s95 + $0x3c0] sm:$0xff] %v4538
        %4778 = vst [vmem:[%s95 + $0x3c8] sm:$0xff] %v4539
        %4779 = vst [vmem:[%s95 + $0x3d0] sm:$0xff] %v4540
        %4780 = vst [vmem:[%s95 + $0x3d8] sm:$0xff] %v4541
        %4781 = vst [vmem:[%s95 + $0x3e0] sm:$0xff] %v4542
        %4782 = vst [vmem:[%s95 + $0x3e8] sm:$0xff] %v4543
        %4783 = vst [vmem:[%s95 + $0x3f0] sm:$0xff] %v4544
        %4784 = vst [vmem:[%s95 + $0x3f8] sm:$0xff] %v4545
        %4785 = vst [vmem:[%s95 + $0x400] sm:$0xff] %v4546
        %4786 = vst [vmem:[%s95 + $0x408] sm:$0xff] %v4547
        %4787 = vst [vmem:[%s95 + $0x410] sm:$0xff] %v4548
        %4788 = vst [vmem:[%s95 + $0x418] sm:$0xff] %v4549
        %4789 = vst [vmem:[%s95 + $0x420] sm:$0xff] %v4550
        %4790 = vst [vmem:[%s95 + $0x428] sm:$0xff] %v4551
        %4791 = vst [vmem:[%s95 + $0x430] sm:$0xff] %v4552
        %4792 = vst [vmem:[%s95 + $0x438] sm:$0xff] %v4553
        %4793 = vst [vmem:[%s95 + $0x440] sm:$0xff] %v4554
        %4794 = vst [vmem:[%s95 + $0x448] sm:$0xff] %v4555
        %4795 = vst [vmem:[%s95 + $0x450] sm:$0xff] %v4556
        %4796 = vst [vmem:[%s95 + $0x458] sm:$0xff] %v4557
        %4797 = vst [vmem:[%s95 + $0x460] sm:$0xff] %v4558
        %4798 = vst [vmem:[%s95 + $0x468] sm:$0xff] %v4559
        %4799 = vst [vmem:[%s95 + $0x470] sm:$0xff] %v4560
        %4800 = vst [vmem:[%s95 + $0x478] sm:$0xff] %v4561
        %4801 = vst [vmem:[%s95 + $0x480] sm:$0xff] %v4562
        %4802 = vst [vmem:[%s95 + $0x488] sm:$0xff] %v4563
        %4803 = vst [vmem:[%s95 + $0x490] sm:$0xff] %v4564
        %4804 = vst [vmem:[%s95 + $0x498] sm:$0xff] %v4565
        %4805 = vst [vmem:[%s95 + $0x4a0] sm:$0xff] %v4566
        %4806 = vst [vmem:[%s95 + $0x4a8] sm:$0xff] %v4567
        %4807 = vst [vmem:[%s95 + $0x4b0] sm:$0xff] %v4568
        %4808 = vst [vmem:[%s95 + $0x4b8] sm:$0xff] %v4569
        %4809 = vst [vmem:[%s95 + $0x4c0] sm:$0xff] %v4570
        %4810 = vst [vmem:[%s95 + $0x4c8] sm:$0xff] %v4571
        %4811 = vst [vmem:[%s95 + $0x4d0] sm:$0xff] %v4572
        %4812 = vst [vmem:[%s95 + $0x4d8] sm:$0xff] %v4573
        %4813 = vst [vmem:[%s95 + $0x4e0] sm:$0xff] %v4574
        %4814 = vst [vmem:[%s95 + $0x4e8] sm:$0xff] %v4575
        %4815 = vst [vmem:[%s95 + $0x4f0] sm:$0xff] %v4576
        %4816 = vst [vmem:[%s95 + $0x4f8] sm:$0xff] %v4577
        %4817 = vst [vmem:[%s95 + $0x500] sm:$0xff] %v4578
        %4818 = vst [vmem:[%s95 + $0x508] sm:$0xff] %v4579
        %4819 = vst [vmem:[%s95 + $0x510] sm:$0xff] %v4580
        %4820 = vst [vmem:[%s95 + $0x518] sm:$0xff] %v4581
        %4821 = vst [vmem:[%s95 + $0x520] sm:$0xff] %v4582
        %4822 = vst [vmem:[%s95 + $0x528] sm:$0xff] %v4583
        %4823 = vst [vmem:[%s95 + $0x530] sm:$0xff] %v4584
        %4824 = vst [vmem:[%s95 + $0x538] sm:$0xff] %v4585
        %4825 = vst [vmem:[%s95 + $0x540] sm:$0xff] %v4586
        %4826 = vst [vmem:[%s95 + $0x548] sm:$0xff] %v4587
        %4827 = vst [vmem:[%s95 + $0x550] sm:$0xff] %v4588
        %4828 = vst [vmem:[%s95 + $0x558] sm:$0xff] %v4589
        %4829 = vst [vmem:[%s95 + $0x560] sm:$0xff] %v4590
        %4830 = vst [vmem:[%s95 + $0x568] sm:$0xff] %v4591
        %4831 = vst [vmem:[%s95 + $0x570] sm:$0xff] %v4592
        %4832 = vst [vmem:[%s95 + $0x578] sm:$0xff] %v4593
        %4833 = vst [vmem:[%s95 + $0x580] sm:$0xff] %v4594
        %4834 = vst [vmem:[%s95 + $0x588] sm:$0xff] %v4595
        %4835 = vst [vmem:[%s95 + $0x590] sm:$0xff] %v4596
        %4836 = vst [vmem:[%s95 + $0x598] sm:$0xff] %v4597
        %4837 = vst [vmem:[%s95 + $0x5a0] sm:$0xff] %v4598
        %4838 = vst [vmem:[%s95 + $0x5a8] sm:$0xff] %v4599
        %4839 = vst [vmem:[%s95 + $0x5b0] sm:$0xff] %v4600
        %4840 = vst [vmem:[%s95 + $0x5b8] sm:$0xff] %v4601
        %4841 = vst [vmem:[%s95 + $0x5c0] sm:$0xff] %v4602
        %4842 = vst [vmem:[%s95 + $0x5c8] sm:$0xff] %v4603
        %4843 = vst [vmem:[%s95 + $0x5d0] sm:$0xff] %v4604
        %4844 = vst [vmem:[%s95 + $0x5d8] sm:$0xff] %v4605
        %4845 = vst [vmem:[%s95 + $0x5e0] sm:$0xff] %v4606
        %4846 = vst [vmem:[%s95 + $0x5e8] sm:$0xff] %v4607
        %4847 = vst [vmem:[%s95 + $0x5f0] sm:$0xff] %v4608
        %4848 = vst [vmem:[%s95 + $0x5f8] sm:$0xff] %v4609
        %4849 = vst [vmem:[%s95 + $0x600] sm:$0xff] %v4610
        %4850 = vst [vmem:[%s95 + $0x608] sm:$0xff] %v4611
        %4851 = vst [vmem:[%s95 + $0x610] sm:$0xff] %v4612
        %4852 = vst [vmem:[%s95 + $0x618] sm:$0xff] %v4613
        %4853 = vst [vmem:[%s95 + $0x620] sm:$0xff] %v4614
        %4854 = vst [vmem:[%s95 + $0x628] sm:$0xff] %v4615
        %4855 = vst [vmem:[%s95 + $0x630] sm:$0xff] %v4616
        %4856 = vst [vmem:[%s95 + $0x638] sm:$0xff] %v4617
        %4857 = vst [vmem:[%s95 + $0x640] sm:$0xff] %v4618
        %4858 = vst [vmem:[%s95 + $0x648] sm:$0xff] %v4619
        %4859 = vst [vmem:[%s95 + $0x650] sm:$0xff] %v4620
        %4860 = vst [vmem:[%s95 + $0x658] sm:$0xff] %v4621
        %4861 = vst [vmem:[%s95 + $0x660] sm:$0xff] %v4622
        %4862 = vst [vmem:[%s95 + $0x668] sm:$0xff] %v4623
        %4863 = vst [vmem:[%s95 + $0x670] sm:$0xff] %v4624
        %4864 = vst [vmem:[%s95 + $0x678] sm:$0xff] %v4625
        %4865 = vst [vmem:[%s95 + $0x680] sm:$0xff] %v4626
        %4866 = vst [vmem:[%s95 + $0x688] sm:$0xff] %v4627
        %4867 = vst [vmem:[%s95 + $0x690] sm:$0xff] %v4628
        %4868 = vst [vmem:[%s95 + $0x698] sm:$0xff] %v4629
        %4869 = vst [vmem:[%s95 + $0x6a0] sm:$0xff] %v4630
        %4870 = vst [vmem:[%s95 + $0x6a8] sm:$0xff] %v4631
        %4871 = vst [vmem:[%s95 + $0x6b0] sm:$0xff] %v4632
        %4872 = vst [vmem:[%s95 + $0x6b8] sm:$0xff] %v4633
        %4873 = vst [vmem:[%s95 + $0x6c0] sm:$0xff] %v4634
        %4874 = vst [vmem:[%s95 + $0x6c8] sm:$0xff] %v4635
        %4875 = vst [vmem:[%s95 + $0x6d0] sm:$0xff] %v4636
        %4876 = vst [vmem:[%s95 + $0x6d8] sm:$0xff] %v4637
        %4877 = vst [vmem:[%s95 + $0x6e0] sm:$0xff] %v4638
        %4878 = vst [vmem:[%s95 + $0x6e8] sm:$0xff] %v4639
        %4879 = vst [vmem:[%s95 + $0x6f0] sm:$0xff] %v4640
        %4880 = vst [vmem:[%s95 + $0x6f8] sm:$0xff] %v4641
        %4881 = vst [vmem:[%s95 + $0x700] sm:$0xff] %v4642
        %4882 = vst [vmem:[%s95 + $0x708] sm:$0xff] %v4643
        %4883 = vst [vmem:[%s95 + $0x710] sm:$0xff] %v4644
        %4884 = vst [vmem:[%s95 + $0x718] sm:$0xff] %v4645
        %4885 = vst [vmem:[%s95 + $0x720] sm:$0xff] %v4646
        %4886 = vst [vmem:[%s95 + $0x728] sm:$0xff] %v4647
        %4887 = vst [vmem:[%s95 + $0x730] sm:$0xff] %v4648
        %4888 = vst [vmem:[%s95 + $0x738] sm:$0xff] %v4649
        %4889 = vst [vmem:[%s95 + $0x740] sm:$0xff] %v4650
        %4890 = vst [vmem:[%s95 + $0x748] sm:$0xff] %v4651
        %4891 = vst [vmem:[%s95 + $0x750] sm:$0xff] %v4652
        %4892 = vst [vmem:[%s95 + $0x758] sm:$0xff] %v4653
        %4893 = vst [vmem:[%s95 + $0x760] sm:$0xff] %v4654
        %4894 = vst [vmem:[%s95 + $0x768] sm:$0xff] %v4655
        %vm4895 = vcmask 474112
        %4896 = vst.msk [vmem:[%s95 + $0x770] sm:$0xff] %vm4895, %v4656
        %s4897 = sand.u32 %s45, 1
        %s4898 = scalar_lea.sflag [#allocation4], %s4897
        %s4899 = sand.u32 %s45, 1
        %s4900 = smul.addr %s4899, 1912
        %s4901 = scalar_lea.vmem [#allocation3], %s4900
        // Predicated region
        $region25: #{_mock_forward_impl.3} parent=23 // pred_check
          %p4902 = pneg %p55
        $region26: #{_mock_forward_impl.3} parent=23 // pred_check_branch
          %4904 = sbr.rel (%p4902) target = $region28
        $region27: #{_mock_forward_impl.3} parent=23 // pred_region
          %4906 = vsyncadd %s4898, 0
          %s4907 = smul.addr %s16, 239
          %s4908 = smul.addr %s4907, 8
          %s4909 = scalar_lea.hbm %s1, %s4908
          %s4911 = sshll.u32 %s4901, 4
          %s4912 = int_to_ptr.vmem [resolvable:$true] %s4911
          %s4913 = sshll.u32 %s4909, 4
          %s4914 = int_to_ptr.hbm [resolvable:$true] %s4913
          %4916 = dma.vmem_to_hbm [thread:$0]  %s4912, 30592, %s4914, %s4898
        $region28: #{_mock_forward_impl.3} parent=23 // pred_fallthru
          _
      $region24: #{_mock_forward_impl.3} parent=5 // pred_fallthru
        _
      %p4917 = scmp.le.s32.totalorder 2, %s11
      // Predicated region
      $region29: #{_mock_forward_impl.3} parent=5 // pred_check
        %p4918 = pneg %p4917
      $region30: #{_mock_forward_impl.3} parent=5 // pred_check_branch
        %4920 = sbr.rel (%p4918) target = $region32
      $region31: #{_mock_forward_impl.3} parent=5 // pred_region
        %s4921 = ssub.s32 %s11, 2
        // Predicated region
        $region33: #{_mock_forward_impl.3} parent=31 // pred_check
          %p4922 = pneg %p61
        $region34: #{_mock_forward_impl.3} parent=31 // pred_check_branch
          %4924 = sbr.rel (%p4922) target = $region36
        $region35: #{_mock_forward_impl.3} parent=31 // pred_region
          %s4925 = sand.u32 %s46, 1
          %s4926 = scalar_lea.sflag [#allocation4], %s4925
          %s4927 = sand.u32 %s46, 1
          %s4928 = smul.addr %s4927, 1912
          %s4929 = scalar_lea.vmem [#allocation3], %s4928
          %4931 = dma.done %s4926, 30592
        $region36: #{_mock_forward_impl.3} parent=31 // pred_fallthru
          _
      $region32: #{_mock_forward_impl.3} parent=5 // pred_fallthru
        _
    $region6: #{_mock_forward_impl.3} parent=1 // loop_footer
      %s15 = sadd.s32 1, %s11
    $region7: #{_mock_forward_impl.3} parent=1 // loop_footer_branch
      %10 = sbr.rel target = $region3
    $region8: #{_mock_forward_impl.3} parent=1 // loop_exit
      _
    %4932 = vsyncpa [#allocation4], 1
    %s4933 = scalar_lea.sflag [#allocation4], 1
    %4934 = vsyncpa %s4933, 1

</llo_original>
